<compile_context>
chip_gen: v7x
topology: tpu7x:2x2x1
jax: 0.10.0
libtpu: 0.0.40
codegen_flags: <defaults>
</compile_context>

<pallas_src>
import jax
import jax.numpy as jnp
from jax.experimental import pallas as pl
from jax.experimental.pallas import tpu as pltpu


# ---------------------------------------------------------------------------
# Pallas kernels
# ---------------------------------------------------------------------------
def _conv_pool_kernel(a_ref, w_ref, b_ref, o_ref):
    """Fused conv-as-GEMM + bias + ReLU + 2x2 average pool.

    a_ref: (4, blk, K)  parity-decomposed im2col patches (p = 2*di + dj)
    w_ref: (K, OC) bf16 (pre-scaled by 1/4), b_ref: (1, OC) f32 (pre-scaled),
    o_ref: (blk, OC) bf16 pooled rows.
    """
    w = w_ref[...]
    b = b_ref[...]
    acc = jnp.zeros(o_ref.shape, jnp.float32)
    for p in range(4):  # unrolled: the four 2x2-pool-window parities
        y = jnp.dot(a_ref[p], w, preferred_element_type=jnp.float32) + b
        acc = acc + jnp.maximum(y, 0.0)   # sum of relu(y/4) == avgpool(relu)
    o_ref[...] = acc.astype(o_ref.dtype)


def _fc_chain_kernel(x_ref, w1_ref, b1_ref, w2_ref, b2_ref, w3_ref, b3_ref,
                     o_ref):
    """fc1(+ReLU) -> fc2(+ReLU) -> fc3; intermediates never leave VMEM."""
    h = jnp.dot(x_ref[...], w1_ref[...], preferred_element_type=jnp.float32)
    h = jnp.maximum(h + b1_ref[...], 0.0)
    h = jnp.dot(h.astype(w2_ref.dtype), w2_ref[...],
                preferred_element_type=jnp.float32)
    h = jnp.maximum(h + b2_ref[...], 0.0)
    h = jnp.dot(h.astype(w3_ref.dtype), w3_ref[...],
                preferred_element_type=jnp.float32)
    o_ref[...] = (h + b3_ref[...]).astype(o_ref.dtype)


# ---------------------------------------------------------------------------
# Pallas wrappers
# ---------------------------------------------------------------------------
def conv_relu_pool_pallas(patches4, w_t, b, *, blk_m=1024):
    """patches4: (4, M, K) bf16; w_t: (K, OC) bf16; b: (1, OC) f32 -> (M, OC) bf16."""
    _, M, K = patches4.shape
    OC = w_t.shape[1]
    blk = M if M <= blk_m else blk_m          # blk_m is a multiple of 16
    grid = (pl.cdiv(M, blk),)
    return pl.pallas_call(
        _conv_pool_kernel,
        out_shape=jax.ShapeDtypeStruct((M, OC), jnp.bfloat16),
        grid_spec=pltpu.PrefetchScalarGridSpec(
            num_scalar_prefetch=0,
            grid=grid,
            in_specs=[
                pl.BlockSpec((4, blk, K), lambda i: (0, i, 0)),
                pl.BlockSpec((K, OC), lambda i: (0, 0)),
                pl.BlockSpec((1, OC), lambda i: (0, 0)),
            ],
            out_specs=pl.BlockSpec((blk, OC), lambda i: (i, 0)),
        ),
        compiler_params=pltpu.CompilerParams(
            dimension_semantics=("parallel",)),
    )(patches4, w_t, b)


def fc_chain_pallas(x, w1, b1, w2, b2, w3, b3, *, blk_n=512):
    """Fused fc1+ReLU -> fc2+ReLU -> fc3. x: (N, 400) bf16, weights (K, N) bf16."""
    N, K1 = x.shape
    H1, H2, NO = w1.shape[1], w2.shape[1], w3.shape[1]
    blk = N if N <= blk_n else blk_n          # blk_n is a multiple of 16
    grid = (pl.cdiv(N, blk),)
    return pl.pallas_call(
        _fc_chain_kernel,
        out_shape=jax.ShapeDtypeStruct((N, NO), jnp.float32),
        grid_spec=pltpu.PrefetchScalarGridSpec(
            num_scalar_prefetch=0,
            grid=grid,
            in_specs=[
                pl.BlockSpec((blk, K1), lambda i: (i, 0)),
                pl.BlockSpec((K1, H1), lambda i: (0, 0)),
                pl.BlockSpec((1, H1), lambda i: (0, 0)),
                pl.BlockSpec((H1, H2), lambda i: (0, 0)),
                pl.BlockSpec((1, H2), lambda i: (0, 0)),
                pl.BlockSpec((H2, NO), lambda i: (0, 0)),
                pl.BlockSpec((1, NO), lambda i: (0, 0)),
            ],
            out_specs=pl.BlockSpec((blk, NO), lambda i: (i, 0)),
        ),
        compiler_params=pltpu.CompilerParams(
            dimension_semantics=("parallel",)),
    )(x, w1, b1, w2, b2, w3, b3)


# ---------------------------------------------------------------------------
# Glue: parity-decomposed im2col (pure data rearrangement in XLA)
# ---------------------------------------------------------------------------
def _im2col_pool_parity(x_nhwc, k, pad):
    """NHWC input -> (4, N*(Ho//2)*(Wo//2), C*k*k) patches, parity p = 2*di+dj.

    Patch K-axis is flattened in (C, kh, kw) order to match PyTorch's
    w.reshape(OC, -1). Rows within a parity are ordered (n, i, j).
    """
    N, H, W, C = x_nhwc.shape
    if pad:
        x_nhwc = jnp.pad(x_nhwc, ((0, 0), (pad, pad), (pad, pad), (0, 0)))
    Hp, Wp = H + 2 * pad, W + 2 * pad
    Ho, Wo = Hp - k + 1, Wp - k + 1
    assert Ho % 2 == 0 and Wo % 2 == 0
    cols = jnp.stack(
        [x_nhwc[:, kh:kh + Ho, kw:kw + Wo, :]
         for kh in range(k) for kw in range(k)],
        axis=-1)                                    # (N, Ho, Wo, C, k*k)
    patches = cols.reshape(N, Ho, Wo, C * k * k)    # K order = (c, kh, kw)
    Hq, Wq = Ho // 2, Wo // 2
    parts = [
        patches[:, di::2, dj::2, :].reshape(N * Hq * Wq, C * k * k)
        for di in (0, 1) for dj in (0, 1)
    ]
    return jnp.stack(parts, axis=0), Hq, Wq


def conv_relu_pool(x_nhwc, w_t, b, *, k, pad):
    """One fused Conv2d(stride 1) + ReLU + AvgPool2d(2) layer. NHWC in/out (bf16)."""
    N = x_nhwc.shape[0]
    OC = w_t.shape[1]
    patches4, Hq, Wq = _im2col_pool_parity(x_nhwc.astype(jnp.bfloat16), k, pad)
    out = conv_relu_pool_pallas(patches4, w_t, b)   # (N*Hq*Wq, OC) bf16
    return out.reshape(N, Hq, Wq, OC)


# ---------------------------------------------------------------------------
# Parameters
# ---------------------------------------------------------------------------
def init_params(key):
    """Parameters in native PyTorch layouts."""
    ks = jax.random.split(key, 10)
    s = 0.05
    return {
        "conv1_w": jax.random.normal(ks[0], (6, 1, 5, 5), jnp.float32) * s,
        "conv1_b": jax.random.normal(ks[1], (6,), jnp.float32) * s,
        "conv2_w": jax.random.normal(ks[2], (16, 6, 5, 5), jnp.float32) * s,
        "conv2_b": jax.random.normal(ks[3], (16,), jnp.float32) * s,
        "fc1_w": jax.random.normal(ks[4], (120, 400), jnp.float32) * s,
        "fc1_b": jax.random.normal(ks[5], (120,), jnp.float32) * s,
        "fc2_w": jax.random.normal(ks[6], (84, 120), jnp.float32) * s,
        "fc2_b": jax.random.normal(ks[7], (84,), jnp.float32) * s,
        "fc3_w": jax.random.normal(ks[8], (10, 84), jnp.float32) * s,
        "fc3_b": jax.random.normal(ks[9], (10,), jnp.float32) * s,
    }


def prepare_params(p):
    """One-time layout prep (outside jit).

    * (K, N) bf16 weights, (1, N) f32 biases.
    * The avg-pool's 1/4 is folded into the conv weights/biases
      (exact power-of-two scale; relu(y)/4 == relu(y/4)).
    * PyTorch's (C, H, W) flatten order is folded into fc1's weight so the
      conv2 output can be flattened in its native (H, W, C) order with no
      per-step activation transpose.
    """
    def wt(w):   # conv (OC,IC,k,k) or fc (OUT,IN) -> (K, OUT) bf16
        return w.reshape(w.shape[0], -1).T.astype(jnp.bfloat16)

    def bias(b):
        return b.reshape(1, -1).astype(jnp.float32)

    # hwc -> chw index permutation for the 400-d flatten (C2=16, Hq=Wq=5).
    c2, hq, wq = 16, 5, 5
    hwc = jnp.arange(c2 * hq * wq)
    h, w, c = hwc // (wq * c2), (hwc // c2) % wq, hwc % c2
    perm = c * (hq * wq) + h * wq + w

    return {
        "conv1_w": wt(p["conv1_w"] * 0.25), "conv1_b": bias(p["conv1_b"] * 0.25),
        "conv2_w": wt(p["conv2_w"] * 0.25), "conv2_b": bias(p["conv2_b"] * 0.25),
        "fc1_w": p["fc1_w"][:, perm].T.astype(jnp.bfloat16),
        "fc1_b": bias(p["fc1_b"]),
        "fc2_w": wt(p["fc2_w"]), "fc2_b": bias(p["fc2_b"]),
        "fc3_w": wt(p["fc3_w"]), "fc3_b": bias(p["fc3_b"]),
    }


# ---------------------------------------------------------------------------
# Forward pass (prepared params, NCHW input like PyTorch)
# ---------------------------------------------------------------------------
@jax.jit
def lenet_forward(params, x):
    N = x.shape[0]
    # NCHW -> NHWC; conv1 has a single input channel so this is a pure reshape.
    if x.shape[1] == 1:
        x = x.reshape(N, x.shape[2], x.shape[3], 1)
    else:
        x = jnp.transpose(x, (0, 2, 3, 1))
    # conv1: Conv2d(1->6, k=5, pad=2) + ReLU + AvgPool2d(2)   -> (N,14,14,6) bf16
    x = conv_relu_pool(x, params["conv1_w"], params["conv1_b"], k=5, pad=2)
    # conv2: Conv2d(6->16, k=5, pad=0) + ReLU + AvgPool2d(2)  -> (N,5,5,16) bf16
    x = conv_relu_pool(x, params["conv2_w"], params["conv2_b"], k=5, pad=0)
    # Flatten in native (H, W, C) order; the (C, H, W) permutation lives in
    # fc1's prepared weight -> no activation transpose here.
    x = x.reshape(N, -1)                                                # (N,400)
    return fc_chain_pallas(x,
                           params["fc1_w"], params["fc1_b"],
                           params["fc2_w"], params["fc2_b"],
                           params["fc3_w"], params["fc3_b"])            # (N,10)


# ---------------------------------------------------------------------------
# Pure-JAX reference (f32) for a sanity check
# ---------------------------------------------------------------------------
def lenet_reference(p, x):
    def conv(x, w, b, pad):
        y = jax.lax.conv_general_dilated(
            x, w, window_strides=(1, 1),
            padding=[(pad, pad), (pad, pad)],
            dimension_numbers=("NCHW", "OIHW", "NCHW"))
        return y + b.reshape(1, -1, 1, 1)

    def pool(x):
        N, C, H, W = x.shape
        return x.reshape(N, C, H // 2, 2, W // 2, 2).mean(axis=(3, 5))

    x = pool(jax.nn.relu(conv(x, p["conv1_w"], p["conv1_b"], 2)))
    x = pool(jax.nn.relu(conv(x, p["conv2_w"], p["conv2_b"], 0)))
    x = x.reshape(x.shape[0], -1)
    x = jax.nn.relu(x @ p["fc1_w"].T + p["fc1_b"])
    x = jax.nn.relu(x @ p["fc2_w"].T + p["fc2_b"])
    return x @ p["fc3_w"].T + p["fc3_b"]


if __name__ == "__main__":
    key = jax.random.PRNGKey(0)
    k_params, k_x = jax.random.split(key)
    params = init_params(k_params)
    prepared = prepare_params(params)
    # LeNet-5 architecture (16*5*5 flatten) requires 28x28 spatial input.
    x = jax.random.normal(k_x, (2, 1, 28, 28), jnp.float32)

    out = lenet_forward(prepared, x)
    out = jax.block_until_ready(out)
    assert out.shape == (2, 10) and out.dtype == jnp.float32

    ref = jax.block_until_ready(lenet_reference(params, x))
    assert jnp.allclose(out, ref, rtol=2e-2, atol=2e-2), (
        "mismatch vs reference")

    print("KERNEL_OK")
</pallas_src>

<mosaic_0001>
module attributes {stable_mosaic.version = 11 : i64} {
  func.func @_conv_pool_kernel(%arg0: i32, %arg1: memref<4x392x25xbf16, #tpu.memory_space<vmem>>, %arg2: memref<25x6xbf16, #tpu.memory_space<vmem>>, %arg3: memref<1x6xf32, #tpu.memory_space<vmem>>, %arg4: memref<392x6xbf16, #tpu.memory_space<vmem>>) attributes {dimension_semantics = [#tpu.dimension_semantics<parallel>], iteration_bounds = array<i64: 1>, scalar_prefetch = 0 : i64, scratch_operands = 0 : i64, tpu.core_type = #tpu.core_type<tc>, window_params = [{transform_indices = @transform_0, window_bounds = array<i64: 4, 392, 25>}, {pipeline_mode = #tpu.pipeline_mode<synchronous>, transform_indices = @transform_1, window_bounds = array<i64: 25, 6>}, {pipeline_mode = #tpu.pipeline_mode<synchronous>, transform_indices = @transform_2, window_bounds = array<i64: 1, 6>}, {transform_indices = @transform_3, window_bounds = array<i64: 392, 6>}]} {
    %c0 = arith.constant 0 : index
    %c0_0 = arith.constant 0 : index
    %0 = vector.load %arg2[%c0, %c0_0] : memref<25x6xbf16, #tpu.memory_space<vmem>>, vector<25x6xbf16>
    %c0_1 = arith.constant 0 : index
    %c0_2 = arith.constant 0 : index
    %1 = vector.load %arg3[%c0_1, %c0_2] : memref<1x6xf32, #tpu.memory_space<vmem>>, vector<1x6xf32>
    %cst = arith.constant 0.000000e+00 : f32
    %2 = vector.broadcast %cst : f32 to vector<392x6xf32>
    %c0_3 = arith.constant 0 : index
    %c0_4 = arith.constant 0 : index
    %c0_5 = arith.constant 0 : index
    %3 = vector.load %arg1[%c0_3, %c0_4, %c0_5] : memref<4x392x25xbf16, #tpu.memory_space<vmem>>, vector<1x392x25xbf16>
    %4 = vector.shape_cast %3 : vector<1x392x25xbf16> to vector<392x25xbf16>
    %cst_6 = arith.constant dense<0.000000e+00> : vector<392x6xf32>
    %5 = tpu.matmul %4, %0, %cst_6 {dimension_numbers = #tpu.dot_dimension_numbers<[1], [0], [0], [1], [0, 0, 1, 1], [], []>} : vector<392x25xbf16>, vector<25x6xbf16>, vector<392x6xf32> -> vector<392x6xf32>
    %6 = vector.broadcast %1 : vector<1x6xf32> to vector<392x6xf32>
    %7 = arith.addf %5, %6 : vector<392x6xf32>
    %cst_7 = arith.constant 0.000000e+00 : f32
    %8 = vector.broadcast %cst_7 : f32 to vector<392x6xf32>
    %9 = arith.maximumf %7, %8 : vector<392x6xf32>
    %10 = arith.addf %2, %9 : vector<392x6xf32>
    %c1 = arith.constant 1 : index
    %c0_8 = arith.constant 0 : index
    %c0_9 = arith.constant 0 : index
    %11 = vector.load %arg1[%c1, %c0_8, %c0_9] : memref<4x392x25xbf16, #tpu.memory_space<vmem>>, vector<1x392x25xbf16>
    %12 = vector.shape_cast %11 : vector<1x392x25xbf16> to vector<392x25xbf16>
    %cst_10 = arith.constant dense<0.000000e+00> : vector<392x6xf32>
    %13 = tpu.matmul %12, %0, %cst_10 {dimension_numbers = #tpu.dot_dimension_numbers<[1], [0], [0], [1], [0, 0, 1, 1], [], []>} : vector<392x25xbf16>, vector<25x6xbf16>, vector<392x6xf32> -> vector<392x6xf32>
    %14 = vector.broadcast %1 : vector<1x6xf32> to vector<392x6xf32>
    %15 = arith.addf %13, %14 : vector<392x6xf32>
    %cst_11 = arith.constant 0.000000e+00 : f32
    %16 = vector.broadcast %cst_11 : f32 to vector<392x6xf32>
    %17 = arith.maximumf %15, %16 : vector<392x6xf32>
    %18 = arith.addf %10, %17 : vector<392x6xf32>
    %c2 = arith.constant 2 : index
    %c0_12 = arith.constant 0 : index
    %c0_13 = arith.constant 0 : index
    %19 = vector.load %arg1[%c2, %c0_12, %c0_13] : memref<4x392x25xbf16, #tpu.memory_space<vmem>>, vector<1x392x25xbf16>
    %20 = vector.shape_cast %19 : vector<1x392x25xbf16> to vector<392x25xbf16>
    %cst_14 = arith.constant dense<0.000000e+00> : vector<392x6xf32>
    %21 = tpu.matmul %20, %0, %cst_14 {dimension_numbers = #tpu.dot_dimension_numbers<[1], [0], [0], [1], [0, 0, 1, 1], [], []>} : vector<392x25xbf16>, vector<25x6xbf16>, vector<392x6xf32> -> vector<392x6xf32>
    %22 = vector.broadcast %1 : vector<1x6xf32> to vector<392x6xf32>
    %23 = arith.addf %21, %22 : vector<392x6xf32>
    %cst_15 = arith.constant 0.000000e+00 : f32
    %24 = vector.broadcast %cst_15 : f32 to vector<392x6xf32>
    %25 = arith.maximumf %23, %24 : vector<392x6xf32>
    %26 = arith.addf %18, %25 : vector<392x6xf32>
    %c3 = arith.constant 3 : index
    %c0_16 = arith.constant 0 : index
    %c0_17 = arith.constant 0 : index
    %27 = vector.load %arg1[%c3, %c0_16, %c0_17] : memref<4x392x25xbf16, #tpu.memory_space<vmem>>, vector<1x392x25xbf16>
    %28 = vector.shape_cast %27 : vector<1x392x25xbf16> to vector<392x25xbf16>
    %cst_18 = arith.constant dense<0.000000e+00> : vector<392x6xf32>
    %29 = tpu.matmul %28, %0, %cst_18 {dimension_numbers = #tpu.dot_dimension_numbers<[1], [0], [0], [1], [0, 0, 1, 1], [], []>} : vector<392x25xbf16>, vector<25x6xbf16>, vector<392x6xf32> -> vector<392x6xf32>
    %30 = vector.broadcast %1 : vector<1x6xf32> to vector<392x6xf32>
    %31 = arith.addf %29, %30 : vector<392x6xf32>
    %cst_19 = arith.constant 0.000000e+00 : f32
    %32 = vector.broadcast %cst_19 : f32 to vector<392x6xf32>
    %33 = arith.maximumf %31, %32 : vector<392x6xf32>
    %34 = arith.addf %26, %33 : vector<392x6xf32>
    %35 = arith.truncf %34 : vector<392x6xf32> to vector<392x6xbf16>
    %c0_20 = arith.constant 0 : index
    %c0_21 = arith.constant 0 : index
    %36 = vector.load %arg4[%c0_20, %c0_21] : memref<392x6xbf16, #tpu.memory_space<vmem>>, vector<392x6xbf16>
    tpu.vector_store %arg4[%c0_20, %c0_21], %35 {strides = array<i32>} : memref<392x6xbf16, #tpu.memory_space<vmem>>, vector<392x6xbf16>,
    return
  }
  func.func @transform_0(%arg0: i32) -> (i32, i32, i32) {
    %c0_i32 = arith.constant 0 : i32
    %c0_i32_0 = arith.constant 0 : i32
    %c0_i32_1 = arith.constant 0 : i32
    return %c0_i32, %arg0, %c0_i32_0 : i32, i32, i32
  }
  func.func @transform_1(%arg0: i32) -> (i32, i32) {
    %c0_i32 = arith.constant 0 : i32
    %c0_i32_0 = arith.constant 0 : i32
    %c0_i32_1 = arith.constant 0 : i32
    return %c0_i32, %c0_i32_0 : i32, i32
  }
  func.func @transform_2(%arg0: i32) -> (i32, i32) {
    %c0_i32 = arith.constant 0 : i32
    %c0_i32_0 = arith.constant 0 : i32
    %c0_i32_1 = arith.constant 0 : i32
    return %c0_i32, %c0_i32_0 : i32, i32
  }
  func.func @transform_3(%arg0: i32) -> (i32, i32) {
    %c0_i32 = arith.constant 0 : i32
    %c0_i32_0 = arith.constant 0 : i32
    return %arg0, %c0_i32 : i32, i32
  }
}

module attributes {stable_mosaic.version = 11 : i64} {
  func.func @_conv_pool_kernel(%arg0: i32, %arg1: memref<4x50x150xbf16, #tpu.memory_space<vmem>>, %arg2: memref<150x16xbf16, #tpu.memory_space<vmem>>, %arg3: memref<1x16xf32, #tpu.memory_space<vmem>>, %arg4: memref<50x16xbf16, #tpu.memory_space<vmem>>) attributes {dimension_semantics = [#tpu.dimension_semantics<parallel>], iteration_bounds = array<i64: 1>, scalar_prefetch = 0 : i64, scratch_operands = 0 : i64, tpu.core_type = #tpu.core_type<tc>, window_params = [{transform_indices = @transform_0, window_bounds = array<i64: 4, 50, 150>}, {pipeline_mode = #tpu.pipeline_mode<synchronous>, transform_indices = @transform_1, window_bounds = array<i64: 150, 16>}, {pipeline_mode = #tpu.pipeline_mode<synchronous>, transform_indices = @transform_2, window_bounds = array<i64: 1, 16>}, {transform_indices = @transform_3, window_bounds = array<i64: 50, 16>}]} {
    %c0 = arith.constant 0 : index
    %c0_0 = arith.constant 0 : index
    %0 = vector.load %arg2[%c0, %c0_0] : memref<150x16xbf16, #tpu.memory_space<vmem>>, vector<150x16xbf16>
    %c0_1 = arith.constant 0 : index
    %c0_2 = arith.constant 0 : index
    %1 = vector.load %arg3[%c0_1, %c0_2] : memref<1x16xf32, #tpu.memory_space<vmem>>, vector<1x16xf32>
    %cst = arith.constant 0.000000e+00 : f32
    %2 = vector.broadcast %cst : f32 to vector<50x16xf32>
    %c0_3 = arith.constant 0 : index
    %c0_4 = arith.constant 0 : index
    %c0_5 = arith.constant 0 : index
    %3 = vector.load %arg1[%c0_3, %c0_4, %c0_5] : memref<4x50x150xbf16, #tpu.memory_space<vmem>>, vector<1x50x150xbf16>
    %4 = vector.shape_cast %3 : vector<1x50x150xbf16> to vector<50x150xbf16>
    %cst_6 = arith.constant dense<0.000000e+00> : vector<50x16xf32>
    %5 = tpu.matmul %4, %0, %cst_6 {dimension_numbers = #tpu.dot_dimension_numbers<[1], [0], [0], [1], [0, 0, 1, 1], [], []>} : vector<50x150xbf16>, vector<150x16xbf16>, vector<50x16xf32> -> vector<50x16xf32>
    %6 = vector.broadcast %1 : vector<1x16xf32> to vector<50x16xf32>
    %7 = arith.addf %5, %6 : vector<50x16xf32>
    %cst_7 = arith.constant 0.000000e+00 : f32
    %8 = vector.broadcast %cst_7 : f32 to vector<50x16xf32>
    %9 = arith.maximumf %7, %8 : vector<50x16xf32>
    %10 = arith.addf %2, %9 : vector<50x16xf32>
    %c1 = arith.constant 1 : index
    %c0_8 = arith.constant 0 : index
    %c0_9 = arith.constant 0 : index
    %11 = vector.load %arg1[%c1, %c0_8, %c0_9] : memref<4x50x150xbf16, #tpu.memory_space<vmem>>, vector<1x50x150xbf16>
    %12 = vector.shape_cast %11 : vector<1x50x150xbf16> to vector<50x150xbf16>
    %cst_10 = arith.constant dense<0.000000e+00> : vector<50x16xf32>
    %13 = tpu.matmul %12, %0, %cst_10 {dimension_numbers = #tpu.dot_dimension_numbers<[1], [0], [0], [1], [0, 0, 1, 1], [], []>} : vector<50x150xbf16>, vector<150x16xbf16>, vector<50x16xf32> -> vector<50x16xf32>
    %14 = vector.broadcast %1 : vector<1x16xf32> to vector<50x16xf32>
    %15 = arith.addf %13, %14 : vector<50x16xf32>
    %cst_11 = arith.constant 0.000000e+00 : f32
    %16 = vector.broadcast %cst_11 : f32 to vector<50x16xf32>
    %17 = arith.maximumf %15, %16 : vector<50x16xf32>
    %18 = arith.addf %10, %17 : vector<50x16xf32>
    %c2 = arith.constant 2 : index
    %c0_12 = arith.constant 0 : index
    %c0_13 = arith.constant 0 : index
    %19 = vector.load %arg1[%c2, %c0_12, %c0_13] : memref<4x50x150xbf16, #tpu.memory_space<vmem>>, vector<1x50x150xbf16>
    %20 = vector.shape_cast %19 : vector<1x50x150xbf16> to vector<50x150xbf16>
    %cst_14 = arith.constant dense<0.000000e+00> : vector<50x16xf32>
    %21 = tpu.matmul %20, %0, %cst_14 {dimension_numbers = #tpu.dot_dimension_numbers<[1], [0], [0], [1], [0, 0, 1, 1], [], []>} : vector<50x150xbf16>, vector<150x16xbf16>, vector<50x16xf32> -> vector<50x16xf32>
    %22 = vector.broadcast %1 : vector<1x16xf32> to vector<50x16xf32>
    %23 = arith.addf %21, %22 : vector<50x16xf32>
    %cst_15 = arith.constant 0.000000e+00 : f32
    %24 = vector.broadcast %cst_15 : f32 to vector<50x16xf32>
    %25 = arith.maximumf %23, %24 : vector<50x16xf32>
    %26 = arith.addf %18, %25 : vector<50x16xf32>
    %c3 = arith.constant 3 : index
    %c0_16 = arith.constant 0 : index
    %c0_17 = arith.constant 0 : index
    %27 = vector.load %arg1[%c3, %c0_16, %c0_17] : memref<4x50x150xbf16, #tpu.memory_space<vmem>>, vector<1x50x150xbf16>
    %28 = vector.shape_cast %27 : vector<1x50x150xbf16> to vector<50x150xbf16>
    %cst_18 = arith.constant dense<0.000000e+00> : vector<50x16xf32>
    %29 = tpu.matmul %28, %0, %cst_18 {dimension_numbers = #tpu.dot_dimension_numbers<[1], [0], [0], [1], [0, 0, 1, 1], [], []>} : vector<50x150xbf16>, vector<150x16xbf16>, vector<50x16xf32> -> vector<50x16xf32>
    %30 = vector.broadcast %1 : vector<1x16xf32> to vector<50x16xf32>
    %31 = arith.addf %29, %30 : vector<50x16xf32>
    %cst_19 = arith.constant 0.000000e+00 : f32
    %32 = vector.broadcast %cst_19 : f32 to vector<50x16xf32>
    %33 = arith.maximumf %31, %32 : vector<50x16xf32>
    %34 = arith.addf %26, %33 : vector<50x16xf32>
    %35 = arith.truncf %34 : vector<50x16xf32> to vector<50x16xbf16>
    %c0_20 = arith.constant 0 : index
    %c0_21 = arith.constant 0 : index
    %36 = vector.load %arg4[%c0_20, %c0_21] : memref<50x16xbf16, #tpu.memory_space<vmem>>, vector<50x16xbf16>
    tpu.vector_store %arg4[%c0_20, %c0_21], %35 {strides = array<i32>} : memref<50x16xbf16, #tpu.memory_space<vmem>>, vector<50x16xbf16>,
    return
  }
  func.func @transform_0(%arg0: i32) -> (i32, i32, i32) {
    %c0_i32 = arith.constant 0 : i32
    %c0_i32_0 = arith.constant 0 : i32
    %c0_i32_1 = arith.constant 0 : i32
    return %c0_i32, %arg0, %c0_i32_0 : i32, i32, i32
  }
  func.func @transform_1(%arg0: i32) -> (i32, i32) {
    %c0_i32 = arith.constant 0 : i32
    %c0_i32_0 = arith.constant 0 : i32
    %c0_i32_1 = arith.constant 0 : i32
    return %c0_i32, %c0_i32_0 : i32, i32
  }
  func.func @transform_2(%arg0: i32) -> (i32, i32) {
    %c0_i32 = arith.constant 0 : i32
    %c0_i32_0 = arith.constant 0 : i32
    %c0_i32_1 = arith.constant 0 : i32
    return %c0_i32, %c0_i32_0 : i32, i32
  }
  func.func @transform_3(%arg0: i32) -> (i32, i32) {
    %c0_i32 = arith.constant 0 : i32
    %c0_i32_0 = arith.constant 0 : i32
    return %arg0, %c0_i32 : i32, i32
  }
}

module attributes {stable_mosaic.version = 11 : i64} {
  func.func @_fc_chain_kernel(%arg0: i32, %arg1: memref<2x400xbf16, #tpu.memory_space<vmem>>, %arg2: memref<400x120xbf16, #tpu.memory_space<vmem>>, %arg3: memref<1x120xf32, #tpu.memory_space<vmem>>, %arg4: memref<120x84xbf16, #tpu.memory_space<vmem>>, %arg5: memref<1x84xf32, #tpu.memory_space<vmem>>, %arg6: memref<84x10xbf16, #tpu.memory_space<vmem>>, %arg7: memref<1x10xf32, #tpu.memory_space<vmem>>, %arg8: memref<2x10xf32, #tpu.memory_space<vmem>>) attributes {dimension_semantics = [#tpu.dimension_semantics<parallel>], iteration_bounds = array<i64: 1>, scalar_prefetch = 0 : i64, scratch_operands = 0 : i64, tpu.core_type = #tpu.core_type<tc>, window_params = [{transform_indices = @transform_0, window_bounds = array<i64: 2, 400>}, {pipeline_mode = #tpu.pipeline_mode<synchronous>, transform_indices = @transform_1, window_bounds = array<i64: 400, 120>}, {pipeline_mode = #tpu.pipeline_mode<synchronous>, transform_indices = @transform_2, window_bounds = array<i64: 1, 120>}, {pipeline_mode = #tpu.pipeline_mode<synchronous>, transform_indices = @transform_3, window_bounds = array<i64: 120, 84>}, {pipeline_mode = #tpu.pipeline_mode<synchronous>, transform_indices = @transform_4, window_bounds = array<i64: 1, 84>}, {pipeline_mode = #tpu.pipeline_mode<synchronous>, transform_indices = @transform_5, window_bounds = array<i64: 84, 10>}, {pipeline_mode = #tpu.pipeline_mode<synchronous>, transform_indices = @transform_6, window_bounds = array<i64: 1, 10>}, {transform_indices = @transform_7, window_bounds = array<i64: 2, 10>}]} {
    %c0 = arith.constant 0 : index
    %c0_0 = arith.constant 0 : index
    %0 = vector.load %arg1[%c0, %c0_0] : memref<2x400xbf16, #tpu.memory_space<vmem>>, vector<2x400xbf16>
    %c0_1 = arith.constant 0 : index
    %c0_2 = arith.constant 0 : index
    %1 = vector.load %arg2[%c0_1, %c0_2] : memref<400x120xbf16, #tpu.memory_space<vmem>>, vector<400x120xbf16>
    %cst = arith.constant dense<0.000000e+00> : vector<2x120xf32>
    %2 = tpu.matmul %0, %1, %cst {dimension_numbers = #tpu.dot_dimension_numbers<[1], [0], [0], [1], [0, 0, 1, 1], [], []>} : vector<2x400xbf16>, vector<400x120xbf16>, vector<2x120xf32> -> vector<2x120xf32>
    %c0_3 = arith.constant 0 : index
    %c0_4 = arith.constant 0 : index
    %3 = vector.load %arg3[%c0_3, %c0_4] : memref<1x120xf32, #tpu.memory_space<vmem>>, vector<1x120xf32>
    %4 = vector.broadcast %3 : vector<1x120xf32> to vector<2x120xf32>
    %5 = arith.addf %2, %4 : vector<2x120xf32>
    %cst_5 = arith.constant 0.000000e+00 : f32
    %6 = vector.broadcast %cst_5 : f32 to vector<2x120xf32>
    %7 = arith.maximumf %5, %6 : vector<2x120xf32>
    %8 = arith.truncf %7 : vector<2x120xf32> to vector<2x120xbf16>
    %c0_6 = arith.constant 0 : index
    %c0_7 = arith.constant 0 : index
    %9 = vector.load %arg4[%c0_6, %c0_7] : memref<120x84xbf16, #tpu.memory_space<vmem>>, vector<120x84xbf16>
    %cst_8 = arith.constant dense<0.000000e+00> : vector<2x84xf32>
    %10 = tpu.matmul %8, %9, %cst_8 {dimension_numbers = #tpu.dot_dimension_numbers<[1], [0], [0], [1], [0, 0, 1, 1], [], []>} : vector<2x120xbf16>, vector<120x84xbf16>, vector<2x84xf32> -> vector<2x84xf32>
    %c0_9 = arith.constant 0 : index
    %c0_10 = arith.constant 0 : index
    %11 = vector.load %arg5[%c0_9, %c0_10] : memref<1x84xf32, #tpu.memory_space<vmem>>, vector<1x84xf32>
    %12 = vector.broadcast %11 : vector<1x84xf32> to vector<2x84xf32>
    %13 = arith.addf %10, %12 : vector<2x84xf32>
    %cst_11 = arith.constant 0.000000e+00 : f32
    %14 = vector.broadcast %cst_11 : f32 to vector<2x84xf32>
    %15 = arith.maximumf %13, %14 : vector<2x84xf32>
    %16 = arith.truncf %15 : vector<2x84xf32> to vector<2x84xbf16>
    %c0_12 = arith.constant 0 : index
    %c0_13 = arith.constant 0 : index
    %17 = vector.load %arg6[%c0_12, %c0_13] : memref<84x10xbf16, #tpu.memory_space<vmem>>, vector<84x10xbf16>
    %cst_14 = arith.constant dense<0.000000e+00> : vector<2x10xf32>
    %18 = tpu.matmul %16, %17, %cst_14 {dimension_numbers = #tpu.dot_dimension_numbers<[1], [0], [0], [1], [0, 0, 1, 1], [], []>} : vector<2x84xbf16>, vector<84x10xbf16>, vector<2x10xf32> -> vector<2x10xf32>
    %c0_15 = arith.constant 0 : index
    %c0_16 = arith.constant 0 : index
    %19 = vector.load %arg7[%c0_15, %c0_16] : memref<1x10xf32, #tpu.memory_space<vmem>>, vector<1x10xf32>
    %20 = vector.broadcast %19 : vector<1x10xf32> to vector<2x10xf32>
    %21 = arith.addf %18, %20 : vector<2x10xf32>
    %c0_17 = arith.constant 0 : index
    %c0_18 = arith.constant 0 : index
    %22 = vector.load %arg8[%c0_17, %c0_18] : memref<2x10xf32, #tpu.memory_space<vmem>>, vector<2x10xf32>
    tpu.vector_store %arg8[%c0_17, %c0_18], %21 {strides = array<i32>} : memref<2x10xf32, #tpu.memory_space<vmem>>, vector<2x10xf32>,
    return
  }
  func.func @transform_0(%arg0: i32) -> (i32, i32) {
    %c0_i32 = arith.constant 0 : i32
    %c0_i32_0 = arith.constant 0 : i32
    return %arg0, %c0_i32 : i32, i32
  }
  func.func @transform_1(%arg0: i32) -> (i32, i32) {
    %c0_i32 = arith.constant 0 : i32
    %c0_i32_0 = arith.constant 0 : i32
    %c0_i32_1 = arith.constant 0 : i32
    return %c0_i32, %c0_i32_0 : i32, i32
  }
  func.func @transform_2(%arg0: i32) -> (i32, i32) {
    %c0_i32 = arith.constant 0 : i32
    %c0_i32_0 = arith.constant 0 : i32
    %c0_i32_1 = arith.constant 0 : i32
    return %c0_i32, %c0_i32_0 : i32, i32
  }
  func.func @transform_3(%arg0: i32) -> (i32, i32) {
    %c0_i32 = arith.constant 0 : i32
    %c0_i32_0 = arith.constant 0 : i32
    %c0_i32_1 = arith.constant 0 : i32
    return %c0_i32, %c0_i32_0 : i32, i32
  }
  func.func @transform_4(%arg0: i32) -> (i32, i32) {
    %c0_i32 = arith.constant 0 : i32
    %c0_i32_0 = arith.constant 0 : i32
    %c0_i32_1 = arith.constant 0 : i32
    return %c0_i32, %c0_i32_0 : i32, i32
  }
  func.func @transform_5(%arg0: i32) -> (i32, i32) {
    %c0_i32 = arith.constant 0 : i32
    %c0_i32_0 = arith.constant 0 : i32
    %c0_i32_1 = arith.constant 0 : i32
    return %c0_i32, %c0_i32_0 : i32, i32
  }
  func.func @transform_6(%arg0: i32) -> (i32, i32) {
    %c0_i32 = arith.constant 0 : i32
    %c0_i32_0 = arith.constant 0 : i32
    %c0_i32_1 = arith.constant 0 : i32
    return %c0_i32, %c0_i32_0 : i32, i32
  }
  func.func @transform_7(%arg0: i32) -> (i32, i32) {
    %c0_i32 = arith.constant 0 : i32
    %c0_i32_0 = arith.constant 0 : i32
    return %arg0, %c0_i32 : i32, i32
  }
}

</mosaic_0001>

<llo_original>
// kernel: lenet_forward.3
$region0: #{lenet_forward.3}
  #allocation0 [shape = 'u32[]', space=smem, size = 0x4, offset = 0x4, fixed_abs, tag = 'smem constant byte address 0x4 - core index']
  #allocation1 [shape = 'u32[144,128]{1,0:T(1,128)}', space=vmem, size = 0x12000, scoped, tag = 'internal scratch']
  %s0 = inlined_call_operand.vmem [shape: bf16[4,392,25], index: 0, kind: input, shape index: {}]
  %s1 = inlined_call_operand.vmem [shape: bf16[25,6], index: 1, kind: input, shape index: {}]
  %s2 = inlined_call_operand.vmem [shape: f32[1,6], index: 2, kind: input, shape index: {}]
  %s3 = inlined_call_operand.vmem [shape: bf16[392,6], index: 3, kind: output, shape index: {}]
  %s4 = sld [smem:[#allocation0]]
  $region22: #{lenet_forward.3} parent=0
    _
  %s6 = ssub.s32 1, %s4
  %s7 = scalar_select 0, %s6, %s4
  // Predicated region
  $region2: #{lenet_forward.3} parent=0 // pred_check
    _
  $region3: #{lenet_forward.3} parent=0 // pred_check_branch
    %9 = sbr.rel (0) target = $region5
  $region4: #{lenet_forward.3} parent=0 // pred_region
    _
  $region5: #{lenet_forward.3} parent=0 // pred_fallthru
    _
  // Predicated region
  $region6: #{lenet_forward.3} parent=0 // pred_check
    _
  $region7: #{lenet_forward.3} parent=0 // pred_check_branch
    %11 = sbr.rel (0) target = $region9
  $region8: #{lenet_forward.3} parent=0 // pred_region
    _
  $region9: #{lenet_forward.3} parent=0 // pred_fallthru
    _
  // Predicated region
  $region10: #{lenet_forward.3} parent=0 // pred_check
    _
  $region11: #{lenet_forward.3} parent=0 // pred_check_branch
    %13 = sbr.rel (0) target = $region13
  $region12: #{lenet_forward.3} parent=0 // pred_region
    _
  $region13: #{lenet_forward.3} parent=0 // pred_fallthru
    _
  %v15 = vld [vmem:[%s1] sm:$0xf]
  %v16 = vld [vmem:[%s1 + $0x4] sm:$0xf]
  %v17 = vld [vmem:[%s1 + $0x8] sm:$0xf]
  %v18 = vld [vmem:[%s1 + $0xc] sm:$0x1]
  %v19 = vld [vmem:[%s2] sm:$0x1]
  %v20 = vld [vmem:[%s0] sm:$0xf]
  %v21 = vld [vmem:[%s0 + $0x4] sm:$0xf]
  %v22 = vld [vmem:[%s0 + $0x8] sm:$0xf]
  %v23 = vld [vmem:[%s0 + $0xc] sm:$0xf]
  %v24 = vld [vmem:[%s0 + $0x10] sm:$0xf]
  %v25 = vld [vmem:[%s0 + $0x14] sm:$0xf]
  %v26 = vld [vmem:[%s0 + $0x18] sm:$0xf]
  %v27 = vld [vmem:[%s0 + $0x1c] sm:$0xf]
  %v28 = vld [vmem:[%s0 + $0x20] sm:$0xf]
  %v29 = vld [vmem:[%s0 + $0x24] sm:$0xf]
  %v30 = vld [vmem:[%s0 + $0x28] sm:$0xf]
  %v31 = vld [vmem:[%s0 + $0x2c] sm:$0xf]
  %v32 = vld [vmem:[%s0 + $0x30] sm:$0xf]
  %v33 = vld [vmem:[%s0 + $0x34] sm:$0xf]
  %v34 = vld [vmem:[%s0 + $0x38] sm:$0xf]
  %v35 = vld [vmem:[%s0 + $0x3c] sm:$0xf]
  %v36 = vld [vmem:[%s0 + $0x40] sm:$0xf]
  %v37 = vld [vmem:[%s0 + $0x44] sm:$0xf]
  %v38 = vld [vmem:[%s0 + $0x48] sm:$0xf]
  %v39 = vld [vmem:[%s0 + $0x4c] sm:$0xf]
  %v40 = vld [vmem:[%s0 + $0x50] sm:$0xf]
  %v41 = vld [vmem:[%s0 + $0x54] sm:$0xf]
  %v42 = vld [vmem:[%s0 + $0x58] sm:$0xf]
  %v43 = vld [vmem:[%s0 + $0x5c] sm:$0xf]
  %v44 = vld [vmem:[%s0 + $0x60] sm:$0xf]
  %v45 = vld [vmem:[%s0 + $0x64] sm:$0xf]
  %v46 = vld [vmem:[%s0 + $0x68] sm:$0xf]
  %v47 = vld [vmem:[%s0 + $0x6c] sm:$0xf]
  %v48 = vld [vmem:[%s0 + $0x70] sm:$0xf]
  %v49 = vld [vmem:[%s0 + $0x74] sm:$0xf]
  %v50 = vld [vmem:[%s0 + $0x78] sm:$0xf]
  %v51 = vld [vmem:[%s0 + $0x7c] sm:$0xf]
  %v52 = vld [vmem:[%s0 + $0x80] sm:$0xf]
  %v53 = vld [vmem:[%s0 + $0x84] sm:$0xf]
  %v54 = vld [vmem:[%s0 + $0x88] sm:$0xf]
  %v55 = vld [vmem:[%s0 + $0x8c] sm:$0xf]
  %v56 = vld [vmem:[%s0 + $0x90] sm:$0xf]
  %v57 = vld [vmem:[%s0 + $0x94] sm:$0xf]
  %v58 = vld [vmem:[%s0 + $0x98] sm:$0xf]
  %v59 = vld [vmem:[%s0 + $0x9c] sm:$0xf]
  %v60 = vld [vmem:[%s0 + $0xa0] sm:$0xf]
  %v61 = vld [vmem:[%s0 + $0xa4] sm:$0xf]
  %v62 = vld [vmem:[%s0 + $0xa8] sm:$0xf]
  %v63 = vld [vmem:[%s0 + $0xac] sm:$0xf]
  %v64 = vld [vmem:[%s0 + $0xb0] sm:$0xf]
  %v65 = vld [vmem:[%s0 + $0xb4] sm:$0xf]
  %v66 = vld [vmem:[%s0 + $0xb8] sm:$0xf]
  %v67 = vld [vmem:[%s0 + $0xbc] sm:$0xf]
  %v68 = vld [vmem:[%s0 + $0xc0] sm:$0xf]
  %v70 = vlaneseq
  %v71 = vshrl.u32 %v70, 7
  %v72 = vsub.s32 0, %v71
  %v73 = vrot.slane %v19, %v72
  %v124 = vunpack.c.l.b16 %v20
  %v125 = vunpack.c.l.b16 %v21
  %v126 = vunpack.c.l.b16 %v22
  %v127 = vunpack.c.l.b16 %v23
  %v128 = vunpack.c.l.b16 %v24
  %v129 = vunpack.c.l.b16 %v25
  %v130 = vunpack.c.l.b16 %v26
  %v131 = vunpack.c.l.b16 %v27
  %v132 = vunpack.c.l.b16 %v28
  %v133 = vunpack.c.l.b16 %v29
  %v134 = vunpack.c.l.b16 %v30
  %v135 = vunpack.c.l.b16 %v31
  %v136 = vunpack.c.l.b16 %v32
  %v137 = vunpack.c.l.b16 %v33
  %v138 = vunpack.c.l.b16 %v34
  %v139 = vunpack.c.l.b16 %v35
  %v140 = vunpack.c.l.b16 %v36
  %v141 = vunpack.c.l.b16 %v37
  %v142 = vunpack.c.l.b16 %v38
  %v143 = vunpack.c.l.b16 %v39
  %v144 = vunpack.c.l.b16 %v40
  %v145 = vunpack.c.l.b16 %v41
  %v146 = vunpack.c.l.b16 %v42
  %v147 = vunpack.c.l.b16 %v43
  %v148 = vunpack.c.l.b16 %v44
  %v149 = vunpack.c.l.b16 %v45
  %v150 = vunpack.c.l.b16 %v46
  %v151 = vunpack.c.l.b16 %v47
  %v152 = vunpack.c.l.b16 %v48
  %v153 = vunpack.c.l.b16 %v49
  %v154 = vunpack.c.l.b16 %v50
  %v155 = vunpack.c.l.b16 %v51
  %v156 = vunpack.c.l.b16 %v52
  %v157 = vunpack.c.l.b16 %v53
  %v158 = vunpack.c.l.b16 %v54
  %v159 = vunpack.c.l.b16 %v55
  %v160 = vunpack.c.l.b16 %v56
  %v161 = vunpack.c.l.b16 %v57
  %v162 = vunpack.c.l.b16 %v58
  %v163 = vunpack.c.l.b16 %v59
  %v164 = vunpack.c.l.b16 %v60
  %v165 = vunpack.c.l.b16 %v61
  %v166 = vunpack.c.l.b16 %v62
  %v167 = vunpack.c.l.b16 %v63
  %v168 = vunpack.c.l.b16 %v64
  %v169 = vunpack.c.l.b16 %v65
  %v170 = vunpack.c.l.b16 %v66
  %v171 = vunpack.c.l.b16 %v67
  %v172 = vunpack.c.l.b16 %v68
  %v173 = vpack.c.b16 %v125, %v124
  %v174 = vpack.c.b16 %v127, %v126
  %v175 = vpack.c.b16 %v129, %v128
  %v176 = vpack.c.b16 %v131, %v130
  %v177 = vpack.c.b16 %v133, %v132
  %v178 = vpack.c.b16 %v135, %v134
  %v179 = vpack.c.b16 %v137, %v136
  %v180 = vpack.c.b16 %v139, %v138
  %v181 = vpack.c.b16 %v141, %v140
  %v182 = vpack.c.b16 %v143, %v142
  %v183 = vpack.c.b16 %v145, %v144
  %v184 = vpack.c.b16 %v147, %v146
  %v185 = vpack.c.b16 %v149, %v148
  %v186 = vpack.c.b16 %v151, %v150
  %v187 = vpack.c.b16 %v153, %v152
  %v188 = vpack.c.b16 %v155, %v154
  %v189 = vpack.c.b16 %v157, %v156
  %v190 = vpack.c.b16 %v159, %v158
  %v191 = vpack.c.b16 %v161, %v160
  %v192 = vpack.c.b16 %v163, %v162
  %v193 = vpack.c.b16 %v165, %v164
  %v194 = vpack.c.b16 %v167, %v166
  %v195 = vpack.c.b16 %v169, %v168
  %v196 = vpack.c.b16 %v171, %v170
  %v197 = vpack.c.b16 %v172, %v172
  %v202 = vunpack.c.l.b16 %v15
  %v203 = vunpack.c.l.b16 %v16
  %v204 = vunpack.c.l.b16 %v17
  %v205 = vunpack.c.l.b16 %v18
  %v206 = vpack.c.b16 %v203, %v202
  %v207 = vpack.c.b16 %v205, %v204
  %vm209 = vcmask 203776
  %v211 = vsel %vm209, %v173, 0
  %v214 = vsel %vm209, %v174, 0
  %v217 = vsel %vm209, %v175, 0
  %v220 = vsel %vm209, %v176, 0
  %v223 = vsel %vm209, %v177, 0
  %v226 = vsel %vm209, %v178, 0
  %v229 = vsel %vm209, %v179, 0
  %v232 = vsel %vm209, %v180, 0
  %v235 = vsel %vm209, %v181, 0
  %v238 = vsel %vm209, %v182, 0
  %v241 = vsel %vm209, %v183, 0
  %v244 = vsel %vm209, %v184, 0
  %v247 = vsel %vm209, %v185, 0
  %v250 = vsel %vm209, %v186, 0
  %v253 = vsel %vm209, %v187, 0
  %v256 = vsel %vm209, %v188, 0
  %v259 = vsel %vm209, %v189, 0
  %v262 = vsel %vm209, %v190, 0
  %v265 = vsel %vm209, %v191, 0
  %v268 = vsel %vm209, %v192, 0
  %v271 = vsel %vm209, %v193, 0
  %v274 = vsel %vm209, %v194, 0
  %v277 = vsel %vm209, %v195, 0
  %v280 = vsel %vm209, %v196, 0
  %v283 = vsel %vm209, %v197, 0
  %vm285 = vcmask 1043456
  %vm286 = vcmask 1044480
  %v287 = vsel %vm285, 4294967295, 65535
  %v288 = vsel %vm286, %v287, 0
  %v290 = vand.u32 %v207, %v288
  %292 = vmatprep.subr.bf16.mxu0 0
  %293 = vmatpush1.bf16.msra.mxu0 %v206
  %294 = vmatprep.subr.bf16.mxu0 0
  %295 = vmatpush1.bf16.msra.mxu0 %v290
  %296 = vmatprep.subr.bf16.mxu0 0
  %297 = vmatpush1.bf16.msra.mxu0 0
  %298 = vmatprep.subr.bf16.mxu0 0
  %299 = vmatpush1.bf16.msra.mxu0 0
  %300 = vmatprep.subr.bf16.mxu0 0
  %301 = vmatpush1.bf16.msra.mxu0 0
  %302 = vmatprep.subr.bf16.mxu0 0
  %303 = vmatpush1.bf16.msra.mxu0 0
  %304 = vmatprep.subr.bf16.mxu0 0
  %305 = vmatpush1.bf16.msra.mxu0 0
  %306 = vmatprep.subr.bf16.mxu0 0
  %307 = vmatpush1.bf16.msra.mxu0 0
  %308 = vmatprep.subr.bf16.mxu0 0
  %309 = vmatpush1.bf16.msra.mxu0 0
  %310 = vmatprep.subr.bf16.mxu0 0
  %311 = vmatpush1.bf16.msra.mxu0 0
  %312 = vmatprep.subr.bf16.mxu0 0
  %313 = vmatpush1.bf16.msra.mxu0 0
  %314 = vmatprep.subr.bf16.mxu0 0
  %315 = vmatpush1.bf16.msra.mxu0 0
  %316 = vmatprep.subr.bf16.mxu0 0
  %317 = vmatpush1.bf16.msra.mxu0 0
  %318 = vmatprep.subr.bf16.mxu0 0
  %319 = vmatpush1.bf16.msra.mxu0 0
  %320 = vmatprep.subr.bf16.mxu0 0
  %321 = vmatpush1.bf16.msra.mxu0 0
  %322 = vmatprep.subr.bf16.mxu0 0
  %323 = vmatpush1.bf16.msra.mxu0 0
  %324 = vmatprep.mubr.bf16.mxu0 0
  %325 = vmatmul.mubr.bf16.gmra.mrb[0].mxu0 %v211
  %v326 = vpop.f32.mrb[0].mxu0
  %v327 = vadd.f32 %v73, %v326
  %v328 = vpop.f32.mrb[0].mxu0
  %v329 = vpop.f32.mrb[0].mxu0
  %v330 = vadd.f32 %v73, %v329
  %v331 = vpop.f32.mrb[0].mxu0
  %332 = vmatprep.mubr.bf16.mxu0 0
  %333 = vmatmul.mubr.bf16.gmra.mrb[0].mxu0 %v214
  %v334 = vpop.f32.mrb[0].mxu0
  %v335 = vadd.f32 %v73, %v334
  %v336 = vpop.f32.mrb[0].mxu0
  %v337 = vpop.f32.mrb[0].mxu0
  %v338 = vadd.f32 %v73, %v337
  %v339 = vpop.f32.mrb[0].mxu0
  %340 = vmatprep.mubr.bf16.mxu0 0
  %341 = vmatmul.mubr.bf16.gmra.mrb[0].mxu0 %v217
  %v342 = vpop.f32.mrb[0].mxu0
  %v343 = vadd.f32 %v73, %v342
  %v344 = vpop.f32.mrb[0].mxu0
  %v345 = vpop.f32.mrb[0].mxu0
  %v346 = vadd.f32 %v73, %v345
  %v347 = vpop.f32.mrb[0].mxu0
  %348 = vmatprep.mubr.bf16.mxu0 0
  %349 = vmatmul.mubr.bf16.gmra.mrb[0].mxu0 %v220
  %v350 = vpop.f32.mrb[0].mxu0
  %v351 = vadd.f32 %v73, %v350
  %v352 = vpop.f32.mrb[0].mxu0
  %v353 = vpop.f32.mrb[0].mxu0
  %v354 = vadd.f32 %v73, %v353
  %v355 = vpop.f32.mrb[0].mxu0
  %356 = vmatprep.mubr.bf16.mxu0 0
  %357 = vmatmul.mubr.bf16.gmra.mrb[0].mxu0 %v223
  %v358 = vpop.f32.mrb[0].mxu0
  %v359 = vadd.f32 %v73, %v358
  %v360 = vpop.f32.mrb[0].mxu0
  %v361 = vpop.f32.mrb[0].mxu0
  %v362 = vadd.f32 %v73, %v361
  %v363 = vpop.f32.mrb[0].mxu0
  %364 = vmatprep.mubr.bf16.mxu0 0
  %365 = vmatmul.mubr.bf16.gmra.mrb[0].mxu0 %v226
  %v366 = vpop.f32.mrb[0].mxu0
  %v367 = vadd.f32 %v73, %v366
  %v368 = vpop.f32.mrb[0].mxu0
  %v369 = vpop.f32.mrb[0].mxu0
  %v370 = vadd.f32 %v73, %v369
  %v371 = vpop.f32.mrb[0].mxu0
  %372 = vmatprep.mubr.bf16.mxu0 0
  %373 = vmatmul.mubr.bf16.gmra.mrb[0].mxu0 %v229
  %v374 = vpop.f32.mrb[0].mxu0
  %v375 = vadd.f32 %v73, %v374
  %v376 = vpop.f32.mrb[0].mxu0
  %v377 = vpop.f32.mrb[0].mxu0
  %v378 = vadd.f32 %v73, %v377
  %v379 = vpop.f32.mrb[0].mxu0
  %380 = vmatprep.mubr.bf16.mxu0 0
  %381 = vmatmul.mubr.bf16.gmra.mrb[0].mxu0 %v232
  %v382 = vpop.f32.mrb[0].mxu0
  %v383 = vadd.f32 %v73, %v382
  %v384 = vpop.f32.mrb[0].mxu0
  %v385 = vpop.f32.mrb[0].mxu0
  %v386 = vadd.f32 %v73, %v385
  %v387 = vpop.f32.mrb[0].mxu0
  %388 = vmatprep.mubr.bf16.mxu0 0
  %389 = vmatmul.mubr.bf16.gmra.mrb[0].mxu0 %v235
  %v390 = vpop.f32.mrb[0].mxu0
  %v391 = vadd.f32 %v73, %v390
  %v392 = vpop.f32.mrb[0].mxu0
  %v393 = vpop.f32.mrb[0].mxu0
  %v394 = vadd.f32 %v73, %v393
  %v395 = vpop.f32.mrb[0].mxu0
  %396 = vmatprep.mubr.bf16.mxu0 0
  %397 = vmatmul.mubr.bf16.gmra.mrb[0].mxu0 %v238
  %v398 = vpop.f32.mrb[0].mxu0
  %v399 = vadd.f32 %v73, %v398
  %v400 = vpop.f32.mrb[0].mxu0
  %v401 = vpop.f32.mrb[0].mxu0
  %v402 = vadd.f32 %v73, %v401
  %v403 = vpop.f32.mrb[0].mxu0
  %404 = vmatprep.mubr.bf16.mxu0 0
  %405 = vmatmul.mubr.bf16.gmra.mrb[0].mxu0 %v241
  %v406 = vpop.f32.mrb[0].mxu0
  %v407 = vadd.f32 %v73, %v406
  %v408 = vpop.f32.mrb[0].mxu0
  %v409 = vpop.f32.mrb[0].mxu0
  %v410 = vadd.f32 %v73, %v409
  %v411 = vpop.f32.mrb[0].mxu0
  %412 = vmatprep.mubr.bf16.mxu0 0
  %413 = vmatmul.mubr.bf16.gmra.mrb[0].mxu0 %v244
  %v414 = vpop.f32.mrb[0].mxu0
  %v415 = vadd.f32 %v73, %v414
  %v416 = vpop.f32.mrb[0].mxu0
  %v417 = vpop.f32.mrb[0].mxu0
  %v418 = vadd.f32 %v73, %v417
  %v419 = vpop.f32.mrb[0].mxu0
  %420 = vmatprep.mubr.bf16.mxu0 0
  %421 = vmatmul.mubr.bf16.gmra.mrb[0].mxu0 %v247
  %v422 = vpop.f32.mrb[0].mxu0
  %v423 = vadd.f32 %v73, %v422
  %v424 = vpop.f32.mrb[0].mxu0
  %v425 = vpop.f32.mrb[0].mxu0
  %v426 = vadd.f32 %v73, %v425
  %v427 = vpop.f32.mrb[0].mxu0
  %428 = vmatprep.mubr.bf16.mxu0 0
  %429 = vmatmul.mubr.bf16.gmra.mrb[0].mxu0 %v250
  %v430 = vpop.f32.mrb[0].mxu0
  %v431 = vadd.f32 %v73, %v430
  %v432 = vpop.f32.mrb[0].mxu0
  %v433 = vpop.f32.mrb[0].mxu0
  %v434 = vadd.f32 %v73, %v433
  %v435 = vpop.f32.mrb[0].mxu0
  %436 = vmatprep.mubr.bf16.mxu0 0
  %437 = vmatmul.mubr.bf16.gmra.mrb[0].mxu0 %v253
  %v438 = vpop.f32.mrb[0].mxu0
  %v439 = vadd.f32 %v73, %v438
  %v440 = vpop.f32.mrb[0].mxu0
  %v441 = vpop.f32.mrb[0].mxu0
  %v442 = vadd.f32 %v73, %v441
  %v443 = vpop.f32.mrb[0].mxu0
  %444 = vmatprep.mubr.bf16.mxu0 0
  %445 = vmatmul.mubr.bf16.gmra.mrb[0].mxu0 %v256
  %v446 = vpop.f32.mrb[0].mxu0
  %v447 = vadd.f32 %v73, %v446
  %v448 = vpop.f32.mrb[0].mxu0
  %v449 = vpop.f32.mrb[0].mxu0
  %v450 = vadd.f32 %v73, %v449
  %v451 = vpop.f32.mrb[0].mxu0
  %452 = vmatprep.mubr.bf16.mxu0 0
  %453 = vmatmul.mubr.bf16.gmra.mrb[0].mxu0 %v259
  %v454 = vpop.f32.mrb[0].mxu0
  %v455 = vadd.f32 %v73, %v454
  %v456 = vpop.f32.mrb[0].mxu0
  %v457 = vpop.f32.mrb[0].mxu0
  %v458 = vadd.f32 %v73, %v457
  %v459 = vpop.f32.mrb[0].mxu0
  %460 = vmatprep.mubr.bf16.mxu0 0
  %461 = vmatmul.mubr.bf16.gmra.mrb[0].mxu0 %v262
  %v462 = vpop.f32.mrb[0].mxu0
  %v463 = vadd.f32 %v73, %v462
  %v464 = vpop.f32.mrb[0].mxu0
  %v465 = vpop.f32.mrb[0].mxu0
  %v466 = vadd.f32 %v73, %v465
  %v467 = vpop.f32.mrb[0].mxu0
  %468 = vmatprep.mubr.bf16.mxu0 0
  %469 = vmatmul.mubr.bf16.gmra.mrb[0].mxu0 %v265
  %v470 = vpop.f32.mrb[0].mxu0
  %v471 = vadd.f32 %v73, %v470
  %v472 = vpop.f32.mrb[0].mxu0
  %v473 = vpop.f32.mrb[0].mxu0
  %v474 = vadd.f32 %v73, %v473
  %v475 = vpop.f32.mrb[0].mxu0
  %476 = vmatprep.mubr.bf16.mxu0 0
  %477 = vmatmul.mubr.bf16.gmra.mrb[0].mxu0 %v268
  %v478 = vpop.f32.mrb[0].mxu0
  %v479 = vadd.f32 %v73, %v478
  %v480 = vpop.f32.mrb[0].mxu0
  %v481 = vpop.f32.mrb[0].mxu0
  %v482 = vadd.f32 %v73, %v481
  %v483 = vpop.f32.mrb[0].mxu0
  %484 = vmatprep.mubr.bf16.mxu0 0
  %485 = vmatmul.mubr.bf16.gmra.mrb[0].mxu0 %v271
  %v486 = vpop.f32.mrb[0].mxu0
  %v487 = vadd.f32 %v73, %v486
  %v488 = vpop.f32.mrb[0].mxu0
  %v489 = vpop.f32.mrb[0].mxu0
  %v490 = vadd.f32 %v73, %v489
  %v491 = vpop.f32.mrb[0].mxu0
  %492 = vmatprep.mubr.bf16.mxu0 0
  %493 = vmatmul.mubr.bf16.gmra.mrb[0].mxu0 %v274
  %v494 = vpop.f32.mrb[0].mxu0
  %v495 = vadd.f32 %v73, %v494
  %v496 = vpop.f32.mrb[0].mxu0
  %v497 = vpop.f32.mrb[0].mxu0
  %v498 = vadd.f32 %v73, %v497
  %v499 = vpop.f32.mrb[0].mxu0
  %500 = vmatprep.mubr.bf16.mxu0 0
  %501 = vmatmul.mubr.bf16.gmra.mrb[0].mxu0 %v277
  %v502 = vpop.f32.mrb[0].mxu0
  %v503 = vadd.f32 %v73, %v502
  %v504 = vpop.f32.mrb[0].mxu0
  %v505 = vpop.f32.mrb[0].mxu0
  %v506 = vadd.f32 %v73, %v505
  %v507 = vpop.f32.mrb[0].mxu0
  %508 = vmatprep.mubr.bf16.mxu0 0
  %509 = vmatmul.mubr.bf16.gmra.mrb[0].mxu0 %v280
  %v510 = vpop.f32.mrb[0].mxu0
  %v511 = vadd.f32 %v73, %v510
  %v512 = vpop.f32.mrb[0].mxu0
  %v513 = vpop.f32.mrb[0].mxu0
  %v514 = vadd.f32 %v73, %v513
  %v515 = vpop.f32.mrb[0].mxu0
  %516 = vmatprep.mubr.bf16.mxu0 0
  %517 = vmatmul.mubr.bf16.gmra.mrb[0].mxu0 %v283
  %v518 = vpop.f32.mrb[0].mxu0
  %v519 = vadd.f32 %v73, %v518
  %v520 = vpop.f32.mrb[0].mxu0
  %v521 = vpop.f32.mrb[0].mxu0
  %v522 = vpop.f32.mrb[0].mxu0
  %523 = vdwg.mxu0
  %v524 = vmax.f32 %v327, 0.0
  %v525 = vmax.f32 %v330, 0.0
  %v526 = vmax.f32 %v335, 0.0
  %v527 = vmax.f32 %v338, 0.0
  %v528 = vmax.f32 %v343, 0.0
  %v529 = vmax.f32 %v346, 0.0
  %v530 = vmax.f32 %v351, 0.0
  %v531 = vmax.f32 %v354, 0.0
  %v532 = vmax.f32 %v359, 0.0
  %v533 = vmax.f32 %v362, 0.0
  %v534 = vmax.f32 %v367, 0.0
  %v535 = vmax.f32 %v370, 0.0
  %v536 = vmax.f32 %v375, 0.0
  %v537 = vmax.f32 %v378, 0.0
  %v538 = vmax.f32 %v383, 0.0
  %v539 = vmax.f32 %v386, 0.0
  %v540 = vmax.f32 %v391, 0.0
  %v541 = vmax.f32 %v394, 0.0
  %v542 = vmax.f32 %v399, 0.0
  %v543 = vmax.f32 %v402, 0.0
  %v544 = vmax.f32 %v407, 0.0
  %v545 = vmax.f32 %v410, 0.0
  %v546 = vmax.f32 %v415, 0.0
  %v547 = vmax.f32 %v418, 0.0
  %v548 = vmax.f32 %v423, 0.0
  %v549 = vmax.f32 %v426, 0.0
  %v550 = vmax.f32 %v431, 0.0
  %v551 = vmax.f32 %v434, 0.0
  %v552 = vmax.f32 %v439, 0.0
  %v553 = vmax.f32 %v442, 0.0
  %v554 = vmax.f32 %v447, 0.0
  %v555 = vmax.f32 %v450, 0.0
  %v556 = vmax.f32 %v455, 0.0
  %v557 = vmax.f32 %v458, 0.0
  %v558 = vmax.f32 %v463, 0.0
  %v559 = vmax.f32 %v466, 0.0
  %v560 = vmax.f32 %v471, 0.0
  %v561 = vmax.f32 %v474, 0.0
  %v562 = vmax.f32 %v479, 0.0
  %v563 = vmax.f32 %v482, 0.0
  %v564 = vmax.f32 %v487, 0.0
  %v565 = vmax.f32 %v490, 0.0
  %v566 = vmax.f32 %v495, 0.0
  %v567 = vmax.f32 %v498, 0.0
  %v568 = vmax.f32 %v503, 0.0
  %v569 = vmax.f32 %v506, 0.0
  %v570 = vmax.f32 %v511, 0.0
  %v571 = vmax.f32 %v514, 0.0
  %v572 = vmax.f32 %v519, 0.0
  %v573 = vadd.f32 %v524, 0.0
  %v574 = vadd.f32 %v525, 0.0
  %v575 = vadd.f32 %v526, 0.0
  %v576 = vadd.f32 %v527, 0.0
  %v577 = vadd.f32 %v528, 0.0
  %v578 = vadd.f32 %v529, 0.0
  %v579 = vadd.f32 %v530, 0.0
  %v580 = vadd.f32 %v531, 0.0
  %v581 = vadd.f32 %v532, 0.0
  %v582 = vadd.f32 %v533, 0.0
  %v583 = vadd.f32 %v534, 0.0
  %v584 = vadd.f32 %v535, 0.0
  %v585 = vadd.f32 %v536, 0.0
  %v586 = vadd.f32 %v537, 0.0
  %v587 = vadd.f32 %v538, 0.0
  %v588 = vadd.f32 %v539, 0.0
  %v589 = vadd.f32 %v540, 0.0
  %v590 = vadd.f32 %v541, 0.0
  %v591 = vadd.f32 %v542, 0.0
  %v592 = vadd.f32 %v543, 0.0
  %v593 = vadd.f32 %v544, 0.0
  %v594 = vadd.f32 %v545, 0.0
  %v595 = vadd.f32 %v546, 0.0
  %v596 = vadd.f32 %v547, 0.0
  %v597 = vadd.f32 %v548, 0.0
  %v598 = vadd.f32 %v549, 0.0
  %v599 = vadd.f32 %v550, 0.0
  %v600 = vadd.f32 %v551, 0.0
  %v601 = vadd.f32 %v552, 0.0
  %v602 = vadd.f32 %v553, 0.0
  %v603 = vadd.f32 %v554, 0.0
  %v604 = vadd.f32 %v555, 0.0
  %v605 = vadd.f32 %v556, 0.0
  %v606 = vadd.f32 %v557, 0.0
  %v607 = vadd.f32 %v558, 0.0
  %v608 = vadd.f32 %v559, 0.0
  %v609 = vadd.f32 %v560, 0.0
  %v610 = vadd.f32 %v561, 0.0
  %v611 = vadd.f32 %v562, 0.0
  %v612 = vadd.f32 %v563, 0.0
  %v613 = vadd.f32 %v564, 0.0
  %v614 = vadd.f32 %v565, 0.0
  %v615 = vadd.f32 %v566, 0.0
  %v616 = vadd.f32 %v567, 0.0
  %v617 = vadd.f32 %v568, 0.0
  %v618 = vadd.f32 %v569, 0.0
  %v619 = vadd.f32 %v570, 0.0
  %v620 = vadd.f32 %v571, 0.0
  %v621 = vadd.f32 %v572, 0.0
  %s622 = scalar_lea.vmem %s0, 196
  %v623 = vld [vmem:[%s622] sm:$0xf]
  %v624 = vld [vmem:[%s622 + $0x4] sm:$0xf]
  %v625 = vld [vmem:[%s622 + $0x8] sm:$0xf]
  %v626 = vld [vmem:[%s622 + $0xc] sm:$0xf]
  %v627 = vld [vmem:[%s622 + $0x10] sm:$0xf]
  %v628 = vld [vmem:[%s622 + $0x14] sm:$0xf]
  %v629 = vld [vmem:[%s622 + $0x18] sm:$0xf]
  %v630 = vld [vmem:[%s622 + $0x1c] sm:$0xf]
  %v631 = vld [vmem:[%s622 + $0x20] sm:$0xf]
  %v632 = vld [vmem:[%s622 + $0x24] sm:$0xf]
  %v633 = vld [vmem:[%s622 + $0x28] sm:$0xf]
  %v634 = vld [vmem:[%s622 + $0x2c] sm:$0xf]
  %v635 = vld [vmem:[%s622 + $0x30] sm:$0xf]
  %v636 = vld [vmem:[%s622 + $0x34] sm:$0xf]
  %v637 = vld [vmem:[%s622 + $0x38] sm:$0xf]
  %v638 = vld [vmem:[%s622 + $0x3c] sm:$0xf]
  %v639 = vld [vmem:[%s622 + $0x40] sm:$0xf]
  %v640 = vld [vmem:[%s622 + $0x44] sm:$0xf]
  %v641 = vld [vmem:[%s622 + $0x48] sm:$0xf]
  %v642 = vld [vmem:[%s622 + $0x4c] sm:$0xf]
  %v643 = vld [vmem:[%s622 + $0x50] sm:$0xf]
  %v644 = vld [vmem:[%s622 + $0x54] sm:$0xf]
  %v645 = vld [vmem:[%s622 + $0x58] sm:$0xf]
  %v646 = vld [vmem:[%s622 + $0x5c] sm:$0xf]
  %v647 = vld [vmem:[%s622 + $0x60] sm:$0xf]
  %v648 = vld [vmem:[%s622 + $0x64] sm:$0xf]
  %v649 = vld [vmem:[%s622 + $0x68] sm:$0xf]
  %v650 = vld [vmem:[%s622 + $0x6c] sm:$0xf]
  %v651 = vld [vmem:[%s622 + $0x70] sm:$0xf]
  %v652 = vld [vmem:[%s622 + $0x74] sm:$0xf]
  %v653 = vld [vmem:[%s622 + $0x78] sm:$0xf]
  %v654 = vld [vmem:[%s622 + $0x7c] sm:$0xf]
  %v655 = vld [vmem:[%s622 + $0x80] sm:$0xf]
  %v656 = vld [vmem:[%s622 + $0x84] sm:$0xf]
  %v657 = vld [vmem:[%s622 + $0x88] sm:$0xf]
  %v658 = vld [vmem:[%s622 + $0x8c] sm:$0xf]
  %v659 = vld [vmem:[%s622 + $0x90] sm:$0xf]
  %v660 = vld [vmem:[%s622 + $0x94] sm:$0xf]
  %v661 = vld [vmem:[%s622 + $0x98] sm:$0xf]
  %v662 = vld [vmem:[%s622 + $0x9c] sm:$0xf]
  %v663 = vld [vmem:[%s622 + $0xa0] sm:$0xf]
  %v664 = vld [vmem:[%s622 + $0xa4] sm:$0xf]
  %v665 = vld [vmem:[%s622 + $0xa8] sm:$0xf]
  %v666 = vld [vmem:[%s622 + $0xac] sm:$0xf]
  %v667 = vld [vmem:[%s622 + $0xb0] sm:$0xf]
  %v668 = vld [vmem:[%s622 + $0xb4] sm:$0xf]
  %v669 = vld [vmem:[%s622 + $0xb8] sm:$0xf]
  %v670 = vld [vmem:[%s622 + $0xbc] sm:$0xf]
  %v671 = vld [vmem:[%s622 + $0xc0] sm:$0xf]
  %v721 = vunpack.c.l.b16 %v623
  %v722 = vunpack.c.l.b16 %v624
  %v723 = vunpack.c.l.b16 %v625
  %v724 = vunpack.c.l.b16 %v626
  %v725 = vunpack.c.l.b16 %v627
  %v726 = vunpack.c.l.b16 %v628
  %v727 = vunpack.c.l.b16 %v629
  %v728 = vunpack.c.l.b16 %v630
  %v729 = vunpack.c.l.b16 %v631
  %v730 = vunpack.c.l.b16 %v632
  %v731 = vunpack.c.l.b16 %v633
  %v732 = vunpack.c.l.b16 %v634
  %v733 = vunpack.c.l.b16 %v635
  %v734 = vunpack.c.l.b16 %v636
  %v735 = vunpack.c.l.b16 %v637
  %v736 = vunpack.c.l.b16 %v638
  %v737 = vunpack.c.l.b16 %v639
  %v738 = vunpack.c.l.b16 %v640
  %v739 = vunpack.c.l.b16 %v641
  %v740 = vunpack.c.l.b16 %v642
  %v741 = vunpack.c.l.b16 %v643
  %v742 = vunpack.c.l.b16 %v644
  %v743 = vunpack.c.l.b16 %v645
  %v744 = vunpack.c.l.b16 %v646
  %v745 = vunpack.c.l.b16 %v647
  %v746 = vunpack.c.l.b16 %v648
  %v747 = vunpack.c.l.b16 %v649
  %v748 = vunpack.c.l.b16 %v650
  %v749 = vunpack.c.l.b16 %v651
  %v750 = vunpack.c.l.b16 %v652
  %v751 = vunpack.c.l.b16 %v653
  %v752 = vunpack.c.l.b16 %v654
  %v753 = vunpack.c.l.b16 %v655
  %v754 = vunpack.c.l.b16 %v656
  %v755 = vunpack.c.l.b16 %v657
  %v756 = vunpack.c.l.b16 %v658
  %v757 = vunpack.c.l.b16 %v659
  %v758 = vunpack.c.l.b16 %v660
  %v759 = vunpack.c.l.b16 %v661
  %v760 = vunpack.c.l.b16 %v662
  %v761 = vunpack.c.l.b16 %v663
  %v762 = vunpack.c.l.b16 %v664
  %v763 = vunpack.c.l.b16 %v665
  %v764 = vunpack.c.l.b16 %v666
  %v765 = vunpack.c.l.b16 %v667
  %v766 = vunpack.c.l.b16 %v668
  %v767 = vunpack.c.l.b16 %v669
  %v768 = vunpack.c.l.b16 %v670
  %v769 = vunpack.c.l.b16 %v671
  %v770 = vpack.c.b16 %v722, %v721
  %v771 = vpack.c.b16 %v724, %v723
  %v772 = vpack.c.b16 %v726, %v725
  %v773 = vpack.c.b16 %v728, %v727
  %v774 = vpack.c.b16 %v730, %v729
  %v775 = vpack.c.b16 %v732, %v731
  %v776 = vpack.c.b16 %v734, %v733
  %v777 = vpack.c.b16 %v736, %v735
  %v778 = vpack.c.b16 %v738, %v737
  %v779 = vpack.c.b16 %v740, %v739
  %v780 = vpack.c.b16 %v742, %v741
  %v781 = vpack.c.b16 %v744, %v743
  %v782 = vpack.c.b16 %v746, %v745
  %v783 = vpack.c.b16 %v748, %v747
  %v784 = vpack.c.b16 %v750, %v749
  %v785 = vpack.c.b16 %v752, %v751
  %v786 = vpack.c.b16 %v754, %v753
  %v787 = vpack.c.b16 %v756, %v755
  %v788 = vpack.c.b16 %v758, %v757
  %v789 = vpack.c.b16 %v760, %v759
  %v790 = vpack.c.b16 %v762, %v761
  %v791 = vpack.c.b16 %v764, %v763
  %v792 = vpack.c.b16 %v766, %v765
  %v793 = vpack.c.b16 %v768, %v767
  %v794 = vpack.c.b16 %v769, %v769
  %v796 = vsel %vm209, %v770, 0
  %v799 = vsel %vm209, %v771, 0
  %v802 = vsel %vm209, %v772, 0
  %v805 = vsel %vm209, %v773, 0
  %v808 = vsel %vm209, %v774, 0
  %v811 = vsel %vm209, %v775, 0
  %v814 = vsel %vm209, %v776, 0
  %v817 = vsel %vm209, %v777, 0
  %v820 = vsel %vm209, %v778, 0
  %v823 = vsel %vm209, %v779, 0
  %v826 = vsel %vm209, %v780, 0
  %v829 = vsel %vm209, %v781, 0
  %v832 = vsel %vm209, %v782, 0
  %v835 = vsel %vm209, %v783, 0
  %v838 = vsel %vm209, %v784, 0
  %v841 = vsel %vm209, %v785, 0
  %v844 = vsel %vm209, %v786, 0
  %v847 = vsel %vm209, %v787, 0
  %v850 = vsel %vm209, %v788, 0
  %v853 = vsel %vm209, %v789, 0
  %v856 = vsel %vm209, %v790, 0
  %v859 = vsel %vm209, %v791, 0
  %v862 = vsel %vm209, %v792, 0
  %v865 = vsel %vm209, %v793, 0
  %v868 = vsel %vm209, %v794, 0
  %870 = vmatprep.subr.bf16.mxu0 0
  %871 = vmatpush1.bf16.msra.mxu0 %v206
  %872 = vmatprep.subr.bf16.mxu0 0
  %873 = vmatpush1.bf16.msra.mxu0 %v290
  %874 = vmatprep.subr.bf16.mxu0 0
  %875 = vmatpush1.bf16.msra.mxu0 0
  %876 = vmatprep.subr.bf16.mxu0 0
  %877 = vmatpush1.bf16.msra.mxu0 0
  %878 = vmatprep.subr.bf16.mxu0 0
  %879 = vmatpush1.bf16.msra.mxu0 0
  %880 = vmatprep.subr.bf16.mxu0 0
  %881 = vmatpush1.bf16.msra.mxu0 0
  %882 = vmatprep.subr.bf16.mxu0 0
  %883 = vmatpush1.bf16.msra.mxu0 0
  %884 = vmatprep.subr.bf16.mxu0 0
  %885 = vmatpush1.bf16.msra.mxu0 0
  %886 = vmatprep.subr.bf16.mxu0 0
  %887 = vmatpush1.bf16.msra.mxu0 0
  %888 = vmatprep.subr.bf16.mxu0 0
  %889 = vmatpush1.bf16.msra.mxu0 0
  %890 = vmatprep.subr.bf16.mxu0 0
  %891 = vmatpush1.bf16.msra.mxu0 0
  %892 = vmatprep.subr.bf16.mxu0 0
  %893 = vmatpush1.bf16.msra.mxu0 0
  %894 = vmatprep.subr.bf16.mxu0 0
  %895 = vmatpush1.bf16.msra.mxu0 0
  %896 = vmatprep.subr.bf16.mxu0 0
  %897 = vmatpush1.bf16.msra.mxu0 0
  %898 = vmatprep.subr.bf16.mxu0 0
  %899 = vmatpush1.bf16.msra.mxu0 0
  %900 = vmatprep.subr.bf16.mxu0 0
  %901 = vmatpush1.bf16.msra.mxu0 0
  %902 = vmatprep.mubr.bf16.mxu0 0
  %903 = vmatmul.mubr.bf16.gmra.mrb[0].mxu0 %v796
  %v904 = vpop.f32.mrb[0].mxu0
  %v905 = vadd.f32 %v73, %v904
  %v906 = vpop.f32.mrb[0].mxu0
  %v907 = vpop.f32.mrb[0].mxu0
  %v908 = vadd.f32 %v73, %v907
  %v909 = vpop.f32.mrb[0].mxu0
  %910 = vmatprep.mubr.bf16.mxu0 0
  %911 = vmatmul.mubr.bf16.gmra.mrb[0].mxu0 %v799
  %v912 = vpop.f32.mrb[0].mxu0
  %v913 = vadd.f32 %v73, %v912
  %v914 = vpop.f32.mrb[0].mxu0
  %v915 = vpop.f32.mrb[0].mxu0
  %v916 = vadd.f32 %v73, %v915
  %v917 = vpop.f32.mrb[0].mxu0
  %918 = vmatprep.mubr.bf16.mxu0 0
  %919 = vmatmul.mubr.bf16.gmra.mrb[0].mxu0 %v802
  %v920 = vpop.f32.mrb[0].mxu0
  %v921 = vadd.f32 %v73, %v920
  %v922 = vpop.f32.mrb[0].mxu0
  %v923 = vpop.f32.mrb[0].mxu0
  %v924 = vadd.f32 %v73, %v923
  %v925 = vpop.f32.mrb[0].mxu0
  %926 = vmatprep.mubr.bf16.mxu0 0
  %927 = vmatmul.mubr.bf16.gmra.mrb[0].mxu0 %v805
  %v928 = vpop.f32.mrb[0].mxu0
  %v929 = vadd.f32 %v73, %v928
  %v930 = vpop.f32.mrb[0].mxu0
  %v931 = vpop.f32.mrb[0].mxu0
  %v932 = vadd.f32 %v73, %v931
  %v933 = vpop.f32.mrb[0].mxu0
  %934 = vmatprep.mubr.bf16.mxu0 0
  %935 = vmatmul.mubr.bf16.gmra.mrb[0].mxu0 %v808
  %v936 = vpop.f32.mrb[0].mxu0
  %v937 = vadd.f32 %v73, %v936
  %v938 = vpop.f32.mrb[0].mxu0
  %v939 = vpop.f32.mrb[0].mxu0
  %v940 = vadd.f32 %v73, %v939
  %v941 = vpop.f32.mrb[0].mxu0
  %942 = vmatprep.mubr.bf16.mxu0 0
  %943 = vmatmul.mubr.bf16.gmra.mrb[0].mxu0 %v811
  %v944 = vpop.f32.mrb[0].mxu0
  %v945 = vadd.f32 %v73, %v944
  %v946 = vpop.f32.mrb[0].mxu0
  %v947 = vpop.f32.mrb[0].mxu0
  %v948 = vadd.f32 %v73, %v947
  %v949 = vpop.f32.mrb[0].mxu0
  %950 = vmatprep.mubr.bf16.mxu0 0
  %951 = vmatmul.mubr.bf16.gmra.mrb[0].mxu0 %v814
  %v952 = vpop.f32.mrb[0].mxu0
  %v953 = vadd.f32 %v73, %v952
  %v954 = vpop.f32.mrb[0].mxu0
  %v955 = vpop.f32.mrb[0].mxu0
  %v956 = vadd.f32 %v73, %v955
  %v957 = vpop.f32.mrb[0].mxu0
  %958 = vmatprep.mubr.bf16.mxu0 0
  %959 = vmatmul.mubr.bf16.gmra.mrb[0].mxu0 %v817
  %v960 = vpop.f32.mrb[0].mxu0
  %v961 = vadd.f32 %v73, %v960
  %v962 = vpop.f32.mrb[0].mxu0
  %v963 = vpop.f32.mrb[0].mxu0
  %v964 = vadd.f32 %v73, %v963
  %v965 = vpop.f32.mrb[0].mxu0
  %966 = vmatprep.mubr.bf16.mxu0 0
  %967 = vmatmul.mubr.bf16.gmra.mrb[0].mxu0 %v820
  %v968 = vpop.f32.mrb[0].mxu0
  %v969 = vadd.f32 %v73, %v968
  %v970 = vpop.f32.mrb[0].mxu0
  %v971 = vpop.f32.mrb[0].mxu0
  %v972 = vadd.f32 %v73, %v971
  %v973 = vpop.f32.mrb[0].mxu0
  %974 = vmatprep.mubr.bf16.mxu0 0
  %975 = vmatmul.mubr.bf16.gmra.mrb[0].mxu0 %v823
  %v976 = vpop.f32.mrb[0].mxu0
  %v977 = vadd.f32 %v73, %v976
  %v978 = vpop.f32.mrb[0].mxu0
  %v979 = vpop.f32.mrb[0].mxu0
  %v980 = vadd.f32 %v73, %v979
  %v981 = vpop.f32.mrb[0].mxu0
  %982 = vmatprep.mubr.bf16.mxu0 0
  %983 = vmatmul.mubr.bf16.gmra.mrb[0].mxu0 %v826
  %v984 = vpop.f32.mrb[0].mxu0
  %v985 = vadd.f32 %v73, %v984
  %v986 = vpop.f32.mrb[0].mxu0
  %v987 = vpop.f32.mrb[0].mxu0
  %v988 = vadd.f32 %v73, %v987
  %v989 = vpop.f32.mrb[0].mxu0
  %990 = vmatprep.mubr.bf16.mxu0 0
  %991 = vmatmul.mubr.bf16.gmra.mrb[0].mxu0 %v829
  %v992 = vpop.f32.mrb[0].mxu0
  %v993 = vadd.f32 %v73, %v992
  %v994 = vpop.f32.mrb[0].mxu0
  %v995 = vpop.f32.mrb[0].mxu0
  %v996 = vadd.f32 %v73, %v995
  %v997 = vpop.f32.mrb[0].mxu0
  %998 = vmatprep.mubr.bf16.mxu0 0
  %999 = vmatmul.mubr.bf16.gmra.mrb[0].mxu0 %v832
  %v1000 = vpop.f32.mrb[0].mxu0
  %v1001 = vadd.f32 %v73, %v1000
  %v1002 = vpop.f32.mrb[0].mxu0
  %v1003 = vpop.f32.mrb[0].mxu0
  %v1004 = vadd.f32 %v73, %v1003
  %v1005 = vpop.f32.mrb[0].mxu0
  %1006 = vmatprep.mubr.bf16.mxu0 0
  %1007 = vmatmul.mubr.bf16.gmra.mrb[0].mxu0 %v835
  %v1008 = vpop.f32.mrb[0].mxu0
  %v1009 = vadd.f32 %v73, %v1008
  %v1010 = vpop.f32.mrb[0].mxu0
  %v1011 = vpop.f32.mrb[0].mxu0
  %v1012 = vadd.f32 %v73, %v1011
  %v1013 = vpop.f32.mrb[0].mxu0
  %1014 = vmatprep.mubr.bf16.mxu0 0
  %1015 = vmatmul.mubr.bf16.gmra.mrb[0].mxu0 %v838
  %v1016 = vpop.f32.mrb[0].mxu0
  %v1017 = vadd.f32 %v73, %v1016
  %v1018 = vpop.f32.mrb[0].mxu0
  %v1019 = vpop.f32.mrb[0].mxu0
  %v1020 = vadd.f32 %v73, %v1019
  %v1021 = vpop.f32.mrb[0].mxu0
  %1022 = vmatprep.mubr.bf16.mxu0 0
  %1023 = vmatmul.mubr.bf16.gmra.mrb[0].mxu0 %v841
  %v1024 = vpop.f32.mrb[0].mxu0
  %v1025 = vadd.f32 %v73, %v1024
  %v1026 = vpop.f32.mrb[0].mxu0
  %v1027 = vpop.f32.mrb[0].mxu0
  %v1028 = vadd.f32 %v73, %v1027
  %v1029 = vpop.f32.mrb[0].mxu0
  %1030 = vmatprep.mubr.bf16.mxu0 0
  %1031 = vmatmul.mubr.bf16.gmra.mrb[0].mxu0 %v844
  %v1032 = vpop.f32.mrb[0].mxu0
  %v1033 = vadd.f32 %v73, %v1032
  %v1034 = vpop.f32.mrb[0].mxu0
  %v1035 = vpop.f32.mrb[0].mxu0
  %v1036 = vadd.f32 %v73, %v1035
  %v1037 = vpop.f32.mrb[0].mxu0
  %1038 = vmatprep.mubr.bf16.mxu0 0
  %1039 = vmatmul.mubr.bf16.gmra.mrb[0].mxu0 %v847
  %v1040 = vpop.f32.mrb[0].mxu0
  %v1041 = vadd.f32 %v73, %v1040
  %v1042 = vpop.f32.mrb[0].mxu0
  %v1043 = vpop.f32.mrb[0].mxu0
  %v1044 = vadd.f32 %v73, %v1043
  %v1045 = vpop.f32.mrb[0].mxu0
  %1046 = vmatprep.mubr.bf16.mxu0 0
  %1047 = vmatmul.mubr.bf16.gmra.mrb[0].mxu0 %v850
  %v1048 = vpop.f32.mrb[0].mxu0
  %v1049 = vadd.f32 %v73, %v1048
  %v1050 = vpop.f32.mrb[0].mxu0
  %v1051 = vpop.f32.mrb[0].mxu0
  %v1052 = vadd.f32 %v73, %v1051
  %v1053 = vpop.f32.mrb[0].mxu0
  %1054 = vmatprep.mubr.bf16.mxu0 0
  %1055 = vmatmul.mubr.bf16.gmra.mrb[0].mxu0 %v853
  %v1056 = vpop.f32.mrb[0].mxu0
  %v1057 = vadd.f32 %v73, %v1056
  %v1058 = vpop.f32.mrb[0].mxu0
  %v1059 = vpop.f32.mrb[0].mxu0
  %v1060 = vadd.f32 %v73, %v1059
  %v1061 = vpop.f32.mrb[0].mxu0
  %1062 = vmatprep.mubr.bf16.mxu0 0
  %1063 = vmatmul.mubr.bf16.gmra.mrb[0].mxu0 %v856
  %v1064 = vpop.f32.mrb[0].mxu0
  %v1065 = vadd.f32 %v73, %v1064
  %v1066 = vpop.f32.mrb[0].mxu0
  %v1067 = vpop.f32.mrb[0].mxu0
  %v1068 = vadd.f32 %v73, %v1067
  %v1069 = vpop.f32.mrb[0].mxu0
  %1070 = vmatprep.mubr.bf16.mxu0 0
  %1071 = vmatmul.mubr.bf16.gmra.mrb[0].mxu0 %v859
  %v1072 = vpop.f32.mrb[0].mxu0
  %v1073 = vadd.f32 %v73, %v1072
  %v1074 = vpop.f32.mrb[0].mxu0
  %v1075 = vpop.f32.mrb[0].mxu0
  %v1076 = vadd.f32 %v73, %v1075
  %v1077 = vpop.f32.mrb[0].mxu0
  %1078 = vmatprep.mubr.bf16.mxu0 0
  %1079 = vmatmul.mubr.bf16.gmra.mrb[0].mxu0 %v862
  %v1080 = vpop.f32.mrb[0].mxu0
  %v1081 = vadd.f32 %v73, %v1080
  %v1082 = vpop.f32.mrb[0].mxu0
  %v1083 = vpop.f32.mrb[0].mxu0
  %v1084 = vadd.f32 %v73, %v1083
  %v1085 = vpop.f32.mrb[0].mxu0
  %1086 = vmatprep.mubr.bf16.mxu0 0
  %1087 = vmatmul.mubr.bf16.gmra.mrb[0].mxu0 %v865
  %v1088 = vpop.f32.mrb[0].mxu0
  %v1089 = vadd.f32 %v73, %v1088
  %v1090 = vpop.f32.mrb[0].mxu0
  %v1091 = vpop.f32.mrb[0].mxu0
  %v1092 = vadd.f32 %v73, %v1091
  %v1093 = vpop.f32.mrb[0].mxu0
  %1094 = vmatprep.mubr.bf16.mxu0 0
  %1095 = vmatmul.mubr.bf16.gmra.mrb[0].mxu0 %v868
  %v1096 = vpop.f32.mrb[0].mxu0
  %v1097 = vadd.f32 %v73, %v1096
  %v1098 = vpop.f32.mrb[0].mxu0
  %v1099 = vpop.f32.mrb[0].mxu0
  %v1100 = vpop.f32.mrb[0].mxu0
  %1101 = vdwg.mxu0
  %v1102 = vmax.f32 %v905, 0.0
  %v1103 = vmax.f32 %v908, 0.0
  %v1104 = vmax.f32 %v913, 0.0
  %v1105 = vmax.f32 %v916, 0.0
  %v1106 = vmax.f32 %v921, 0.0
  %v1107 = vmax.f32 %v924, 0.0
  %v1108 = vmax.f32 %v929, 0.0
  %v1109 = vmax.f32 %v932, 0.0
  %v1110 = vmax.f32 %v937, 0.0
  %v1111 = vmax.f32 %v940, 0.0
  %v1112 = vmax.f32 %v945, 0.0
  %v1113 = vmax.f32 %v948, 0.0
  %v1114 = vmax.f32 %v953, 0.0
  %v1115 = vmax.f32 %v956, 0.0
  %v1116 = vmax.f32 %v961, 0.0
  %v1117 = vmax.f32 %v964, 0.0
  %v1118 = vmax.f32 %v969, 0.0
  %v1119 = vmax.f32 %v972, 0.0
  %v1120 = vmax.f32 %v977, 0.0
  %v1121 = vmax.f32 %v980, 0.0
  %v1122 = vmax.f32 %v985, 0.0
  %v1123 = vmax.f32 %v988, 0.0
  %v1124 = vmax.f32 %v993, 0.0
  %v1125 = vmax.f32 %v996, 0.0
  %v1126 = vmax.f32 %v1001, 0.0
  %v1127 = vmax.f32 %v1004, 0.0
  %v1128 = vmax.f32 %v1009, 0.0
  %v1129 = vmax.f32 %v1012, 0.0
  %v1130 = vmax.f32 %v1017, 0.0
  %v1131 = vmax.f32 %v1020, 0.0
  %v1132 = vmax.f32 %v1025, 0.0
  %v1133 = vmax.f32 %v1028, 0.0
  %v1134 = vmax.f32 %v1033, 0.0
  %v1135 = vmax.f32 %v1036, 0.0
  %v1136 = vmax.f32 %v1041, 0.0
  %v1137 = vmax.f32 %v1044, 0.0
  %v1138 = vmax.f32 %v1049, 0.0
  %v1139 = vmax.f32 %v1052, 0.0
  %v1140 = vmax.f32 %v1057, 0.0
  %v1141 = vmax.f32 %v1060, 0.0
  %v1142 = vmax.f32 %v1065, 0.0
  %v1143 = vmax.f32 %v1068, 0.0
  %v1144 = vmax.f32 %v1073, 0.0
  %v1145 = vmax.f32 %v1076, 0.0
  %v1146 = vmax.f32 %v1081, 0.0
  %v1147 = vmax.f32 %v1084, 0.0
  %v1148 = vmax.f32 %v1089, 0.0
  %v1149 = vmax.f32 %v1092, 0.0
  %v1150 = vmax.f32 %v1097, 0.0
  %v1151 = vadd.f32 %v573, %v1102
  %v1152 = vadd.f32 %v574, %v1103
  %v1153 = vadd.f32 %v575, %v1104
  %v1154 = vadd.f32 %v576, %v1105
  %v1155 = vadd.f32 %v577, %v1106
  %v1156 = vadd.f32 %v578, %v1107
  %v1157 = vadd.f32 %v579, %v1108
  %v1158 = vadd.f32 %v580, %v1109
  %v1159 = vadd.f32 %v581, %v1110
  %v1160 = vadd.f32 %v582, %v1111
  %v1161 = vadd.f32 %v583, %v1112
  %v1162 = vadd.f32 %v584, %v1113
  %v1163 = vadd.f32 %v585, %v1114
  %v1164 = vadd.f32 %v586, %v1115
  %v1165 = vadd.f32 %v587, %v1116
  %v1166 = vadd.f32 %v588, %v1117
  %v1167 = vadd.f32 %v589, %v1118
  %v1168 = vadd.f32 %v590, %v1119
  %v1169 = vadd.f32 %v591, %v1120
  %v1170 = vadd.f32 %v592, %v1121
  %v1171 = vadd.f32 %v593, %v1122
  %v1172 = vadd.f32 %v594, %v1123
  %v1173 = vadd.f32 %v595, %v1124
  %v1174 = vadd.f32 %v596, %v1125
  %v1175 = vadd.f32 %v597, %v1126
  %v1176 = vadd.f32 %v598, %v1127
  %v1177 = vadd.f32 %v599, %v1128
  %v1178 = vadd.f32 %v600, %v1129
  %v1179 = vadd.f32 %v601, %v1130
  %v1180 = vadd.f32 %v602, %v1131
  %v1181 = vadd.f32 %v603, %v1132
  %v1182 = vadd.f32 %v604, %v1133
  %v1183 = vadd.f32 %v605, %v1134
  %v1184 = vadd.f32 %v606, %v1135
  %v1185 = vadd.f32 %v607, %v1136
  %v1186 = vadd.f32 %v608, %v1137
  %v1187 = vadd.f32 %v609, %v1138
  %v1188 = vadd.f32 %v610, %v1139
  %v1189 = vadd.f32 %v611, %v1140
  %v1190 = vadd.f32 %v612, %v1141
  %v1191 = vadd.f32 %v613, %v1142
  %v1192 = vadd.f32 %v614, %v1143
  %v1193 = vadd.f32 %v615, %v1144
  %v1194 = vadd.f32 %v616, %v1145
  %v1195 = vadd.f32 %v617, %v1146
  %v1196 = vadd.f32 %v618, %v1147
  %v1197 = vadd.f32 %v619, %v1148
  %v1198 = vadd.f32 %v620, %v1149
  %v1199 = vadd.f32 %v621, %v1150
  %s1200 = scalar_lea.vmem %s0, 392
  %v1201 = vld [vmem:[%s1200] sm:$0xf]
  %v1202 = vld [vmem:[%s1200 + $0x4] sm:$0xf]
  %v1203 = vld [vmem:[%s1200 + $0x8] sm:$0xf]
  %v1204 = vld [vmem:[%s1200 + $0xc] sm:$0xf]
  %v1205 = vld [vmem:[%s1200 + $0x10] sm:$0xf]
  %v1206 = vld [vmem:[%s1200 + $0x14] sm:$0xf]
  %v1207 = vld [vmem:[%s1200 + $0x18] sm:$0xf]
  %v1208 = vld [vmem:[%s1200 + $0x1c] sm:$0xf]
  %v1209 = vld [vmem:[%s1200 + $0x20] sm:$0xf]
  %v1210 = vld [vmem:[%s1200 + $0x24] sm:$0xf]
  %v1211 = vld [vmem:[%s1200 + $0x28] sm:$0xf]
  %v1212 = vld [vmem:[%s1200 + $0x2c] sm:$0xf]
  %v1213 = vld [vmem:[%s1200 + $0x30] sm:$0xf]
  %v1214 = vld [vmem:[%s1200 + $0x34] sm:$0xf]
  %v1215 = vld [vmem:[%s1200 + $0x38] sm:$0xf]
  %v1216 = vld [vmem:[%s1200 + $0x3c] sm:$0xf]
  %v1217 = vld [vmem:[%s1200 + $0x40] sm:$0xf]
  %v1218 = vld [vmem:[%s1200 + $0x44] sm:$0xf]
  %v1219 = vld [vmem:[%s1200 + $0x48] sm:$0xf]
  %v1220 = vld [vmem:[%s1200 + $0x4c] sm:$0xf]
  %v1221 = vld [vmem:[%s1200 + $0x50] sm:$0xf]
  %v1222 = vld [vmem:[%s1200 + $0x54] sm:$0xf]
  %v1223 = vld [vmem:[%s1200 + $0x58] sm:$0xf]
  %v1224 = vld [vmem:[%s1200 + $0x5c] sm:$0xf]
  %v1225 = vld [vmem:[%s1200 + $0x60] sm:$0xf]
  %v1226 = vld [vmem:[%s1200 + $0x64] sm:$0xf]
  %v1227 = vld [vmem:[%s1200 + $0x68] sm:$0xf]
  %v1228 = vld [vmem:[%s1200 + $0x6c] sm:$0xf]
  %v1229 = vld [vmem:[%s1200 + $0x70] sm:$0xf]
  %v1230 = vld [vmem:[%s1200 + $0x74] sm:$0xf]
  %v1231 = vld [vmem:[%s1200 + $0x78] sm:$0xf]
  %v1232 = vld [vmem:[%s1200 + $0x7c] sm:$0xf]
  %v1233 = vld [vmem:[%s1200 + $0x80] sm:$0xf]
  %v1234 = vld [vmem:[%s1200 + $0x84] sm:$0xf]
  %v1235 = vld [vmem:[%s1200 + $0x88] sm:$0xf]
  %v1236 = vld [vmem:[%s1200 + $0x8c] sm:$0xf]
  %v1237 = vld [vmem:[%s1200 + $0x90] sm:$0xf]
  %v1238 = vld [vmem:[%s1200 + $0x94] sm:$0xf]
  %v1239 = vld [vmem:[%s1200 + $0x98] sm:$0xf]
  %v1240 = vld [vmem:[%s1200 + $0x9c] sm:$0xf]
  %v1241 = vld [vmem:[%s1200 + $0xa0] sm:$0xf]
  %v1242 = vld [vmem:[%s1200 + $0xa4] sm:$0xf]
  %v1243 = vld [vmem:[%s1200 + $0xa8] sm:$0xf]
  %v1244 = vld [vmem:[%s1200 + $0xac] sm:$0xf]
  %v1245 = vld [vmem:[%s1200 + $0xb0] sm:$0xf]
  %v1246 = vld [vmem:[%s1200 + $0xb4] sm:$0xf]
  %v1247 = vld [vmem:[%s1200 + $0xb8] sm:$0xf]
  %v1248 = vld [vmem:[%s1200 + $0xbc] sm:$0xf]
  %v1249 = vld [vmem:[%s1200 + $0xc0] sm:$0xf]
  %v1299 = vunpack.c.l.b16 %v1201
  %v1300 = vunpack.c.l.b16 %v1202
  %v1301 = vunpack.c.l.b16 %v1203
  %v1302 = vunpack.c.l.b16 %v1204
  %v1303 = vunpack.c.l.b16 %v1205
  %v1304 = vunpack.c.l.b16 %v1206
  %v1305 = vunpack.c.l.b16 %v1207
  %v1306 = vunpack.c.l.b16 %v1208
  %v1307 = vunpack.c.l.b16 %v1209
  %v1308 = vunpack.c.l.b16 %v1210
  %v1309 = vunpack.c.l.b16 %v1211
  %v1310 = vunpack.c.l.b16 %v1212
  %v1311 = vunpack.c.l.b16 %v1213
  %v1312 = vunpack.c.l.b16 %v1214
  %v1313 = vunpack.c.l.b16 %v1215
  %v1314 = vunpack.c.l.b16 %v1216
  %v1315 = vunpack.c.l.b16 %v1217
  %v1316 = vunpack.c.l.b16 %v1218
  %v1317 = vunpack.c.l.b16 %v1219
  %v1318 = vunpack.c.l.b16 %v1220
  %v1319 = vunpack.c.l.b16 %v1221
  %v1320 = vunpack.c.l.b16 %v1222
  %v1321 = vunpack.c.l.b16 %v1223
  %v1322 = vunpack.c.l.b16 %v1224
  %v1323 = vunpack.c.l.b16 %v1225
  %v1324 = vunpack.c.l.b16 %v1226
  %v1325 = vunpack.c.l.b16 %v1227
  %v1326 = vunpack.c.l.b16 %v1228
  %v1327 = vunpack.c.l.b16 %v1229
  %v1328 = vunpack.c.l.b16 %v1230
  %v1329 = vunpack.c.l.b16 %v1231
  %v1330 = vunpack.c.l.b16 %v1232
  %v1331 = vunpack.c.l.b16 %v1233
  %v1332 = vunpack.c.l.b16 %v1234
  %v1333 = vunpack.c.l.b16 %v1235
  %v1334 = vunpack.c.l.b16 %v1236
  %v1335 = vunpack.c.l.b16 %v1237
  %v1336 = vunpack.c.l.b16 %v1238
  %v1337 = vunpack.c.l.b16 %v1239
  %v1338 = vunpack.c.l.b16 %v1240
  %v1339 = vunpack.c.l.b16 %v1241
  %v1340 = vunpack.c.l.b16 %v1242
  %v1341 = vunpack.c.l.b16 %v1243
  %v1342 = vunpack.c.l.b16 %v1244
  %v1343 = vunpack.c.l.b16 %v1245
  %v1344 = vunpack.c.l.b16 %v1246
  %v1345 = vunpack.c.l.b16 %v1247
  %v1346 = vunpack.c.l.b16 %v1248
  %v1347 = vunpack.c.l.b16 %v1249
  %v1348 = vpack.c.b16 %v1300, %v1299
  %v1349 = vpack.c.b16 %v1302, %v1301
  %v1350 = vpack.c.b16 %v1304, %v1303
  %v1351 = vpack.c.b16 %v1306, %v1305
  %v1352 = vpack.c.b16 %v1308, %v1307
  %v1353 = vpack.c.b16 %v1310, %v1309
  %v1354 = vpack.c.b16 %v1312, %v1311
  %v1355 = vpack.c.b16 %v1314, %v1313
  %v1356 = vpack.c.b16 %v1316, %v1315
  %v1357 = vpack.c.b16 %v1318, %v1317
  %v1358 = vpack.c.b16 %v1320, %v1319
  %v1359 = vpack.c.b16 %v1322, %v1321
  %v1360 = vpack.c.b16 %v1324, %v1323
  %v1361 = vpack.c.b16 %v1326, %v1325
  %v1362 = vpack.c.b16 %v1328, %v1327
  %v1363 = vpack.c.b16 %v1330, %v1329
  %v1364 = vpack.c.b16 %v1332, %v1331
  %v1365 = vpack.c.b16 %v1334, %v1333
  %v1366 = vpack.c.b16 %v1336, %v1335
  %v1367 = vpack.c.b16 %v1338, %v1337
  %v1368 = vpack.c.b16 %v1340, %v1339
  %v1369 = vpack.c.b16 %v1342, %v1341
  %v1370 = vpack.c.b16 %v1344, %v1343
  %v1371 = vpack.c.b16 %v1346, %v1345
  %v1372 = vpack.c.b16 %v1347, %v1347
  %v1374 = vsel %vm209, %v1348, 0
  %v1377 = vsel %vm209, %v1349, 0
  %v1380 = vsel %vm209, %v1350, 0
  %v1383 = vsel %vm209, %v1351, 0
  %v1386 = vsel %vm209, %v1352, 0
  %v1389 = vsel %vm209, %v1353, 0
  %v1392 = vsel %vm209, %v1354, 0
  %v1395 = vsel %vm209, %v1355, 0
  %v1398 = vsel %vm209, %v1356, 0
  %v1401 = vsel %vm209, %v1357, 0
  %v1404 = vsel %vm209, %v1358, 0
  %v1407 = vsel %vm209, %v1359, 0
  %v1410 = vsel %vm209, %v1360, 0
  %v1413 = vsel %vm209, %v1361, 0
  %v1416 = vsel %vm209, %v1362, 0
  %v1419 = vsel %vm209, %v1363, 0
  %v1422 = vsel %vm209, %v1364, 0
  %v1425 = vsel %vm209, %v1365, 0
  %v1428 = vsel %vm209, %v1366, 0
  %v1431 = vsel %vm209, %v1367, 0
  %v1434 = vsel %vm209, %v1368, 0
  %v1437 = vsel %vm209, %v1369, 0
  %v1440 = vsel %vm209, %v1370, 0
  %v1443 = vsel %vm209, %v1371, 0
  %v1446 = vsel %vm209, %v1372, 0
  %1448 = vmatprep.subr.bf16.mxu0 0
  %1449 = vmatpush1.bf16.msra.mxu0 %v206
  %1450 = vmatprep.subr.bf16.mxu0 0
  %1451 = vmatpush1.bf16.msra.mxu0 %v290
  %1452 = vmatprep.subr.bf16.mxu0 0
  %1453 = vmatpush1.bf16.msra.mxu0 0
  %1454 = vmatprep.subr.bf16.mxu0 0
  %1455 = vmatpush1.bf16.msra.mxu0 0
  %1456 = vmatprep.subr.bf16.mxu0 0
  %1457 = vmatpush1.bf16.msra.mxu0 0
  %1458 = vmatprep.subr.bf16.mxu0 0
  %1459 = vmatpush1.bf16.msra.mxu0 0
  %1460 = vmatprep.subr.bf16.mxu0 0
  %1461 = vmatpush1.bf16.msra.mxu0 0
  %1462 = vmatprep.subr.bf16.mxu0 0
  %1463 = vmatpush1.bf16.msra.mxu0 0
  %1464 = vmatprep.subr.bf16.mxu0 0
  %1465 = vmatpush1.bf16.msra.mxu0 0
  %1466 = vmatprep.subr.bf16.mxu0 0
  %1467 = vmatpush1.bf16.msra.mxu0 0
  %1468 = vmatprep.subr.bf16.mxu0 0
  %1469 = vmatpush1.bf16.msra.mxu0 0
  %1470 = vmatprep.subr.bf16.mxu0 0
  %1471 = vmatpush1.bf16.msra.mxu0 0
  %1472 = vmatprep.subr.bf16.mxu0 0
  %1473 = vmatpush1.bf16.msra.mxu0 0
  %1474 = vmatprep.subr.bf16.mxu0 0
  %1475 = vmatpush1.bf16.msra.mxu0 0
  %1476 = vmatprep.subr.bf16.mxu0 0
  %1477 = vmatpush1.bf16.msra.mxu0 0
  %1478 = vmatprep.subr.bf16.mxu0 0
  %1479 = vmatpush1.bf16.msra.mxu0 0
  %1480 = vmatprep.mubr.bf16.mxu0 0
  %1481 = vmatmul.mubr.bf16.gmra.mrb[0].mxu0 %v1374
  %v1482 = vpop.f32.mrb[0].mxu0
  %v1483 = vadd.f32 %v73, %v1482
  %v1484 = vpop.f32.mrb[0].mxu0
  %v1485 = vpop.f32.mrb[0].mxu0
  %v1486 = vadd.f32 %v73, %v1485
  %v1487 = vpop.f32.mrb[0].mxu0
  %1488 = vmatprep.mubr.bf16.mxu0 0
  %1489 = vmatmul.mubr.bf16.gmra.mrb[0].mxu0 %v1377
  %v1490 = vpop.f32.mrb[0].mxu0
  %v1491 = vadd.f32 %v73, %v1490
  %v1492 = vpop.f32.mrb[0].mxu0
  %v1493 = vpop.f32.mrb[0].mxu0
  %v1494 = vadd.f32 %v73, %v1493
  %v1495 = vpop.f32.mrb[0].mxu0
  %1496 = vmatprep.mubr.bf16.mxu0 0
  %1497 = vmatmul.mubr.bf16.gmra.mrb[0].mxu0 %v1380
  %v1498 = vpop.f32.mrb[0].mxu0
  %v1499 = vadd.f32 %v73, %v1498
  %v1500 = vpop.f32.mrb[0].mxu0
  %v1501 = vpop.f32.mrb[0].mxu0
  %v1502 = vadd.f32 %v73, %v1501
  %v1503 = vpop.f32.mrb[0].mxu0
  %1504 = vmatprep.mubr.bf16.mxu0 0
  %1505 = vmatmul.mubr.bf16.gmra.mrb[0].mxu0 %v1383
  %v1506 = vpop.f32.mrb[0].mxu0
  %v1507 = vadd.f32 %v73, %v1506
  %v1508 = vpop.f32.mrb[0].mxu0
  %v1509 = vpop.f32.mrb[0].mxu0
  %v1510 = vadd.f32 %v73, %v1509
  %v1511 = vpop.f32.mrb[0].mxu0
  %1512 = vmatprep.mubr.bf16.mxu0 0
  %1513 = vmatmul.mubr.bf16.gmra.mrb[0].mxu0 %v1386
  %v1514 = vpop.f32.mrb[0].mxu0
  %v1515 = vadd.f32 %v73, %v1514
  %v1516 = vpop.f32.mrb[0].mxu0
  %v1517 = vpop.f32.mrb[0].mxu0
  %v1518 = vadd.f32 %v73, %v1517
  %v1519 = vpop.f32.mrb[0].mxu0
  %1520 = vmatprep.mubr.bf16.mxu0 0
  %1521 = vmatmul.mubr.bf16.gmra.mrb[0].mxu0 %v1389
  %v1522 = vpop.f32.mrb[0].mxu0
  %v1523 = vadd.f32 %v73, %v1522
  %v1524 = vpop.f32.mrb[0].mxu0
  %v1525 = vpop.f32.mrb[0].mxu0
  %v1526 = vadd.f32 %v73, %v1525
  %v1527 = vpop.f32.mrb[0].mxu0
  %1528 = vmatprep.mubr.bf16.mxu0 0
  %1529 = vmatmul.mubr.bf16.gmra.mrb[0].mxu0 %v1392
  %v1530 = vpop.f32.mrb[0].mxu0
  %v1531 = vadd.f32 %v73, %v1530
  %v1532 = vpop.f32.mrb[0].mxu0
  %v1533 = vpop.f32.mrb[0].mxu0
  %v1534 = vadd.f32 %v73, %v1533
  %v1535 = vpop.f32.mrb[0].mxu0
  %1536 = vmatprep.mubr.bf16.mxu0 0
  %1537 = vmatmul.mubr.bf16.gmra.mrb[0].mxu0 %v1395
  %v1538 = vpop.f32.mrb[0].mxu0
  %v1539 = vadd.f32 %v73, %v1538
  %v1540 = vpop.f32.mrb[0].mxu0
  %v1541 = vpop.f32.mrb[0].mxu0
  %v1542 = vadd.f32 %v73, %v1541
  %v1543 = vpop.f32.mrb[0].mxu0
  %1544 = vmatprep.mubr.bf16.mxu0 0
  %1545 = vmatmul.mubr.bf16.gmra.mrb[0].mxu0 %v1398
  %v1546 = vpop.f32.mrb[0].mxu0
  %v1547 = vadd.f32 %v73, %v1546
  %v1548 = vpop.f32.mrb[0].mxu0
  %v1549 = vpop.f32.mrb[0].mxu0
  %v1550 = vadd.f32 %v73, %v1549
  %v1551 = vpop.f32.mrb[0].mxu0
  %1552 = vmatprep.mubr.bf16.mxu0 0
  %1553 = vmatmul.mubr.bf16.gmra.mrb[0].mxu0 %v1401
  %v1554 = vpop.f32.mrb[0].mxu0
  %v1555 = vadd.f32 %v73, %v1554
  %v1556 = vpop.f32.mrb[0].mxu0
  %v1557 = vpop.f32.mrb[0].mxu0
  %v1558 = vadd.f32 %v73, %v1557
  %v1559 = vpop.f32.mrb[0].mxu0
  %1560 = vmatprep.mubr.bf16.mxu0 0
  %1561 = vmatmul.mubr.bf16.gmra.mrb[0].mxu0 %v1404
  %v1562 = vpop.f32.mrb[0].mxu0
  %v1563 = vadd.f32 %v73, %v1562
  %v1564 = vpop.f32.mrb[0].mxu0
  %v1565 = vpop.f32.mrb[0].mxu0
  %v1566 = vadd.f32 %v73, %v1565
  %v1567 = vpop.f32.mrb[0].mxu0
  %1568 = vmatprep.mubr.bf16.mxu0 0
  %1569 = vmatmul.mubr.bf16.gmra.mrb[0].mxu0 %v1407
  %v1570 = vpop.f32.mrb[0].mxu0
  %v1571 = vadd.f32 %v73, %v1570
  %v1572 = vpop.f32.mrb[0].mxu0
  %v1573 = vpop.f32.mrb[0].mxu0
  %v1574 = vadd.f32 %v73, %v1573
  %v1575 = vpop.f32.mrb[0].mxu0
  %1576 = vmatprep.mubr.bf16.mxu0 0
  %1577 = vmatmul.mubr.bf16.gmra.mrb[0].mxu0 %v1410
  %v1578 = vpop.f32.mrb[0].mxu0
  %v1579 = vadd.f32 %v73, %v1578
  %v1580 = vpop.f32.mrb[0].mxu0
  %v1581 = vpop.f32.mrb[0].mxu0
  %v1582 = vadd.f32 %v73, %v1581
  %v1583 = vpop.f32.mrb[0].mxu0
  %1584 = vmatprep.mubr.bf16.mxu0 0
  %1585 = vmatmul.mubr.bf16.gmra.mrb[0].mxu0 %v1413
  %v1586 = vpop.f32.mrb[0].mxu0
  %v1587 = vadd.f32 %v73, %v1586
  %v1588 = vpop.f32.mrb[0].mxu0
  %v1589 = vpop.f32.mrb[0].mxu0
  %v1590 = vadd.f32 %v73, %v1589
  %v1591 = vpop.f32.mrb[0].mxu0
  %1592 = vmatprep.mubr.bf16.mxu0 0
  %1593 = vmatmul.mubr.bf16.gmra.mrb[0].mxu0 %v1416
  %v1594 = vpop.f32.mrb[0].mxu0
  %v1595 = vadd.f32 %v73, %v1594
  %v1596 = vpop.f32.mrb[0].mxu0
  %v1597 = vpop.f32.mrb[0].mxu0
  %v1598 = vadd.f32 %v73, %v1597
  %v1599 = vpop.f32.mrb[0].mxu0
  %1600 = vmatprep.mubr.bf16.mxu0 0
  %1601 = vmatmul.mubr.bf16.gmra.mrb[0].mxu0 %v1419
  %v1602 = vpop.f32.mrb[0].mxu0
  %v1603 = vadd.f32 %v73, %v1602
  %v1604 = vpop.f32.mrb[0].mxu0
  %v1605 = vpop.f32.mrb[0].mxu0
  %v1606 = vadd.f32 %v73, %v1605
  %v1607 = vpop.f32.mrb[0].mxu0
  %1608 = vmatprep.mubr.bf16.mxu0 0
  %1609 = vmatmul.mubr.bf16.gmra.mrb[0].mxu0 %v1422
  %v1610 = vpop.f32.mrb[0].mxu0
  %v1611 = vadd.f32 %v73, %v1610
  %v1612 = vpop.f32.mrb[0].mxu0
  %v1613 = vpop.f32.mrb[0].mxu0
  %v1614 = vadd.f32 %v73, %v1613
  %v1615 = vpop.f32.mrb[0].mxu0
  %1616 = vmatprep.mubr.bf16.mxu0 0
  %1617 = vmatmul.mubr.bf16.gmra.mrb[0].mxu0 %v1425
  %v1618 = vpop.f32.mrb[0].mxu0
  %v1619 = vadd.f32 %v73, %v1618
  %v1620 = vpop.f32.mrb[0].mxu0
  %v1621 = vpop.f32.mrb[0].mxu0
  %v1622 = vadd.f32 %v73, %v1621
  %v1623 = vpop.f32.mrb[0].mxu0
  %1624 = vmatprep.mubr.bf16.mxu0 0
  %1625 = vmatmul.mubr.bf16.gmra.mrb[0].mxu0 %v1428
  %v1626 = vpop.f32.mrb[0].mxu0
  %v1627 = vadd.f32 %v73, %v1626
  %v1628 = vpop.f32.mrb[0].mxu0
  %v1629 = vpop.f32.mrb[0].mxu0
  %v1630 = vadd.f32 %v73, %v1629
  %v1631 = vpop.f32.mrb[0].mxu0
  %1632 = vmatprep.mubr.bf16.mxu0 0
  %1633 = vmatmul.mubr.bf16.gmra.mrb[0].mxu0 %v1431
  %v1634 = vpop.f32.mrb[0].mxu0
  %v1635 = vadd.f32 %v73, %v1634
  %v1636 = vpop.f32.mrb[0].mxu0
  %v1637 = vpop.f32.mrb[0].mxu0
  %v1638 = vadd.f32 %v73, %v1637
  %v1639 = vpop.f32.mrb[0].mxu0
  %1640 = vmatprep.mubr.bf16.mxu0 0
  %1641 = vmatmul.mubr.bf16.gmra.mrb[0].mxu0 %v1434
  %v1642 = vpop.f32.mrb[0].mxu0
  %v1643 = vadd.f32 %v73, %v1642
  %v1644 = vpop.f32.mrb[0].mxu0
  %v1645 = vpop.f32.mrb[0].mxu0
  %v1646 = vadd.f32 %v73, %v1645
  %v1647 = vpop.f32.mrb[0].mxu0
  %1648 = vmatprep.mubr.bf16.mxu0 0
  %1649 = vmatmul.mubr.bf16.gmra.mrb[0].mxu0 %v1437
  %v1650 = vpop.f32.mrb[0].mxu0
  %v1651 = vadd.f32 %v73, %v1650
  %v1652 = vpop.f32.mrb[0].mxu0
  %v1653 = vpop.f32.mrb[0].mxu0
  %v1654 = vadd.f32 %v73, %v1653
  %v1655 = vpop.f32.mrb[0].mxu0
  %1656 = vmatprep.mubr.bf16.mxu0 0
  %1657 = vmatmul.mubr.bf16.gmra.mrb[0].mxu0 %v1440
  %v1658 = vpop.f32.mrb[0].mxu0
  %v1659 = vadd.f32 %v73, %v1658
  %v1660 = vpop.f32.mrb[0].mxu0
  %v1661 = vpop.f32.mrb[0].mxu0
  %v1662 = vadd.f32 %v73, %v1661
  %v1663 = vpop.f32.mrb[0].mxu0
  %1664 = vmatprep.mubr.bf16.mxu0 0
  %1665 = vmatmul.mubr.bf16.gmra.mrb[0].mxu0 %v1443
  %v1666 = vpop.f32.mrb[0].mxu0
  %v1667 = vadd.f32 %v73, %v1666
  %v1668 = vpop.f32.mrb[0].mxu0
  %v1669 = vpop.f32.mrb[0].mxu0
  %v1670 = vadd.f32 %v73, %v1669
  %v1671 = vpop.f32.mrb[0].mxu0
  %1672 = vmatprep.mubr.bf16.mxu0 0
  %1673 = vmatmul.mubr.bf16.gmra.mrb[0].mxu0 %v1446
  %v1674 = vpop.f32.mrb[0].mxu0
  %v1675 = vadd.f32 %v73, %v1674
  %v1676 = vpop.f32.mrb[0].mxu0
  %v1677 = vpop.f32.mrb[0].mxu0
  %v1678 = vpop.f32.mrb[0].mxu0
  %1679 = vdwg.mxu0
  %v1680 = vmax.f32 %v1483, 0.0
  %v1681 = vmax.f32 %v1486, 0.0
  %v1682 = vmax.f32 %v1491, 0.0
  %v1683 = vmax.f32 %v1494, 0.0
  %v1684 = vmax.f32 %v1499, 0.0
  %v1685 = vmax.f32 %v1502, 0.0
  %v1686 = vmax.f32 %v1507, 0.0
  %v1687 = vmax.f32 %v1510, 0.0
  %v1688 = vmax.f32 %v1515, 0.0
  %v1689 = vmax.f32 %v1518, 0.0
  %v1690 = vmax.f32 %v1523, 0.0
  %v1691 = vmax.f32 %v1526, 0.0
  %v1692 = vmax.f32 %v1531, 0.0
  %v1693 = vmax.f32 %v1534, 0.0
  %v1694 = vmax.f32 %v1539, 0.0
  %v1695 = vmax.f32 %v1542, 0.0
  %v1696 = vmax.f32 %v1547, 0.0
  %v1697 = vmax.f32 %v1550, 0.0
  %v1698 = vmax.f32 %v1555, 0.0
  %v1699 = vmax.f32 %v1558, 0.0
  %v1700 = vmax.f32 %v1563, 0.0
  %v1701 = vmax.f32 %v1566, 0.0
  %v1702 = vmax.f32 %v1571, 0.0
  %v1703 = vmax.f32 %v1574, 0.0
  %v1704 = vmax.f32 %v1579, 0.0
  %v1705 = vmax.f32 %v1582, 0.0
  %v1706 = vmax.f32 %v1587, 0.0
  %v1707 = vmax.f32 %v1590, 0.0
  %v1708 = vmax.f32 %v1595, 0.0
  %v1709 = vmax.f32 %v1598, 0.0
  %v1710 = vmax.f32 %v1603, 0.0
  %v1711 = vmax.f32 %v1606, 0.0
  %v1712 = vmax.f32 %v1611, 0.0
  %v1713 = vmax.f32 %v1614, 0.0
  %v1714 = vmax.f32 %v1619, 0.0
  %v1715 = vmax.f32 %v1622, 0.0
  %v1716 = vmax.f32 %v1627, 0.0
  %v1717 = vmax.f32 %v1630, 0.0
  %v1718 = vmax.f32 %v1635, 0.0
  %v1719 = vmax.f32 %v1638, 0.0
  %v1720 = vmax.f32 %v1643, 0.0
  %v1721 = vmax.f32 %v1646, 0.0
  %v1722 = vmax.f32 %v1651, 0.0
  %v1723 = vmax.f32 %v1654, 0.0
  %v1724 = vmax.f32 %v1659, 0.0
  %v1725 = vmax.f32 %v1662, 0.0
  %v1726 = vmax.f32 %v1667, 0.0
  %v1727 = vmax.f32 %v1670, 0.0
  %v1728 = vmax.f32 %v1675, 0.0
  %v1729 = vadd.f32 %v1151, %v1680
  %v1730 = vadd.f32 %v1152, %v1681
  %v1731 = vadd.f32 %v1153, %v1682
  %v1732 = vadd.f32 %v1154, %v1683
  %v1733 = vadd.f32 %v1155, %v1684
  %v1734 = vadd.f32 %v1156, %v1685
  %v1735 = vadd.f32 %v1157, %v1686
  %v1736 = vadd.f32 %v1158, %v1687
  %v1737 = vadd.f32 %v1159, %v1688
  %v1738 = vadd.f32 %v1160, %v1689
  %v1739 = vadd.f32 %v1161, %v1690
  %v1740 = vadd.f32 %v1162, %v1691
  %v1741 = vadd.f32 %v1163, %v1692
  %v1742 = vadd.f32 %v1164, %v1693
  %v1743 = vadd.f32 %v1165, %v1694
  %v1744 = vadd.f32 %v1166, %v1695
  %v1745 = vadd.f32 %v1167, %v1696
  %v1746 = vadd.f32 %v1168, %v1697
  %v1747 = vadd.f32 %v1169, %v1698
  %v1748 = vadd.f32 %v1170, %v1699
  %v1749 = vadd.f32 %v1171, %v1700
  %v1750 = vadd.f32 %v1172, %v1701
  %v1751 = vadd.f32 %v1173, %v1702
  %v1752 = vadd.f32 %v1174, %v1703
  %v1753 = vadd.f32 %v1175, %v1704
  %v1754 = vadd.f32 %v1176, %v1705
  %v1755 = vadd.f32 %v1177, %v1706
  %v1756 = vadd.f32 %v1178, %v1707
  %v1757 = vadd.f32 %v1179, %v1708
  %v1758 = vadd.f32 %v1180, %v1709
  %v1759 = vadd.f32 %v1181, %v1710
  %v1760 = vadd.f32 %v1182, %v1711
  %v1761 = vadd.f32 %v1183, %v1712
  %v1762 = vadd.f32 %v1184, %v1713
  %v1763 = vadd.f32 %v1185, %v1714
  %v1764 = vadd.f32 %v1186, %v1715
  %v1765 = vadd.f32 %v1187, %v1716
  %v1766 = vadd.f32 %v1188, %v1717
  %v1767 = vadd.f32 %v1189, %v1718
  %v1768 = vadd.f32 %v1190, %v1719
  %v1769 = vadd.f32 %v1191, %v1720
  %v1770 = vadd.f32 %v1192, %v1721
  %v1771 = vadd.f32 %v1193, %v1722
  %v1772 = vadd.f32 %v1194, %v1723
  %v1773 = vadd.f32 %v1195, %v1724
  %v1774 = vadd.f32 %v1196, %v1725
  %v1775 = vadd.f32 %v1197, %v1726
  %v1776 = vadd.f32 %v1198, %v1727
  %v1777 = vadd.f32 %v1199, %v1728
  %s1778 = scalar_lea.vmem %s0, 588
  %v1779 = vld [vmem:[%s1778] sm:$0xf]
  %v1780 = vld [vmem:[%s1778 + $0x4] sm:$0xf]
  %v1781 = vld [vmem:[%s1778 + $0x8] sm:$0xf]
  %v1782 = vld [vmem:[%s1778 + $0xc] sm:$0xf]
  %v1783 = vld [vmem:[%s1778 + $0x10] sm:$0xf]
  %v1784 = vld [vmem:[%s1778 + $0x14] sm:$0xf]
  %v1785 = vld [vmem:[%s1778 + $0x18] sm:$0xf]
  %v1786 = vld [vmem:[%s1778 + $0x1c] sm:$0xf]
  %v1787 = vld [vmem:[%s1778 + $0x20] sm:$0xf]
  %v1788 = vld [vmem:[%s1778 + $0x24] sm:$0xf]
  %v1789 = vld [vmem:[%s1778 + $0x28] sm:$0xf]
  %v1790 = vld [vmem:[%s1778 + $0x2c] sm:$0xf]
  %v1791 = vld [vmem:[%s1778 + $0x30] sm:$0xf]
  %v1792 = vld [vmem:[%s1778 + $0x34] sm:$0xf]
  %v1793 = vld [vmem:[%s1778 + $0x38] sm:$0xf]
  %v1794 = vld [vmem:[%s1778 + $0x3c] sm:$0xf]
  %v1795 = vld [vmem:[%s1778 + $0x40] sm:$0xf]
  %v1796 = vld [vmem:[%s1778 + $0x44] sm:$0xf]
  %v1797 = vld [vmem:[%s1778 + $0x48] sm:$0xf]
  %v1798 = vld [vmem:[%s1778 + $0x4c] sm:$0xf]
  %v1799 = vld [vmem:[%s1778 + $0x50] sm:$0xf]
  %v1800 = vld [vmem:[%s1778 + $0x54] sm:$0xf]
  %v1801 = vld [vmem:[%s1778 + $0x58] sm:$0xf]
  %v1802 = vld [vmem:[%s1778 + $0x5c] sm:$0xf]
  %v1803 = vld [vmem:[%s1778 + $0x60] sm:$0xf]
  %v1804 = vld [vmem:[%s1778 + $0x64] sm:$0xf]
  %v1805 = vld [vmem:[%s1778 + $0x68] sm:$0xf]
  %v1806 = vld [vmem:[%s1778 + $0x6c] sm:$0xf]
  %v1807 = vld [vmem:[%s1778 + $0x70] sm:$0xf]
  %v1808 = vld [vmem:[%s1778 + $0x74] sm:$0xf]
  %v1809 = vld [vmem:[%s1778 + $0x78] sm:$0xf]
  %v1810 = vld [vmem:[%s1778 + $0x7c] sm:$0xf]
  %v1811 = vld [vmem:[%s1778 + $0x80] sm:$0xf]
  %v1812 = vld [vmem:[%s1778 + $0x84] sm:$0xf]
  %v1813 = vld [vmem:[%s1778 + $0x88] sm:$0xf]
  %v1814 = vld [vmem:[%s1778 + $0x8c] sm:$0xf]
  %v1815 = vld [vmem:[%s1778 + $0x90] sm:$0xf]
  %v1816 = vld [vmem:[%s1778 + $0x94] sm:$0xf]
  %v1817 = vld [vmem:[%s1778 + $0x98] sm:$0xf]
  %v1818 = vld [vmem:[%s1778 + $0x9c] sm:$0xf]
  %v1819 = vld [vmem:[%s1778 + $0xa0] sm:$0xf]
  %v1820 = vld [vmem:[%s1778 + $0xa4] sm:$0xf]
  %v1821 = vld [vmem:[%s1778 + $0xa8] sm:$0xf]
  %v1822 = vld [vmem:[%s1778 + $0xac] sm:$0xf]
  %v1823 = vld [vmem:[%s1778 + $0xb0] sm:$0xf]
  %v1824 = vld [vmem:[%s1778 + $0xb4] sm:$0xf]
  %v1825 = vld [vmem:[%s1778 + $0xb8] sm:$0xf]
  %v1826 = vld [vmem:[%s1778 + $0xbc] sm:$0xf]
  %v1827 = vld [vmem:[%s1778 + $0xc0] sm:$0xf]
  %v1877 = vunpack.c.l.b16 %v1779
  %v1878 = vunpack.c.l.b16 %v1780
  %v1879 = vunpack.c.l.b16 %v1781
  %v1880 = vunpack.c.l.b16 %v1782
  %v1881 = vunpack.c.l.b16 %v1783
  %v1882 = vunpack.c.l.b16 %v1784
  %v1883 = vunpack.c.l.b16 %v1785
  %v1884 = vunpack.c.l.b16 %v1786
  %v1885 = vunpack.c.l.b16 %v1787
  %v1886 = vunpack.c.l.b16 %v1788
  %v1887 = vunpack.c.l.b16 %v1789
  %v1888 = vunpack.c.l.b16 %v1790
  %v1889 = vunpack.c.l.b16 %v1791
  %v1890 = vunpack.c.l.b16 %v1792
  %v1891 = vunpack.c.l.b16 %v1793
  %v1892 = vunpack.c.l.b16 %v1794
  %v1893 = vunpack.c.l.b16 %v1795
  %v1894 = vunpack.c.l.b16 %v1796
  %v1895 = vunpack.c.l.b16 %v1797
  %v1896 = vunpack.c.l.b16 %v1798
  %v1897 = vunpack.c.l.b16 %v1799
  %v1898 = vunpack.c.l.b16 %v1800
  %v1899 = vunpack.c.l.b16 %v1801
  %v1900 = vunpack.c.l.b16 %v1802
  %v1901 = vunpack.c.l.b16 %v1803
  %v1902 = vunpack.c.l.b16 %v1804
  %v1903 = vunpack.c.l.b16 %v1805
  %v1904 = vunpack.c.l.b16 %v1806
  %v1905 = vunpack.c.l.b16 %v1807
  %v1906 = vunpack.c.l.b16 %v1808
  %v1907 = vunpack.c.l.b16 %v1809
  %v1908 = vunpack.c.l.b16 %v1810
  %v1909 = vunpack.c.l.b16 %v1811
  %v1910 = vunpack.c.l.b16 %v1812
  %v1911 = vunpack.c.l.b16 %v1813
  %v1912 = vunpack.c.l.b16 %v1814
  %v1913 = vunpack.c.l.b16 %v1815
  %v1914 = vunpack.c.l.b16 %v1816
  %v1915 = vunpack.c.l.b16 %v1817
  %v1916 = vunpack.c.l.b16 %v1818
  %v1917 = vunpack.c.l.b16 %v1819
  %v1918 = vunpack.c.l.b16 %v1820
  %v1919 = vunpack.c.l.b16 %v1821
  %v1920 = vunpack.c.l.b16 %v1822
  %v1921 = vunpack.c.l.b16 %v1823
  %v1922 = vunpack.c.l.b16 %v1824
  %v1923 = vunpack.c.l.b16 %v1825
  %v1924 = vunpack.c.l.b16 %v1826
  %v1925 = vunpack.c.l.b16 %v1827
  %v1926 = vpack.c.b16 %v1878, %v1877
  %v1927 = vpack.c.b16 %v1880, %v1879
  %v1928 = vpack.c.b16 %v1882, %v1881
  %v1929 = vpack.c.b16 %v1884, %v1883
  %v1930 = vpack.c.b16 %v1886, %v1885
  %v1931 = vpack.c.b16 %v1888, %v1887
  %v1932 = vpack.c.b16 %v1890, %v1889
  %v1933 = vpack.c.b16 %v1892, %v1891
  %v1934 = vpack.c.b16 %v1894, %v1893
  %v1935 = vpack.c.b16 %v1896, %v1895
  %v1936 = vpack.c.b16 %v1898, %v1897
  %v1937 = vpack.c.b16 %v1900, %v1899
  %v1938 = vpack.c.b16 %v1902, %v1901
  %v1939 = vpack.c.b16 %v1904, %v1903
  %v1940 = vpack.c.b16 %v1906, %v1905
  %v1941 = vpack.c.b16 %v1908, %v1907
  %v1942 = vpack.c.b16 %v1910, %v1909
  %v1943 = vpack.c.b16 %v1912, %v1911
  %v1944 = vpack.c.b16 %v1914, %v1913
  %v1945 = vpack.c.b16 %v1916, %v1915
  %v1946 = vpack.c.b16 %v1918, %v1917
  %v1947 = vpack.c.b16 %v1920, %v1919
  %v1948 = vpack.c.b16 %v1922, %v1921
  %v1949 = vpack.c.b16 %v1924, %v1923
  %v1950 = vpack.c.b16 %v1925, %v1925
  %v1952 = vsel %vm209, %v1926, 0
  %v1955 = vsel %vm209, %v1927, 0
  %v1958 = vsel %vm209, %v1928, 0
  %v1961 = vsel %vm209, %v1929, 0
  %v1964 = vsel %vm209, %v1930, 0
  %v1967 = vsel %vm209, %v1931, 0
  %v1970 = vsel %vm209, %v1932, 0
  %v1973 = vsel %vm209, %v1933, 0
  %v1976 = vsel %vm209, %v1934, 0
  %v1979 = vsel %vm209, %v1935, 0
  %v1982 = vsel %vm209, %v1936, 0
  %v1985 = vsel %vm209, %v1937, 0
  %v1988 = vsel %vm209, %v1938, 0
  %v1991 = vsel %vm209, %v1939, 0
  %v1994 = vsel %vm209, %v1940, 0
  %v1997 = vsel %vm209, %v1941, 0
  %v2000 = vsel %vm209, %v1942, 0
  %v2003 = vsel %vm209, %v1943, 0
  %v2006 = vsel %vm209, %v1944, 0
  %v2009 = vsel %vm209, %v1945, 0
  %v2012 = vsel %vm209, %v1946, 0
  %v2015 = vsel %vm209, %v1947, 0
  %v2018 = vsel %vm209, %v1948, 0
  %v2021 = vsel %vm209, %v1949, 0
  %v2024 = vsel %vm209, %v1950, 0
  %2026 = vmatprep.subr.bf16.mxu0 0
  %2027 = vmatpush1.bf16.msra.mxu0 %v206
  %2028 = vmatprep.subr.bf16.mxu0 0
  %2029 = vmatpush1.bf16.msra.mxu0 %v290
  %2030 = vmatprep.subr.bf16.mxu0 0
  %2031 = vmatpush1.bf16.msra.mxu0 0
  %2032 = vmatprep.subr.bf16.mxu0 0
  %2033 = vmatpush1.bf16.msra.mxu0 0
  %2034 = vmatprep.subr.bf16.mxu0 0
  %2035 = vmatpush1.bf16.msra.mxu0 0
  %2036 = vmatprep.subr.bf16.mxu0 0
  %2037 = vmatpush1.bf16.msra.mxu0 0
  %2038 = vmatprep.subr.bf16.mxu0 0
  %2039 = vmatpush1.bf16.msra.mxu0 0
  %2040 = vmatprep.subr.bf16.mxu0 0
  %2041 = vmatpush1.bf16.msra.mxu0 0
  %2042 = vmatprep.subr.bf16.mxu0 0
  %2043 = vmatpush1.bf16.msra.mxu0 0
  %2044 = vmatprep.subr.bf16.mxu0 0
  %2045 = vmatpush1.bf16.msra.mxu0 0
  %2046 = vmatprep.subr.bf16.mxu0 0
  %2047 = vmatpush1.bf16.msra.mxu0 0
  %2048 = vmatprep.subr.bf16.mxu0 0
  %2049 = vmatpush1.bf16.msra.mxu0 0
  %2050 = vmatprep.subr.bf16.mxu0 0
  %2051 = vmatpush1.bf16.msra.mxu0 0
  %2052 = vmatprep.subr.bf16.mxu0 0
  %2053 = vmatpush1.bf16.msra.mxu0 0
  %2054 = vmatprep.subr.bf16.mxu0 0
  %2055 = vmatpush1.bf16.msra.mxu0 0
  %2056 = vmatprep.subr.bf16.mxu0 0
  %2057 = vmatpush1.bf16.msra.mxu0 0
  %2058 = vmatprep.mubr.bf16.mxu0 0
  %2059 = vmatmul.mubr.bf16.gmra.mrb[0].mxu0 %v1952
  %v2060 = vpop.f32.mrb[0].mxu0
  %v2061 = vadd.f32 %v73, %v2060
  %v2062 = vpop.f32.mrb[0].mxu0
  %v2063 = vpop.f32.mrb[0].mxu0
  %v2064 = vadd.f32 %v73, %v2063
  %v2065 = vpop.f32.mrb[0].mxu0
  %2066 = vmatprep.mubr.bf16.mxu0 0
  %2067 = vmatmul.mubr.bf16.gmra.mrb[0].mxu0 %v1955
  %v2068 = vpop.f32.mrb[0].mxu0
  %v2069 = vadd.f32 %v73, %v2068
  %v2070 = vpop.f32.mrb[0].mxu0
  %v2071 = vpop.f32.mrb[0].mxu0
  %v2072 = vadd.f32 %v73, %v2071
  %v2073 = vpop.f32.mrb[0].mxu0
  %2074 = vmatprep.mubr.bf16.mxu0 0
  %2075 = vmatmul.mubr.bf16.gmra.mrb[0].mxu0 %v1958
  %v2076 = vpop.f32.mrb[0].mxu0
  %v2077 = vadd.f32 %v73, %v2076
  %v2078 = vpop.f32.mrb[0].mxu0
  %v2079 = vpop.f32.mrb[0].mxu0
  %v2080 = vadd.f32 %v73, %v2079
  %v2081 = vpop.f32.mrb[0].mxu0
  %2082 = vmatprep.mubr.bf16.mxu0 0
  %2083 = vmatmul.mubr.bf16.gmra.mrb[0].mxu0 %v1961
  %v2084 = vpop.f32.mrb[0].mxu0
  %v2085 = vadd.f32 %v73, %v2084
  %v2086 = vpop.f32.mrb[0].mxu0
  %v2087 = vpop.f32.mrb[0].mxu0
  %v2088 = vadd.f32 %v73, %v2087
  %v2089 = vpop.f32.mrb[0].mxu0
  %2090 = vmatprep.mubr.bf16.mxu0 0
  %2091 = vmatmul.mubr.bf16.gmra.mrb[0].mxu0 %v1964
  %v2092 = vpop.f32.mrb[0].mxu0
  %v2093 = vadd.f32 %v73, %v2092
  %v2094 = vpop.f32.mrb[0].mxu0
  %v2095 = vpop.f32.mrb[0].mxu0
  %v2096 = vadd.f32 %v73, %v2095
  %v2097 = vpop.f32.mrb[0].mxu0
  %2098 = vmatprep.mubr.bf16.mxu0 0
  %2099 = vmatmul.mubr.bf16.gmra.mrb[0].mxu0 %v1967
  %v2100 = vpop.f32.mrb[0].mxu0
  %v2101 = vadd.f32 %v73, %v2100
  %v2102 = vpop.f32.mrb[0].mxu0
  %v2103 = vpop.f32.mrb[0].mxu0
  %v2104 = vadd.f32 %v73, %v2103
  %v2105 = vpop.f32.mrb[0].mxu0
  %2106 = vmatprep.mubr.bf16.mxu0 0
  %2107 = vmatmul.mubr.bf16.gmra.mrb[0].mxu0 %v1970
  %v2108 = vpop.f32.mrb[0].mxu0
  %v2109 = vadd.f32 %v73, %v2108
  %v2110 = vpop.f32.mrb[0].mxu0
  %v2111 = vpop.f32.mrb[0].mxu0
  %v2112 = vadd.f32 %v73, %v2111
  %v2113 = vpop.f32.mrb[0].mxu0
  %2114 = vmatprep.mubr.bf16.mxu0 0
  %2115 = vmatmul.mubr.bf16.gmra.mrb[0].mxu0 %v1973
  %v2116 = vpop.f32.mrb[0].mxu0
  %v2117 = vadd.f32 %v73, %v2116
  %v2118 = vpop.f32.mrb[0].mxu0
  %v2119 = vpop.f32.mrb[0].mxu0
  %v2120 = vadd.f32 %v73, %v2119
  %v2121 = vpop.f32.mrb[0].mxu0
  %2122 = vmatprep.mubr.bf16.mxu0 0
  %2123 = vmatmul.mubr.bf16.gmra.mrb[0].mxu0 %v1976
  %v2124 = vpop.f32.mrb[0].mxu0
  %v2125 = vadd.f32 %v73, %v2124
  %v2126 = vpop.f32.mrb[0].mxu0
  %v2127 = vpop.f32.mrb[0].mxu0
  %v2128 = vadd.f32 %v73, %v2127
  %v2129 = vpop.f32.mrb[0].mxu0
  %2130 = vmatprep.mubr.bf16.mxu0 0
  %2131 = vmatmul.mubr.bf16.gmra.mrb[0].mxu0 %v1979
  %v2132 = vpop.f32.mrb[0].mxu0
  %v2133 = vadd.f32 %v73, %v2132
  %v2134 = vpop.f32.mrb[0].mxu0
  %v2135 = vpop.f32.mrb[0].mxu0
  %v2136 = vadd.f32 %v73, %v2135
  %v2137 = vpop.f32.mrb[0].mxu0
  %2138 = vmatprep.mubr.bf16.mxu0 0
  %2139 = vmatmul.mubr.bf16.gmra.mrb[0].mxu0 %v1982
  %v2140 = vpop.f32.mrb[0].mxu0
  %v2141 = vadd.f32 %v73, %v2140
  %v2142 = vpop.f32.mrb[0].mxu0
  %v2143 = vpop.f32.mrb[0].mxu0
  %v2144 = vadd.f32 %v73, %v2143
  %v2145 = vpop.f32.mrb[0].mxu0
  %2146 = vmatprep.mubr.bf16.mxu0 0
  %2147 = vmatmul.mubr.bf16.gmra.mrb[0].mxu0 %v1985
  %v2148 = vpop.f32.mrb[0].mxu0
  %v2149 = vadd.f32 %v73, %v2148
  %v2150 = vpop.f32.mrb[0].mxu0
  %v2151 = vpop.f32.mrb[0].mxu0
  %v2152 = vadd.f32 %v73, %v2151
  %v2153 = vpop.f32.mrb[0].mxu0
  %2154 = vmatprep.mubr.bf16.mxu0 0
  %2155 = vmatmul.mubr.bf16.gmra.mrb[0].mxu0 %v1988
  %v2156 = vpop.f32.mrb[0].mxu0
  %v2157 = vadd.f32 %v73, %v2156
  %v2158 = vpop.f32.mrb[0].mxu0
  %v2159 = vpop.f32.mrb[0].mxu0
  %v2160 = vadd.f32 %v73, %v2159
  %v2161 = vpop.f32.mrb[0].mxu0
  %2162 = vmatprep.mubr.bf16.mxu0 0
  %2163 = vmatmul.mubr.bf16.gmra.mrb[0].mxu0 %v1991
  %v2164 = vpop.f32.mrb[0].mxu0
  %v2165 = vadd.f32 %v73, %v2164
  %v2166 = vpop.f32.mrb[0].mxu0
  %v2167 = vpop.f32.mrb[0].mxu0
  %v2168 = vadd.f32 %v73, %v2167
  %v2169 = vpop.f32.mrb[0].mxu0
  %2170 = vmatprep.mubr.bf16.mxu0 0
  %2171 = vmatmul.mubr.bf16.gmra.mrb[0].mxu0 %v1994
  %v2172 = vpop.f32.mrb[0].mxu0
  %v2173 = vadd.f32 %v73, %v2172
  %v2174 = vpop.f32.mrb[0].mxu0
  %v2175 = vpop.f32.mrb[0].mxu0
  %v2176 = vadd.f32 %v73, %v2175
  %v2177 = vpop.f32.mrb[0].mxu0
  %2178 = vmatprep.mubr.bf16.mxu0 0
  %2179 = vmatmul.mubr.bf16.gmra.mrb[0].mxu0 %v1997
  %v2180 = vpop.f32.mrb[0].mxu0
  %v2181 = vadd.f32 %v73, %v2180
  %v2182 = vpop.f32.mrb[0].mxu0
  %v2183 = vpop.f32.mrb[0].mxu0
  %v2184 = vadd.f32 %v73, %v2183
  %v2185 = vpop.f32.mrb[0].mxu0
  %2186 = vmatprep.mubr.bf16.mxu0 0
  %2187 = vmatmul.mubr.bf16.gmra.mrb[0].mxu0 %v2000
  %v2188 = vpop.f32.mrb[0].mxu0
  %v2189 = vadd.f32 %v73, %v2188
  %v2190 = vpop.f32.mrb[0].mxu0
  %v2191 = vpop.f32.mrb[0].mxu0
  %v2192 = vadd.f32 %v73, %v2191
  %v2193 = vpop.f32.mrb[0].mxu0
  %2194 = vmatprep.mubr.bf16.mxu0 0
  %2195 = vmatmul.mubr.bf16.gmra.mrb[0].mxu0 %v2003
  %v2196 = vpop.f32.mrb[0].mxu0
  %v2197 = vadd.f32 %v73, %v2196
  %v2198 = vpop.f32.mrb[0].mxu0
  %v2199 = vpop.f32.mrb[0].mxu0
  %v2200 = vadd.f32 %v73, %v2199
  %v2201 = vpop.f32.mrb[0].mxu0
  %2202 = vmatprep.mubr.bf16.mxu0 0
  %2203 = vmatmul.mubr.bf16.gmra.mrb[0].mxu0 %v2006
  %v2204 = vpop.f32.mrb[0].mxu0
  %v2205 = vadd.f32 %v73, %v2204
  %v2206 = vpop.f32.mrb[0].mxu0
  %v2207 = vpop.f32.mrb[0].mxu0
  %v2208 = vadd.f32 %v73, %v2207
  %v2209 = vpop.f32.mrb[0].mxu0
  %2210 = vmatprep.mubr.bf16.mxu0 0
  %2211 = vmatmul.mubr.bf16.gmra.mrb[0].mxu0 %v2009
  %v2212 = vpop.f32.mrb[0].mxu0
  %v2213 = vadd.f32 %v73, %v2212
  %v2214 = vpop.f32.mrb[0].mxu0
  %v2215 = vpop.f32.mrb[0].mxu0
  %v2216 = vadd.f32 %v73, %v2215
  %v2217 = vpop.f32.mrb[0].mxu0
  %2218 = vmatprep.mubr.bf16.mxu0 0
  %2219 = vmatmul.mubr.bf16.gmra.mrb[0].mxu0 %v2012
  %v2220 = vpop.f32.mrb[0].mxu0
  %v2221 = vadd.f32 %v73, %v2220
  %v2222 = vpop.f32.mrb[0].mxu0
  %v2223 = vpop.f32.mrb[0].mxu0
  %v2224 = vadd.f32 %v73, %v2223
  %v2225 = vpop.f32.mrb[0].mxu0
  %2226 = vmatprep.mubr.bf16.mxu0 0
  %2227 = vmatmul.mubr.bf16.gmra.mrb[0].mxu0 %v2015
  %v2228 = vpop.f32.mrb[0].mxu0
  %v2229 = vadd.f32 %v73, %v2228
  %v2230 = vpop.f32.mrb[0].mxu0
  %v2231 = vpop.f32.mrb[0].mxu0
  %v2232 = vadd.f32 %v73, %v2231
  %v2233 = vpop.f32.mrb[0].mxu0
  %2234 = vmatprep.mubr.bf16.mxu0 0
  %2235 = vmatmul.mubr.bf16.gmra.mrb[0].mxu0 %v2018
  %v2236 = vpop.f32.mrb[0].mxu0
  %v2237 = vadd.f32 %v73, %v2236
  %v2238 = vpop.f32.mrb[0].mxu0
  %v2239 = vpop.f32.mrb[0].mxu0
  %v2240 = vadd.f32 %v73, %v2239
  %v2241 = vpop.f32.mrb[0].mxu0
  %2242 = vmatprep.mubr.bf16.mxu0 0
  %2243 = vmatmul.mubr.bf16.gmra.mrb[0].mxu0 %v2021
  %v2244 = vpop.f32.mrb[0].mxu0
  %v2245 = vadd.f32 %v73, %v2244
  %v2246 = vpop.f32.mrb[0].mxu0
  %v2247 = vpop.f32.mrb[0].mxu0
  %v2248 = vadd.f32 %v73, %v2247
  %v2249 = vpop.f32.mrb[0].mxu0
  %2250 = vmatprep.mubr.bf16.mxu0 0
  %2251 = vmatmul.mubr.bf16.gmra.mrb[0].mxu0 %v2024
  %v2252 = vpop.f32.mrb[0].mxu0
  %v2253 = vadd.f32 %v73, %v2252
  %v2254 = vpop.f32.mrb[0].mxu0
  %v2255 = vpop.f32.mrb[0].mxu0
  %v2256 = vpop.f32.mrb[0].mxu0
  %2257 = vdwg.mxu0
  %v2258 = vmax.f32 %v2061, 0.0
  %v2259 = vmax.f32 %v2064, 0.0
  %v2260 = vmax.f32 %v2069, 0.0
  %v2261 = vmax.f32 %v2072, 0.0
  %v2262 = vmax.f32 %v2077, 0.0
  %v2263 = vmax.f32 %v2080, 0.0
  %v2264 = vmax.f32 %v2085, 0.0
  %v2265 = vmax.f32 %v2088, 0.0
  %v2266 = vmax.f32 %v2093, 0.0
  %v2267 = vmax.f32 %v2096, 0.0
  %v2268 = vmax.f32 %v2101, 0.0
  %v2269 = vmax.f32 %v2104, 0.0
  %v2270 = vmax.f32 %v2109, 0.0
  %v2271 = vmax.f32 %v2112, 0.0
  %v2272 = vmax.f32 %v2117, 0.0
  %v2273 = vmax.f32 %v2120, 0.0
  %v2274 = vmax.f32 %v2125, 0.0
  %v2275 = vmax.f32 %v2128, 0.0
  %v2276 = vmax.f32 %v2133, 0.0
  %v2277 = vmax.f32 %v2136, 0.0
  %v2278 = vmax.f32 %v2141, 0.0
  %v2279 = vmax.f32 %v2144, 0.0
  %v2280 = vmax.f32 %v2149, 0.0
  %v2281 = vmax.f32 %v2152, 0.0
  %v2282 = vmax.f32 %v2157, 0.0
  %v2283 = vmax.f32 %v2160, 0.0
  %v2284 = vmax.f32 %v2165, 0.0
  %v2285 = vmax.f32 %v2168, 0.0
  %v2286 = vmax.f32 %v2173, 0.0
  %v2287 = vmax.f32 %v2176, 0.0
  %v2288 = vmax.f32 %v2181, 0.0
  %v2289 = vmax.f32 %v2184, 0.0
  %v2290 = vmax.f32 %v2189, 0.0
  %v2291 = vmax.f32 %v2192, 0.0
  %v2292 = vmax.f32 %v2197, 0.0
  %v2293 = vmax.f32 %v2200, 0.0
  %v2294 = vmax.f32 %v2205, 0.0
  %v2295 = vmax.f32 %v2208, 0.0
  %v2296 = vmax.f32 %v2213, 0.0
  %v2297 = vmax.f32 %v2216, 0.0
  %v2298 = vmax.f32 %v2221, 0.0
  %v2299 = vmax.f32 %v2224, 0.0
  %v2300 = vmax.f32 %v2229, 0.0
  %v2301 = vmax.f32 %v2232, 0.0
  %v2302 = vmax.f32 %v2237, 0.0
  %v2303 = vmax.f32 %v2240, 0.0
  %v2304 = vmax.f32 %v2245, 0.0
  %v2305 = vmax.f32 %v2248, 0.0
  %v2306 = vmax.f32 %v2253, 0.0
  %v2307 = vadd.f32 %v1729, %v2258
  %v2308 = vadd.f32 %v1730, %v2259
  %v2309 = vadd.f32 %v1731, %v2260
  %v2310 = vadd.f32 %v1732, %v2261
  %v2311 = vadd.f32 %v1733, %v2262
  %v2312 = vadd.f32 %v1734, %v2263
  %v2313 = vadd.f32 %v1735, %v2264
  %v2314 = vadd.f32 %v1736, %v2265
  %v2315 = vadd.f32 %v1737, %v2266
  %v2316 = vadd.f32 %v1738, %v2267
  %v2317 = vadd.f32 %v1739, %v2268
  %v2318 = vadd.f32 %v1740, %v2269
  %v2319 = vadd.f32 %v1741, %v2270
  %v2320 = vadd.f32 %v1742, %v2271
  %v2321 = vadd.f32 %v1743, %v2272
  %v2322 = vadd.f32 %v1744, %v2273
  %v2323 = vadd.f32 %v1745, %v2274
  %v2324 = vadd.f32 %v1746, %v2275
  %v2325 = vadd.f32 %v1747, %v2276
  %v2326 = vadd.f32 %v1748, %v2277
  %v2327 = vadd.f32 %v1749, %v2278
  %v2328 = vadd.f32 %v1750, %v2279
  %v2329 = vadd.f32 %v1751, %v2280
  %v2330 = vadd.f32 %v1752, %v2281
  %v2331 = vadd.f32 %v1753, %v2282
  %v2332 = vadd.f32 %v1754, %v2283
  %v2333 = vadd.f32 %v1755, %v2284
  %v2334 = vadd.f32 %v1756, %v2285
  %v2335 = vadd.f32 %v1757, %v2286
  %v2336 = vadd.f32 %v1758, %v2287
  %v2337 = vadd.f32 %v1759, %v2288
  %v2338 = vadd.f32 %v1760, %v2289
  %v2339 = vadd.f32 %v1761, %v2290
  %v2340 = vadd.f32 %v1762, %v2291
  %v2341 = vadd.f32 %v1763, %v2292
  %v2342 = vadd.f32 %v1764, %v2293
  %v2343 = vadd.f32 %v1765, %v2294
  %v2344 = vadd.f32 %v1766, %v2295
  %v2345 = vadd.f32 %v1767, %v2296
  %v2346 = vadd.f32 %v1768, %v2297
  %v2347 = vadd.f32 %v1769, %v2298
  %v2348 = vadd.f32 %v1770, %v2299
  %v2349 = vadd.f32 %v1771, %v2300
  %v2350 = vadd.f32 %v1772, %v2301
  %v2351 = vadd.f32 %v1773, %v2302
  %v2352 = vadd.f32 %v1774, %v2303
  %v2353 = vadd.f32 %v1775, %v2304
  %v2354 = vadd.f32 %v1776, %v2305
  %v2355 = vadd.f32 %v1777, %v2306
  %v2356 = vpack.c.bf16 %v2308, %v2307
  %v2357 = vpack.c.bf16 %v2310, %v2309
  %v2358 = vpack.c.bf16 %v2312, %v2311
  %v2359 = vpack.c.bf16 %v2314, %v2313
  %v2360 = vpack.c.bf16 %v2316, %v2315
  %v2361 = vpack.c.bf16 %v2318, %v2317
  %v2362 = vpack.c.bf16 %v2320, %v2319
  %v2363 = vpack.c.bf16 %v2322, %v2321
  %v2364 = vpack.c.bf16 %v2324, %v2323
  %v2365 = vpack.c.bf16 %v2326, %v2325
  %v2366 = vpack.c.bf16 %v2328, %v2327
  %v2367 = vpack.c.bf16 %v2330, %v2329
  %v2368 = vpack.c.bf16 %v2332, %v2331
  %v2369 = vpack.c.bf16 %v2334, %v2333
  %v2370 = vpack.c.bf16 %v2336, %v2335
  %v2371 = vpack.c.bf16 %v2338, %v2337
  %v2372 = vpack.c.bf16 %v2340, %v2339
  %v2373 = vpack.c.bf16 %v2342, %v2341
  %v2374 = vpack.c.bf16 %v2344, %v2343
  %v2375 = vpack.c.bf16 %v2346, %v2345
  %v2376 = vpack.c.bf16 %v2348, %v2347
  %v2377 = vpack.c.bf16 %v2350, %v2349
  %v2378 = vpack.c.bf16 %v2352, %v2351
  %v2379 = vpack.c.bf16 %v2354, %v2353
  %v2380 = vpack.c.bf16 %v2355, %v2355
  %v2406 = vunpack.c.l.b16 %v2356
  %v2407 = vunpack.c.h.b16 %v2356
  %v2408 = vunpack.c.l.b16 %v2357
  %v2409 = vunpack.c.h.b16 %v2357
  %v2410 = vunpack.c.l.b16 %v2358
  %v2411 = vunpack.c.h.b16 %v2358
  %v2412 = vunpack.c.l.b16 %v2359
  %v2413 = vunpack.c.h.b16 %v2359
  %v2414 = vunpack.c.l.b16 %v2360
  %v2415 = vunpack.c.h.b16 %v2360
  %v2416 = vunpack.c.l.b16 %v2361
  %v2417 = vunpack.c.h.b16 %v2361
  %v2418 = vunpack.c.l.b16 %v2362
  %v2419 = vunpack.c.h.b16 %v2362
  %v2420 = vunpack.c.l.b16 %v2363
  %v2421 = vunpack.c.h.b16 %v2363
  %v2422 = vunpack.c.l.b16 %v2364
  %v2423 = vunpack.c.h.b16 %v2364
  %v2424 = vunpack.c.l.b16 %v2365
  %v2425 = vunpack.c.h.b16 %v2365
  %v2426 = vunpack.c.l.b16 %v2366
  %v2427 = vunpack.c.h.b16 %v2366
  %v2428 = vunpack.c.l.b16 %v2367
  %v2429 = vunpack.c.h.b16 %v2367
  %v2430 = vunpack.c.l.b16 %v2368
  %v2431 = vunpack.c.h.b16 %v2368
  %v2432 = vunpack.c.l.b16 %v2369
  %v2433 = vunpack.c.h.b16 %v2369
  %v2434 = vunpack.c.l.b16 %v2370
  %v2435 = vunpack.c.h.b16 %v2370
  %v2436 = vunpack.c.l.b16 %v2371
  %v2437 = vunpack.c.h.b16 %v2371
  %v2438 = vunpack.c.l.b16 %v2372
  %v2439 = vunpack.c.h.b16 %v2372
  %v2440 = vunpack.c.l.b16 %v2373
  %v2441 = vunpack.c.h.b16 %v2373
  %v2442 = vunpack.c.l.b16 %v2374
  %v2443 = vunpack.c.h.b16 %v2374
  %v2444 = vunpack.c.l.b16 %v2375
  %v2445 = vunpack.c.h.b16 %v2375
  %v2446 = vunpack.c.l.b16 %v2376
  %v2447 = vunpack.c.h.b16 %v2376
  %v2448 = vunpack.c.l.b16 %v2377
  %v2449 = vunpack.c.h.b16 %v2377
  %v2450 = vunpack.c.l.b16 %v2378
  %v2451 = vunpack.c.h.b16 %v2378
  %v2452 = vunpack.c.l.b16 %v2379
  %v2453 = vunpack.c.h.b16 %v2379
  %v2454 = vunpack.c.l.b16 %v2380
  %v2455 = vpack.c.b16 %v2406, %v2406
  %v2456 = vpack.c.b16 %v2407, %v2407
  %v2457 = vpack.c.b16 %v2408, %v2408
  %v2458 = vpack.c.b16 %v2409, %v2409
  %v2459 = vpack.c.b16 %v2410, %v2410
  %v2460 = vpack.c.b16 %v2411, %v2411
  %v2461 = vpack.c.b16 %v2412, %v2412
  %v2462 = vpack.c.b16 %v2413, %v2413
  %v2463 = vpack.c.b16 %v2414, %v2414
  %v2464 = vpack.c.b16 %v2415, %v2415
  %v2465 = vpack.c.b16 %v2416, %v2416
  %v2466 = vpack.c.b16 %v2417, %v2417
  %v2467 = vpack.c.b16 %v2418, %v2418
  %v2468 = vpack.c.b16 %v2419, %v2419
  %v2469 = vpack.c.b16 %v2420, %v2420
  %v2470 = vpack.c.b16 %v2421, %v2421
  %v2471 = vpack.c.b16 %v2422, %v2422
  %v2472 = vpack.c.b16 %v2423, %v2423
  %v2473 = vpack.c.b16 %v2424, %v2424
  %v2474 = vpack.c.b16 %v2425, %v2425
  %v2475 = vpack.c.b16 %v2426, %v2426
  %v2476 = vpack.c.b16 %v2427, %v2427
  %v2477 = vpack.c.b16 %v2428, %v2428
  %v2478 = vpack.c.b16 %v2429, %v2429
  %v2479 = vpack.c.b16 %v2430, %v2430
  %v2480 = vpack.c.b16 %v2431, %v2431
  %v2481 = vpack.c.b16 %v2432, %v2432
  %v2482 = vpack.c.b16 %v2433, %v2433
  %v2483 = vpack.c.b16 %v2434, %v2434
  %v2484 = vpack.c.b16 %v2435, %v2435
  %v2485 = vpack.c.b16 %v2436, %v2436
  %v2486 = vpack.c.b16 %v2437, %v2437
  %v2487 = vpack.c.b16 %v2438, %v2438
  %v2488 = vpack.c.b16 %v2439, %v2439
  %v2489 = vpack.c.b16 %v2440, %v2440
  %v2490 = vpack.c.b16 %v2441, %v2441
  %v2491 = vpack.c.b16 %v2442, %v2442
  %v2492 = vpack.c.b16 %v2443, %v2443
  %v2493 = vpack.c.b16 %v2444, %v2444
  %v2494 = vpack.c.b16 %v2445, %v2445
  %v2495 = vpack.c.b16 %v2446, %v2446
  %v2496 = vpack.c.b16 %v2447, %v2447
  %v2497 = vpack.c.b16 %v2448, %v2448
  %v2498 = vpack.c.b16 %v2449, %v2449
  %v2499 = vpack.c.b16 %v2450, %v2450
  %v2500 = vpack.c.b16 %v2451, %v2451
  %v2501 = vpack.c.b16 %v2452, %v2452
  %v2502 = vpack.c.b16 %v2453, %v2453
  %v2503 = vpack.c.b16 %v2454, %v2454
  %vm2553 = vcmask 44032
  %2554 = vst.msk [vmem:[%s3] sm:$0xf] %vm2553, %v2455
  %2555 = vst.msk [vmem:[%s3 + $0x4] sm:$0xf] %vm2553, %v2456
  %2556 = vst.msk [vmem:[%s3 + $0x8] sm:$0xf] %vm2553, %v2457
  %2557 = vst.msk [vmem:[%s3 + $0xc] sm:$0xf] %vm2553, %v2458
  %2558 = vst.msk [vmem:[%s3 + $0x10] sm:$0xf] %vm2553, %v2459
  %2559 = vst.msk [vmem:[%s3 + $0x14] sm:$0xf] %vm2553, %v2460
  %2560 = vst.msk [vmem:[%s3 + $0x18] sm:$0xf] %vm2553, %v2461
  %2561 = vst.msk [vmem:[%s3 + $0x1c] sm:$0xf] %vm2553, %v2462
  %2562 = vst.msk [vmem:[%s3 + $0x20] sm:$0xf] %vm2553, %v2463
  %2563 = vst.msk [vmem:[%s3 + $0x24] sm:$0xf] %vm2553, %v2464
  %2564 = vst.msk [vmem:[%s3 + $0x28] sm:$0xf] %vm2553, %v2465
  %2565 = vst.msk [vmem:[%s3 + $0x2c] sm:$0xf] %vm2553, %v2466
  %2566 = vst.msk [vmem:[%s3 + $0x30] sm:$0xf] %vm2553, %v2467
  %2567 = vst.msk [vmem:[%s3 + $0x34] sm:$0xf] %vm2553, %v2468
  %2568 = vst.msk [vmem:[%s3 + $0x38] sm:$0xf] %vm2553, %v2469
  %2569 = vst.msk [vmem:[%s3 + $0x3c] sm:$0xf] %vm2553, %v2470
  %2570 = vst.msk [vmem:[%s3 + $0x40] sm:$0xf] %vm2553, %v2471
  %2571 = vst.msk [vmem:[%s3 + $0x44] sm:$0xf] %vm2553, %v2472
  %2572 = vst.msk [vmem:[%s3 + $0x48] sm:$0xf] %vm2553, %v2473
  %2573 = vst.msk [vmem:[%s3 + $0x4c] sm:$0xf] %vm2553, %v2474
  %2574 = vst.msk [vmem:[%s3 + $0x50] sm:$0xf] %vm2553, %v2475
  %2575 = vst.msk [vmem:[%s3 + $0x54] sm:$0xf] %vm2553, %v2476
  %2576 = vst.msk [vmem:[%s3 + $0x58] sm:$0xf] %vm2553, %v2477
  %2577 = vst.msk [vmem:[%s3 + $0x5c] sm:$0xf] %vm2553, %v2478
  %2578 = vst.msk [vmem:[%s3 + $0x60] sm:$0xf] %vm2553, %v2479
  %2579 = vst.msk [vmem:[%s3 + $0x64] sm:$0xf] %vm2553, %v2480
  %2580 = vst.msk [vmem:[%s3 + $0x68] sm:$0xf] %vm2553, %v2481
  %2581 = vst.msk [vmem:[%s3 + $0x6c] sm:$0xf] %vm2553, %v2482
  %2582 = vst.msk [vmem:[%s3 + $0x70] sm:$0xf] %vm2553, %v2483
  %2583 = vst.msk [vmem:[%s3 + $0x74] sm:$0xf] %vm2553, %v2484
  %2584 = vst.msk [vmem:[%s3 + $0x78] sm:$0xf] %vm2553, %v2485
  %2585 = vst.msk [vmem:[%s3 + $0x7c] sm:$0xf] %vm2553, %v2486
  %2586 = vst.msk [vmem:[%s3 + $0x80] sm:$0xf] %vm2553, %v2487
  %2587 = vst.msk [vmem:[%s3 + $0x84] sm:$0xf] %vm2553, %v2488
  %2588 = vst.msk [vmem:[%s3 + $0x88] sm:$0xf] %vm2553, %v2489
  %2589 = vst.msk [vmem:[%s3 + $0x8c] sm:$0xf] %vm2553, %v2490
  %2590 = vst.msk [vmem:[%s3 + $0x90] sm:$0xf] %vm2553, %v2491
  %2591 = vst.msk [vmem:[%s3 + $0x94] sm:$0xf] %vm2553, %v2492
  %2592 = vst.msk [vmem:[%s3 + $0x98] sm:$0xf] %vm2553, %v2493
  %2593 = vst.msk [vmem:[%s3 + $0x9c] sm:$0xf] %vm2553, %v2494
  %2594 = vst.msk [vmem:[%s3 + $0xa0] sm:$0xf] %vm2553, %v2495
  %2595 = vst.msk [vmem:[%s3 + $0xa4] sm:$0xf] %vm2553, %v2496
  %2596 = vst.msk [vmem:[%s3 + $0xa8] sm:$0xf] %vm2553, %v2497
  %2597 = vst.msk [vmem:[%s3 + $0xac] sm:$0xf] %vm2553, %v2498
  %2598 = vst.msk [vmem:[%s3 + $0xb0] sm:$0xf] %vm2553, %v2499
  %2599 = vst.msk [vmem:[%s3 + $0xb4] sm:$0xf] %vm2553, %v2500
  %2600 = vst.msk [vmem:[%s3 + $0xb8] sm:$0xf] %vm2553, %v2501
  %2601 = vst.msk [vmem:[%s3 + $0xbc] sm:$0xf] %vm2553, %v2502
  %2602 = vst.msk [vmem:[%s3 + $0xc0] sm:$0xf] %vm2553, %v2503
  // Predicated region
  $region14: #{lenet_forward.3} parent=0 // pred_check
    _
  $region15: #{lenet_forward.3} parent=0 // pred_check_branch
    %2604 = sbr.rel (0) target = $region17
  $region16: #{lenet_forward.3} parent=0 // pred_region
    _
  $region17: #{lenet_forward.3} parent=0 // pred_fallthru
    _
  // Predicated region
  $region18: #{lenet_forward.3} parent=0 // pred_check
    _
  $region19: #{lenet_forward.3} parent=0 // pred_check_branch
    %2606 = sbr.rel (0) target = $region21
  $region20: #{lenet_forward.3} parent=0 // pred_region
    _
  $region21: #{lenet_forward.3} parent=0 // pred_fallthru
    _

// kernel: lenet_forward.4
$region0: #{lenet_forward.4}
  #allocation0 [shape = 'u32[]', space=smem, size = 0x4, offset = 0x4, fixed_abs, tag = 'smem constant byte address 0x4 - core index']
  #allocation1 [shape = 'u32[144,128]{1,0:T(1,128)}', space=vmem, size = 0x12000, scoped, tag = 'internal scratch']
  %s0 = inlined_call_operand.vmem [shape: bf16[4,50,150], index: 0, kind: input, shape index: {}]
  %s1 = inlined_call_operand.vmem [shape: bf16[150,16], index: 1, kind: input, shape index: {}]
  %s2 = inlined_call_operand.vmem [shape: f32[1,16], index: 2, kind: input, shape index: {}]
  %s3 = inlined_call_operand.vmem [shape: bf16[50,16], index: 3, kind: output, shape index: {}]
  %s4 = sld [smem:[#allocation0]]
  $region22: #{lenet_forward.4} parent=0
    _
  %s6 = ssub.s32 1, %s4
  %s7 = scalar_select 0, %s6, %s4
  // Predicated region
  $region2: #{lenet_forward.4} parent=0 // pred_check
    _
  $region3: #{lenet_forward.4} parent=0 // pred_check_branch
    %9 = sbr.rel (0) target = $region5
  $region4: #{lenet_forward.4} parent=0 // pred_region
    _
  $region5: #{lenet_forward.4} parent=0 // pred_fallthru
    _
  // Predicated region
  $region6: #{lenet_forward.4} parent=0 // pred_check
    _
  $region7: #{lenet_forward.4} parent=0 // pred_check_branch
    %11 = sbr.rel (0) target = $region9
  $region8: #{lenet_forward.4} parent=0 // pred_region
    _
  $region9: #{lenet_forward.4} parent=0 // pred_fallthru
    _
  // Predicated region
  $region10: #{lenet_forward.4} parent=0 // pred_check
    _
  $region11: #{lenet_forward.4} parent=0 // pred_check_branch
    %13 = sbr.rel (0) target = $region13
  $region12: #{lenet_forward.4} parent=0 // pred_region
    _
  $region13: #{lenet_forward.4} parent=0 // pred_fallthru
    _
  %v15 = vld [vmem:[%s1] sm:$0xf]
  %v16 = vld [vmem:[%s1 + $0x4] sm:$0xf]
  %v17 = vld [vmem:[%s1 + $0x8] sm:$0xf]
  %v18 = vld [vmem:[%s1 + $0xc] sm:$0xf]
  %v19 = vld [vmem:[%s1 + $0x10] sm:$0xf]
  %v20 = vld [vmem:[%s1 + $0x14] sm:$0xf]
  %v21 = vld [vmem:[%s1 + $0x18] sm:$0xf]
  %v22 = vld [vmem:[%s1 + $0x1c] sm:$0xf]
  %v23 = vld [vmem:[%s1 + $0x20] sm:$0xf]
  %v24 = vld [vmem:[%s1 + $0x24] sm:$0xf]
  %v25 = vld [vmem:[%s1 + $0x28] sm:$0xf]
  %v26 = vld [vmem:[%s1 + $0x2c] sm:$0xf]
  %v27 = vld [vmem:[%s1 + $0x30] sm:$0xf]
  %v28 = vld [vmem:[%s1 + $0x34] sm:$0xf]
  %v29 = vld [vmem:[%s1 + $0x38] sm:$0xf]
  %v30 = vld [vmem:[%s1 + $0x3c] sm:$0xf]
  %v31 = vld [vmem:[%s1 + $0x40] sm:$0xf]
  %v32 = vld [vmem:[%s1 + $0x44] sm:$0xf]
  %v33 = vld [vmem:[%s1 + $0x48] sm:$0x7]
  %v34 = vld [vmem:[%s2] sm:$0x1]
  %v35 = vld [vmem:[%s0] sm:$0xff]
  %v36 = vld [vmem:[%s0 + $0x8] sm:$0xff]
  %v37 = vld [vmem:[%s0 + $0x10] sm:$0xff]
  %v38 = vld [vmem:[%s0 + $0x18] sm:$0xff]
  %v39 = vld [vmem:[%s0 + $0x20] sm:$0xff]
  %v40 = vld [vmem:[%s0 + $0x28] sm:$0xff]
  %v41 = vld [vmem:[%s0 + $0x30] sm:$0x11]
  %v43 = vlaneseq
  %v44 = vshrl.u32 %v43, 7
  %v45 = vsub.s32 0, %v44
  %v46 = vrot.slane %v34, %v45
  %v55 = vunpack.c.l.b16 %v35
  %v56 = vunpack.c.h.b16 %v35
  %v57 = vunpack.c.l.b16 %v36
  %v58 = vunpack.c.h.b16 %v36
  %v59 = vunpack.c.l.b16 %v37
  %v60 = vunpack.c.h.b16 %v37
  %v61 = vunpack.c.l.b16 %v38
  %v62 = vunpack.c.h.b16 %v38
  %v63 = vunpack.c.l.b16 %v39
  %v64 = vunpack.c.h.b16 %v39
  %v65 = vunpack.c.l.b16 %v40
  %v66 = vunpack.c.h.b16 %v40
  %v67 = vunpack.c.l.b16 %v41
  %v68 = vunpack.c.h.b16 %v41
  %v69 = vpack.c.b16 %v57, %v55
  %v70 = vpack.c.b16 %v58, %v56
  %v71 = vpack.c.b16 %v61, %v59
  %v72 = vpack.c.b16 %v62, %v60
  %v73 = vpack.c.b16 %v65, %v63
  %v74 = vpack.c.b16 %v66, %v64
  %v75 = vpack.c.b16 %v67, %v67
  %v76 = vpack.c.b16 %v68, %v68
  %v100 = vunpack.c.l.b16 %v15
  %v101 = vunpack.c.l.b16 %v16
  %v102 = vunpack.c.l.b16 %v17
  %v103 = vunpack.c.l.b16 %v18
  %v104 = vunpack.c.l.b16 %v19
  %v105 = vunpack.c.l.b16 %v20
  %v106 = vunpack.c.l.b16 %v21
  %v107 = vunpack.c.l.b16 %v22
  %v108 = vunpack.c.l.b16 %v23
  %v109 = vunpack.c.l.b16 %v24
  %v110 = vunpack.c.l.b16 %v25
  %v111 = vunpack.c.l.b16 %v26
  %v112 = vunpack.c.l.b16 %v27
  %v113 = vunpack.c.l.b16 %v28
  %v114 = vunpack.c.l.b16 %v29
  %v115 = vunpack.c.l.b16 %v30
  %v116 = vunpack.c.l.b16 %v31
  %v117 = vunpack.c.l.b16 %v32
  %v118 = vunpack.c.l.b16 %v33
  %v119 = vpack.c.b16 %v101, %v100
  %v120 = vpack.c.b16 %v103, %v102
  %v121 = vpack.c.b16 %v105, %v104
  %v122 = vpack.c.b16 %v107, %v106
  %v123 = vpack.c.b16 %v109, %v108
  %v124 = vpack.c.b16 %v111, %v110
  %v125 = vpack.c.b16 %v113, %v112
  %v126 = vpack.c.b16 %v115, %v114
  %v127 = vpack.c.b16 %v117, %v116
  %v128 = vpack.c.b16 %v118, %v118
  %vm138 = vcmask 179200
  %v140 = vsel %vm138, %v70, 0
  %v143 = vsel %vm138, %v72, 0
  %v146 = vsel %vm138, %v74, 0
  %v149 = vsel %vm138, %v76, 0
  %vm151 = vcmask 1042432
  %v153 = vsel %vm151, %v128, 0
  %155 = vmatprep.subr.bf16.mxu0 0
  %156 = vmatpush1.bf16.msra.mxu0 %v119
  %157 = vmatprep.subr.bf16.mxu0 0
  %158 = vmatpush1.bf16.msra.mxu0 %v120
  %159 = vmatprep.subr.bf16.mxu0 0
  %160 = vmatpush1.bf16.msra.mxu0 %v121
  %161 = vmatprep.subr.bf16.mxu0 0
  %162 = vmatpush1.bf16.msra.mxu0 %v122
  %163 = vmatprep.subr.bf16.mxu0 0
  %164 = vmatpush1.bf16.msra.mxu0 %v123
  %165 = vmatprep.subr.bf16.mxu0 0
  %166 = vmatpush1.bf16.msra.mxu0 %v124
  %167 = vmatprep.subr.bf16.mxu0 0
  %168 = vmatpush1.bf16.msra.mxu0 %v125
  %169 = vmatprep.subr.bf16.mxu0 0
  %170 = vmatpush1.bf16.msra.mxu0 %v126
  %171 = vmatprep.subr.bf16.mxu0 0
  %172 = vmatpush1.bf16.msra.mxu0 %v127
  %173 = vmatprep.subr.bf16.mxu0 0
  %174 = vmatpush1.bf16.msra.mxu0 %v153
  %175 = vmatprep.subr.bf16.mxu0 0
  %176 = vmatpush1.bf16.msra.mxu0 0
  %177 = vmatprep.subr.bf16.mxu0 0
  %178 = vmatpush1.bf16.msra.mxu0 0
  %179 = vmatprep.subr.bf16.mxu0 0
  %180 = vmatpush1.bf16.msra.mxu0 0
  %181 = vmatprep.subr.bf16.mxu0 0
  %182 = vmatpush1.bf16.msra.mxu0 0
  %183 = vmatprep.subr.bf16.mxu0 0
  %184 = vmatpush1.bf16.msra.mxu0 0
  %185 = vmatprep.subr.bf16.mxu0 0
  %186 = vmatpush1.bf16.msra.mxu0 0
  %187 = vmatprep.mubr.bf16.mxu0 %v140
  %188 = vmatmul.mubr.bf16.gmra.mrb[0].mxu0 %v69
  %v189 = vpop.f32.mrb[0].mxu0
  %v190 = vadd.f32 %v46, %v189
  %v191 = vpop.f32.mrb[0].mxu0
  %v192 = vpop.f32.mrb[0].mxu0
  %v193 = vadd.f32 %v46, %v192
  %v194 = vpop.f32.mrb[0].mxu0
  %195 = vmatprep.mubr.bf16.mxu0 %v143
  %196 = vmatmul.mubr.bf16.gmra.mrb[0].mxu0 %v71
  %v197 = vpop.f32.mrb[0].mxu0
  %v198 = vadd.f32 %v46, %v197
  %v199 = vpop.f32.mrb[0].mxu0
  %v200 = vpop.f32.mrb[0].mxu0
  %v201 = vadd.f32 %v46, %v200
  %v202 = vpop.f32.mrb[0].mxu0
  %203 = vmatprep.mubr.bf16.mxu0 %v146
  %204 = vmatmul.mubr.bf16.gmra.mrb[0].mxu0 %v73
  %v205 = vpop.f32.mrb[0].mxu0
  %v206 = vadd.f32 %v46, %v205
  %v207 = vpop.f32.mrb[0].mxu0
  %v208 = vpop.f32.mrb[0].mxu0
  %v209 = vadd.f32 %v46, %v208
  %v210 = vpop.f32.mrb[0].mxu0
  %211 = vmatprep.mubr.bf16.mxu0 %v149
  %212 = vmatmul.mubr.bf16.gmra.mrb[0].mxu0 %v75
  %v213 = vpop.f32.mrb[0].mxu0
  %v214 = vadd.f32 %v46, %v213
  %v215 = vpop.f32.mrb[0].mxu0
  %v216 = vpop.f32.mrb[0].mxu0
  %v217 = vpop.f32.mrb[0].mxu0
  %218 = vdwg.mxu0
  %v219 = vmax.f32 %v190, 0.0
  %v220 = vmax.f32 %v193, 0.0
  %v221 = vmax.f32 %v198, 0.0
  %v222 = vmax.f32 %v201, 0.0
  %v223 = vmax.f32 %v206, 0.0
  %v224 = vmax.f32 %v209, 0.0
  %v225 = vmax.f32 %v214, 0.0
  %v226 = vadd.f32 %v219, 0.0
  %v227 = vadd.f32 %v220, 0.0
  %v228 = vadd.f32 %v221, 0.0
  %v229 = vadd.f32 %v222, 0.0
  %v230 = vadd.f32 %v223, 0.0
  %v231 = vadd.f32 %v224, 0.0
  %v232 = vadd.f32 %v225, 0.0
  %s233 = scalar_lea.vmem %s0, 56
  %v234 = vld [vmem:[%s233] sm:$0xff]
  %v235 = vld [vmem:[%s233 + $0x8] sm:$0xff]
  %v236 = vld [vmem:[%s233 + $0x10] sm:$0xff]
  %v237 = vld [vmem:[%s233 + $0x18] sm:$0xff]
  %v238 = vld [vmem:[%s233 + $0x20] sm:$0xff]
  %v239 = vld [vmem:[%s233 + $0x28] sm:$0xff]
  %v240 = vld [vmem:[%s233 + $0x30] sm:$0x11]
  %v248 = vunpack.c.l.b16 %v234
  %v249 = vunpack.c.h.b16 %v234
  %v250 = vunpack.c.l.b16 %v235
  %v251 = vunpack.c.h.b16 %v235
  %v252 = vunpack.c.l.b16 %v236
  %v253 = vunpack.c.h.b16 %v236
  %v254 = vunpack.c.l.b16 %v237
  %v255 = vunpack.c.h.b16 %v237
  %v256 = vunpack.c.l.b16 %v238
  %v257 = vunpack.c.h.b16 %v238
  %v258 = vunpack.c.l.b16 %v239
  %v259 = vunpack.c.h.b16 %v239
  %v260 = vunpack.c.l.b16 %v240
  %v261 = vunpack.c.h.b16 %v240
  %v262 = vpack.c.b16 %v250, %v248
  %v263 = vpack.c.b16 %v251, %v249
  %v264 = vpack.c.b16 %v254, %v252
  %v265 = vpack.c.b16 %v255, %v253
  %v266 = vpack.c.b16 %v258, %v256
  %v267 = vpack.c.b16 %v259, %v257
  %v268 = vpack.c.b16 %v260, %v260
  %v269 = vpack.c.b16 %v261, %v261
  %v275 = vsel %vm138, %v263, 0
  %v278 = vsel %vm138, %v265, 0
  %v281 = vsel %vm138, %v267, 0
  %v284 = vsel %vm138, %v269, 0
  %286 = vmatprep.subr.bf16.mxu0 0
  %287 = vmatpush1.bf16.msra.mxu0 %v119
  %288 = vmatprep.subr.bf16.mxu0 0
  %289 = vmatpush1.bf16.msra.mxu0 %v120
  %290 = vmatprep.subr.bf16.mxu0 0
  %291 = vmatpush1.bf16.msra.mxu0 %v121
  %292 = vmatprep.subr.bf16.mxu0 0
  %293 = vmatpush1.bf16.msra.mxu0 %v122
  %294 = vmatprep.subr.bf16.mxu0 0
  %295 = vmatpush1.bf16.msra.mxu0 %v123
  %296 = vmatprep.subr.bf16.mxu0 0
  %297 = vmatpush1.bf16.msra.mxu0 %v124
  %298 = vmatprep.subr.bf16.mxu0 0
  %299 = vmatpush1.bf16.msra.mxu0 %v125
  %300 = vmatprep.subr.bf16.mxu0 0
  %301 = vmatpush1.bf16.msra.mxu0 %v126
  %302 = vmatprep.subr.bf16.mxu0 0
  %303 = vmatpush1.bf16.msra.mxu0 %v127
  %304 = vmatprep.subr.bf16.mxu0 0
  %305 = vmatpush1.bf16.msra.mxu0 %v153
  %306 = vmatprep.subr.bf16.mxu0 0
  %307 = vmatpush1.bf16.msra.mxu0 0
  %308 = vmatprep.subr.bf16.mxu0 0
  %309 = vmatpush1.bf16.msra.mxu0 0
  %310 = vmatprep.subr.bf16.mxu0 0
  %311 = vmatpush1.bf16.msra.mxu0 0
  %312 = vmatprep.subr.bf16.mxu0 0
  %313 = vmatpush1.bf16.msra.mxu0 0
  %314 = vmatprep.subr.bf16.mxu0 0
  %315 = vmatpush1.bf16.msra.mxu0 0
  %316 = vmatprep.subr.bf16.mxu0 0
  %317 = vmatpush1.bf16.msra.mxu0 0
  %318 = vmatprep.mubr.bf16.mxu0 %v275
  %319 = vmatmul.mubr.bf16.gmra.mrb[0].mxu0 %v262
  %v320 = vpop.f32.mrb[0].mxu0
  %v321 = vadd.f32 %v46, %v320
  %v322 = vpop.f32.mrb[0].mxu0
  %v323 = vpop.f32.mrb[0].mxu0
  %v324 = vadd.f32 %v46, %v323
  %v325 = vpop.f32.mrb[0].mxu0
  %326 = vmatprep.mubr.bf16.mxu0 %v278
  %327 = vmatmul.mubr.bf16.gmra.mrb[0].mxu0 %v264
  %v328 = vpop.f32.mrb[0].mxu0
  %v329 = vadd.f32 %v46, %v328
  %v330 = vpop.f32.mrb[0].mxu0
  %v331 = vpop.f32.mrb[0].mxu0
  %v332 = vadd.f32 %v46, %v331
  %v333 = vpop.f32.mrb[0].mxu0
  %334 = vmatprep.mubr.bf16.mxu0 %v281
  %335 = vmatmul.mubr.bf16.gmra.mrb[0].mxu0 %v266
  %v336 = vpop.f32.mrb[0].mxu0
  %v337 = vadd.f32 %v46, %v336
  %v338 = vpop.f32.mrb[0].mxu0
  %v339 = vpop.f32.mrb[0].mxu0
  %v340 = vadd.f32 %v46, %v339
  %v341 = vpop.f32.mrb[0].mxu0
  %342 = vmatprep.mubr.bf16.mxu0 %v284
  %343 = vmatmul.mubr.bf16.gmra.mrb[0].mxu0 %v268
  %v344 = vpop.f32.mrb[0].mxu0
  %v345 = vadd.f32 %v46, %v344
  %v346 = vpop.f32.mrb[0].mxu0
  %v347 = vpop.f32.mrb[0].mxu0
  %v348 = vpop.f32.mrb[0].mxu0
  %349 = vdwg.mxu0
  %v350 = vmax.f32 %v321, 0.0
  %v351 = vmax.f32 %v324, 0.0
  %v352 = vmax.f32 %v329, 0.0
  %v353 = vmax.f32 %v332, 0.0
  %v354 = vmax.f32 %v337, 0.0
  %v355 = vmax.f32 %v340, 0.0
  %v356 = vmax.f32 %v345, 0.0
  %v357 = vadd.f32 %v226, %v350
  %v358 = vadd.f32 %v227, %v351
  %v359 = vadd.f32 %v228, %v352
  %v360 = vadd.f32 %v229, %v353
  %v361 = vadd.f32 %v230, %v354
  %v362 = vadd.f32 %v231, %v355
  %v363 = vadd.f32 %v232, %v356
  %s364 = scalar_lea.vmem %s0, 112
  %v365 = vld [vmem:[%s364] sm:$0xff]
  %v366 = vld [vmem:[%s364 + $0x8] sm:$0xff]
  %v367 = vld [vmem:[%s364 + $0x10] sm:$0xff]
  %v368 = vld [vmem:[%s364 + $0x18] sm:$0xff]
  %v369 = vld [vmem:[%s364 + $0x20] sm:$0xff]
  %v370 = vld [vmem:[%s364 + $0x28] sm:$0xff]
  %v371 = vld [vmem:[%s364 + $0x30] sm:$0x11]
  %v379 = vunpack.c.l.b16 %v365
  %v380 = vunpack.c.h.b16 %v365
  %v381 = vunpack.c.l.b16 %v366
  %v382 = vunpack.c.h.b16 %v366
  %v383 = vunpack.c.l.b16 %v367
  %v384 = vunpack.c.h.b16 %v367
  %v385 = vunpack.c.l.b16 %v368
  %v386 = vunpack.c.h.b16 %v368
  %v387 = vunpack.c.l.b16 %v369
  %v388 = vunpack.c.h.b16 %v369
  %v389 = vunpack.c.l.b16 %v370
  %v390 = vunpack.c.h.b16 %v370
  %v391 = vunpack.c.l.b16 %v371
  %v392 = vunpack.c.h.b16 %v371
  %v393 = vpack.c.b16 %v381, %v379
  %v394 = vpack.c.b16 %v382, %v380
  %v395 = vpack.c.b16 %v385, %v383
  %v396 = vpack.c.b16 %v386, %v384
  %v397 = vpack.c.b16 %v389, %v387
  %v398 = vpack.c.b16 %v390, %v388
  %v399 = vpack.c.b16 %v391, %v391
  %v400 = vpack.c.b16 %v392, %v392
  %v406 = vsel %vm138, %v394, 0
  %v409 = vsel %vm138, %v396, 0
  %v412 = vsel %vm138, %v398, 0
  %v415 = vsel %vm138, %v400, 0
  %417 = vmatprep.subr.bf16.mxu0 0
  %418 = vmatpush1.bf16.msra.mxu0 %v119
  %419 = vmatprep.subr.bf16.mxu0 0
  %420 = vmatpush1.bf16.msra.mxu0 %v120
  %421 = vmatprep.subr.bf16.mxu0 0
  %422 = vmatpush1.bf16.msra.mxu0 %v121
  %423 = vmatprep.subr.bf16.mxu0 0
  %424 = vmatpush1.bf16.msra.mxu0 %v122
  %425 = vmatprep.subr.bf16.mxu0 0
  %426 = vmatpush1.bf16.msra.mxu0 %v123
  %427 = vmatprep.subr.bf16.mxu0 0
  %428 = vmatpush1.bf16.msra.mxu0 %v124
  %429 = vmatprep.subr.bf16.mxu0 0
  %430 = vmatpush1.bf16.msra.mxu0 %v125
  %431 = vmatprep.subr.bf16.mxu0 0
  %432 = vmatpush1.bf16.msra.mxu0 %v126
  %433 = vmatprep.subr.bf16.mxu0 0
  %434 = vmatpush1.bf16.msra.mxu0 %v127
  %435 = vmatprep.subr.bf16.mxu0 0
  %436 = vmatpush1.bf16.msra.mxu0 %v153
  %437 = vmatprep.subr.bf16.mxu0 0
  %438 = vmatpush1.bf16.msra.mxu0 0
  %439 = vmatprep.subr.bf16.mxu0 0
  %440 = vmatpush1.bf16.msra.mxu0 0
  %441 = vmatprep.subr.bf16.mxu0 0
  %442 = vmatpush1.bf16.msra.mxu0 0
  %443 = vmatprep.subr.bf16.mxu0 0
  %444 = vmatpush1.bf16.msra.mxu0 0
  %445 = vmatprep.subr.bf16.mxu0 0
  %446 = vmatpush1.bf16.msra.mxu0 0
  %447 = vmatprep.subr.bf16.mxu0 0
  %448 = vmatpush1.bf16.msra.mxu0 0
  %449 = vmatprep.mubr.bf16.mxu0 %v406
  %450 = vmatmul.mubr.bf16.gmra.mrb[0].mxu0 %v393
  %v451 = vpop.f32.mrb[0].mxu0
  %v452 = vadd.f32 %v46, %v451
  %v453 = vpop.f32.mrb[0].mxu0
  %v454 = vpop.f32.mrb[0].mxu0
  %v455 = vadd.f32 %v46, %v454
  %v456 = vpop.f32.mrb[0].mxu0
  %457 = vmatprep.mubr.bf16.mxu0 %v409
  %458 = vmatmul.mubr.bf16.gmra.mrb[0].mxu0 %v395
  %v459 = vpop.f32.mrb[0].mxu0
  %v460 = vadd.f32 %v46, %v459
  %v461 = vpop.f32.mrb[0].mxu0
  %v462 = vpop.f32.mrb[0].mxu0
  %v463 = vadd.f32 %v46, %v462
  %v464 = vpop.f32.mrb[0].mxu0
  %465 = vmatprep.mubr.bf16.mxu0 %v412
  %466 = vmatmul.mubr.bf16.gmra.mrb[0].mxu0 %v397
  %v467 = vpop.f32.mrb[0].mxu0
  %v468 = vadd.f32 %v46, %v467
  %v469 = vpop.f32.mrb[0].mxu0
  %v470 = vpop.f32.mrb[0].mxu0
  %v471 = vadd.f32 %v46, %v470
  %v472 = vpop.f32.mrb[0].mxu0
  %473 = vmatprep.mubr.bf16.mxu0 %v415
  %474 = vmatmul.mubr.bf16.gmra.mrb[0].mxu0 %v399
  %v475 = vpop.f32.mrb[0].mxu0
  %v476 = vadd.f32 %v46, %v475
  %v477 = vpop.f32.mrb[0].mxu0
  %v478 = vpop.f32.mrb[0].mxu0
  %v479 = vpop.f32.mrb[0].mxu0
  %480 = vdwg.mxu0
  %v481 = vmax.f32 %v452, 0.0
  %v482 = vmax.f32 %v455, 0.0
  %v483 = vmax.f32 %v460, 0.0
  %v484 = vmax.f32 %v463, 0.0
  %v485 = vmax.f32 %v468, 0.0
  %v486 = vmax.f32 %v471, 0.0
  %v487 = vmax.f32 %v476, 0.0
  %v488 = vadd.f32 %v357, %v481
  %v489 = vadd.f32 %v358, %v482
  %v490 = vadd.f32 %v359, %v483
  %v491 = vadd.f32 %v360, %v484
  %v492 = vadd.f32 %v361, %v485
  %v493 = vadd.f32 %v362, %v486
  %v494 = vadd.f32 %v363, %v487
  %s495 = scalar_lea.vmem %s0, 168
  %v496 = vld [vmem:[%s495] sm:$0xff]
  %v497 = vld [vmem:[%s495 + $0x8] sm:$0xff]
  %v498 = vld [vmem:[%s495 + $0x10] sm:$0xff]
  %v499 = vld [vmem:[%s495 + $0x18] sm:$0xff]
  %v500 = vld [vmem:[%s495 + $0x20] sm:$0xff]
  %v501 = vld [vmem:[%s495 + $0x28] sm:$0xff]
  %v502 = vld [vmem:[%s495 + $0x30] sm:$0x11]
  %v510 = vunpack.c.l.b16 %v496
  %v511 = vunpack.c.h.b16 %v496
  %v512 = vunpack.c.l.b16 %v497
  %v513 = vunpack.c.h.b16 %v497
  %v514 = vunpack.c.l.b16 %v498
  %v515 = vunpack.c.h.b16 %v498
  %v516 = vunpack.c.l.b16 %v499
  %v517 = vunpack.c.h.b16 %v499
  %v518 = vunpack.c.l.b16 %v500
  %v519 = vunpack.c.h.b16 %v500
  %v520 = vunpack.c.l.b16 %v501
  %v521 = vunpack.c.h.b16 %v501
  %v522 = vunpack.c.l.b16 %v502
  %v523 = vunpack.c.h.b16 %v502
  %v524 = vpack.c.b16 %v512, %v510
  %v525 = vpack.c.b16 %v513, %v511
  %v526 = vpack.c.b16 %v516, %v514
  %v527 = vpack.c.b16 %v517, %v515
  %v528 = vpack.c.b16 %v520, %v518
  %v529 = vpack.c.b16 %v521, %v519
  %v530 = vpack.c.b16 %v522, %v522
  %v531 = vpack.c.b16 %v523, %v523
  %v537 = vsel %vm138, %v525, 0
  %v540 = vsel %vm138, %v527, 0
  %v543 = vsel %vm138, %v529, 0
  %v546 = vsel %vm138, %v531, 0
  %548 = vmatprep.subr.bf16.mxu0 0
  %549 = vmatpush1.bf16.msra.mxu0 %v119
  %550 = vmatprep.subr.bf16.mxu0 0
  %551 = vmatpush1.bf16.msra.mxu0 %v120
  %552 = vmatprep.subr.bf16.mxu0 0
  %553 = vmatpush1.bf16.msra.mxu0 %v121
  %554 = vmatprep.subr.bf16.mxu0 0
  %555 = vmatpush1.bf16.msra.mxu0 %v122
  %556 = vmatprep.subr.bf16.mxu0 0
  %557 = vmatpush1.bf16.msra.mxu0 %v123
  %558 = vmatprep.subr.bf16.mxu0 0
  %559 = vmatpush1.bf16.msra.mxu0 %v124
  %560 = vmatprep.subr.bf16.mxu0 0
  %561 = vmatpush1.bf16.msra.mxu0 %v125
  %562 = vmatprep.subr.bf16.mxu0 0
  %563 = vmatpush1.bf16.msra.mxu0 %v126
  %564 = vmatprep.subr.bf16.mxu0 0
  %565 = vmatpush1.bf16.msra.mxu0 %v127
  %566 = vmatprep.subr.bf16.mxu0 0
  %567 = vmatpush1.bf16.msra.mxu0 %v153
  %568 = vmatprep.subr.bf16.mxu0 0
  %569 = vmatpush1.bf16.msra.mxu0 0
  %570 = vmatprep.subr.bf16.mxu0 0
  %571 = vmatpush1.bf16.msra.mxu0 0
  %572 = vmatprep.subr.bf16.mxu0 0
  %573 = vmatpush1.bf16.msra.mxu0 0
  %574 = vmatprep.subr.bf16.mxu0 0
  %575 = vmatpush1.bf16.msra.mxu0 0
  %576 = vmatprep.subr.bf16.mxu0 0
  %577 = vmatpush1.bf16.msra.mxu0 0
  %578 = vmatprep.subr.bf16.mxu0 0
  %579 = vmatpush1.bf16.msra.mxu0 0
  %580 = vmatprep.mubr.bf16.mxu0 %v537
  %581 = vmatmul.mubr.bf16.gmra.mrb[0].mxu0 %v524
  %v582 = vpop.f32.mrb[0].mxu0
  %v583 = vadd.f32 %v46, %v582
  %v584 = vpop.f32.mrb[0].mxu0
  %v585 = vpop.f32.mrb[0].mxu0
  %v586 = vadd.f32 %v46, %v585
  %v587 = vpop.f32.mrb[0].mxu0
  %588 = vmatprep.mubr.bf16.mxu0 %v540
  %589 = vmatmul.mubr.bf16.gmra.mrb[0].mxu0 %v526
  %v590 = vpop.f32.mrb[0].mxu0
  %v591 = vadd.f32 %v46, %v590
  %v592 = vpop.f32.mrb[0].mxu0
  %v593 = vpop.f32.mrb[0].mxu0
  %v594 = vadd.f32 %v46, %v593
  %v595 = vpop.f32.mrb[0].mxu0
  %596 = vmatprep.mubr.bf16.mxu0 %v543
  %597 = vmatmul.mubr.bf16.gmra.mrb[0].mxu0 %v528
  %v598 = vpop.f32.mrb[0].mxu0
  %v599 = vadd.f32 %v46, %v598
  %v600 = vpop.f32.mrb[0].mxu0
  %v601 = vpop.f32.mrb[0].mxu0
  %v602 = vadd.f32 %v46, %v601
  %v603 = vpop.f32.mrb[0].mxu0
  %604 = vmatprep.mubr.bf16.mxu0 %v546
  %605 = vmatmul.mubr.bf16.gmra.mrb[0].mxu0 %v530
  %v606 = vpop.f32.mrb[0].mxu0
  %v607 = vadd.f32 %v46, %v606
  %v608 = vpop.f32.mrb[0].mxu0
  %v609 = vpop.f32.mrb[0].mxu0
  %v610 = vpop.f32.mrb[0].mxu0
  %611 = vdwg.mxu0
  %v612 = vmax.f32 %v583, 0.0
  %v613 = vmax.f32 %v586, 0.0
  %v614 = vmax.f32 %v591, 0.0
  %v615 = vmax.f32 %v594, 0.0
  %v616 = vmax.f32 %v599, 0.0
  %v617 = vmax.f32 %v602, 0.0
  %v618 = vmax.f32 %v607, 0.0
  %v619 = vadd.f32 %v488, %v612
  %v620 = vadd.f32 %v489, %v613
  %v621 = vadd.f32 %v490, %v614
  %v622 = vadd.f32 %v491, %v615
  %v623 = vadd.f32 %v492, %v616
  %v624 = vadd.f32 %v493, %v617
  %v625 = vadd.f32 %v494, %v618
  %v626 = vpack.c.bf16 %v620, %v619
  %v627 = vpack.c.bf16 %v622, %v621
  %v628 = vpack.c.bf16 %v624, %v623
  %v629 = vpack.c.bf16 %v625, %v625
  %v634 = vunpack.c.l.b16 %v626
  %v635 = vunpack.c.h.b16 %v626
  %v636 = vunpack.c.l.b16 %v627
  %v637 = vunpack.c.h.b16 %v627
  %v638 = vunpack.c.l.b16 %v628
  %v639 = vunpack.c.h.b16 %v628
  %v640 = vunpack.c.l.b16 %v629
  %v641 = vpack.c.b16 %v634, %v634
  %v642 = vpack.c.b16 %v635, %v635
  %v643 = vpack.c.b16 %v636, %v636
  %v644 = vpack.c.b16 %v637, %v637
  %v645 = vpack.c.b16 %v638, %v638
  %v646 = vpack.c.b16 %v639, %v639
  %v647 = vpack.c.b16 %v640, %v640
  %vm655 = vcmask 125952
  %656 = vst.msk [vmem:[%s3] sm:$0xf] %vm655, %v641
  %657 = vst.msk [vmem:[%s3 + $0x4] sm:$0xf] %vm655, %v642
  %658 = vst.msk [vmem:[%s3 + $0x8] sm:$0xf] %vm655, %v643
  %659 = vst.msk [vmem:[%s3 + $0xc] sm:$0xf] %vm655, %v644
  %660 = vst.msk [vmem:[%s3 + $0x10] sm:$0xf] %vm655, %v645
  %661 = vst.msk [vmem:[%s3 + $0x14] sm:$0xf] %vm655, %v646
  %vm662 = vcmask 122880
  %663 = vst.msk [vmem:[%s3 + $0x18] sm:$0x1] %vm662, %v647
  // Predicated region
  $region14: #{lenet_forward.4} parent=0 // pred_check
    _
  $region15: #{lenet_forward.4} parent=0 // pred_check_branch
    %665 = sbr.rel (0) target = $region17
  $region16: #{lenet_forward.4} parent=0 // pred_region
    _
  $region17: #{lenet_forward.4} parent=0 // pred_fallthru
    _
  // Predicated region
  $region18: #{lenet_forward.4} parent=0 // pred_check
    _
  $region19: #{lenet_forward.4} parent=0 // pred_check_branch
    %667 = sbr.rel (0) target = $region21
  $region20: #{lenet_forward.4} parent=0 // pred_region
    _
  $region21: #{lenet_forward.4} parent=0 // pred_fallthru
    _

// kernel: lenet_forward.5
$region0: #{lenet_forward.5}
  #allocation0 [shape = 'u32[]', space=smem, size = 0x4, offset = 0x4, fixed_abs, tag = 'smem constant byte address 0x4 - core index']
  #allocation1 [shape = 'u32[144,128]{1,0:T(1,128)}', space=vmem, size = 0x12000, scoped, tag = 'internal scratch']
  %s0 = inlined_call_operand.vmem [shape: bf16[2,400], index: 0, kind: input, shape index: {}]
  %s1 = inlined_call_operand.vmem [shape: bf16[400,120], index: 1, kind: input, shape index: {}]
  %s2 = inlined_call_operand.vmem [shape: f32[1,120], index: 2, kind: input, shape index: {}]
  %s3 = inlined_call_operand.vmem [shape: bf16[120,84], index: 3, kind: input, shape index: {}]
  %s4 = inlined_call_operand.vmem [shape: f32[1,84], index: 4, kind: input, shape index: {}]
  %s5 = inlined_call_operand.vmem [shape: bf16[84,10], index: 5, kind: input, shape index: {}]
  %s6 = inlined_call_operand.vmem [shape: f32[1,10], index: 6, kind: input, shape index: {}]
  %s7 = inlined_call_operand.hbm [shape: f32[2,10], index: 7, kind: output, shape index: {}]
  %s8 = sld [smem:[#allocation0]]
  $region38: #{lenet_forward.5} parent=0
    _
  %s10 = ssub.s32 1, %s8
  %s11 = scalar_select 0, %s10, %s8
  $region1: #{lenet_forward.5} parent=0
    #allocation2 [shape = 'u8[1024]{0}', space=vmem, size = 0x400, scoped, tag = 'output window, operand 0, single buffered']
    #allocation3 [shape = 's32[1]{0}', space=sflag, size = 0x4, scoped, tag = 'scoped memory for lenet_forward.5']
    %12 = vsyncpa [#allocation3], 0
    // Predicated region
    $region2: #{lenet_forward.5} parent=1 // pred_check
      _
    $region3: #{lenet_forward.5} parent=1 // pred_check_branch
      %14 = sbr.rel (0) target = $region5
    $region4: #{lenet_forward.5} parent=1 // pred_region
      _
    $region5: #{lenet_forward.5} parent=1 // pred_fallthru
      _
    // Predicated region
    $region6: #{lenet_forward.5} parent=1 // pred_check
      _
    $region7: #{lenet_forward.5} parent=1 // pred_check_branch
      %16 = sbr.rel (0) target = $region9
    $region8: #{lenet_forward.5} parent=1 // pred_region
      _
    $region9: #{lenet_forward.5} parent=1 // pred_fallthru
      _
    // Predicated region
    $region10: #{lenet_forward.5} parent=1 // pred_check
      _
    $region11: #{lenet_forward.5} parent=1 // pred_check_branch
      %18 = sbr.rel (0) target = $region13
    $region12: #{lenet_forward.5} parent=1 // pred_region
      _
    $region13: #{lenet_forward.5} parent=1 // pred_fallthru
      _
    // Predicated region
    $region14: #{lenet_forward.5} parent=1 // pred_check
      _
    $region15: #{lenet_forward.5} parent=1 // pred_check_branch
      %20 = sbr.rel (0) target = $region17
    $region16: #{lenet_forward.5} parent=1 // pred_region
      _
    $region17: #{lenet_forward.5} parent=1 // pred_fallthru
      _
    // Predicated region
    $region18: #{lenet_forward.5} parent=1 // pred_check
      _
    $region19: #{lenet_forward.5} parent=1 // pred_check_branch
      %22 = sbr.rel (0) target = $region21
    $region20: #{lenet_forward.5} parent=1 // pred_region
      _
    $region21: #{lenet_forward.5} parent=1 // pred_fallthru
      _
    // Predicated region
    $region22: #{lenet_forward.5} parent=1 // pred_check
      _
    $region23: #{lenet_forward.5} parent=1 // pred_check_branch
      %24 = sbr.rel (0) target = $region25
    $region24: #{lenet_forward.5} parent=1 // pred_region
      _
    $region25: #{lenet_forward.5} parent=1 // pred_fallthru
      _
    // Predicated region
    $region26: #{lenet_forward.5} parent=1 // pred_check
      _
    $region27: #{lenet_forward.5} parent=1 // pred_check_branch
      %26 = sbr.rel (0) target = $region29
    $region28: #{lenet_forward.5} parent=1 // pred_region
      _
    $region29: #{lenet_forward.5} parent=1 // pred_fallthru
      _
    %v28 = vld [vmem:[%s0] sm:$0xf]
    %v29 = vld [vmem:[%s1] sm:$0xf]
    %v30 = vld [vmem:[%s1 + $0x4] sm:$0xf]
    %v31 = vld [vmem:[%s1 + $0x8] sm:$0xf]
    %v32 = vld [vmem:[%s1 + $0xc] sm:$0xf]
    %v33 = vld [vmem:[%s1 + $0x10] sm:$0xf]
    %v34 = vld [vmem:[%s1 + $0x14] sm:$0xf]
    %v35 = vld [vmem:[%s1 + $0x18] sm:$0xf]
    %v36 = vld [vmem:[%s1 + $0x1c] sm:$0xf]
    %v37 = vld [vmem:[%s1 + $0x20] sm:$0xf]
    %v38 = vld [vmem:[%s1 + $0x24] sm:$0xf]
    %v39 = vld [vmem:[%s1 + $0x28] sm:$0xf]
    %v40 = vld [vmem:[%s1 + $0x2c] sm:$0xf]
    %v41 = vld [vmem:[%s1 + $0x30] sm:$0xf]
    %v42 = vld [vmem:[%s1 + $0x34] sm:$0xf]
    %v43 = vld [vmem:[%s1 + $0x38] sm:$0xf]
    %v44 = vld [vmem:[%s1 + $0x3c] sm:$0xf]
    %v45 = vld [vmem:[%s1 + $0x40] sm:$0xf]
    %v46 = vld [vmem:[%s1 + $0x44] sm:$0xf]
    %v47 = vld [vmem:[%s1 + $0x48] sm:$0xf]
    %v48 = vld [vmem:[%s1 + $0x4c] sm:$0xf]
    %v49 = vld [vmem:[%s1 + $0x50] sm:$0xf]
    %v50 = vld [vmem:[%s1 + $0x54] sm:$0xf]
    %v51 = vld [vmem:[%s1 + $0x58] sm:$0xf]
    %v52 = vld [vmem:[%s1 + $0x5c] sm:$0xf]
    %v53 = vld [vmem:[%s1 + $0x60] sm:$0xf]
    %v54 = vld [vmem:[%s1 + $0x64] sm:$0xf]
    %v55 = vld [vmem:[%s1 + $0x68] sm:$0xf]
    %v56 = vld [vmem:[%s1 + $0x6c] sm:$0xf]
    %v57 = vld [vmem:[%s1 + $0x70] sm:$0xf]
    %v58 = vld [vmem:[%s1 + $0x74] sm:$0xf]
    %v59 = vld [vmem:[%s1 + $0x78] sm:$0xf]
    %v60 = vld [vmem:[%s1 + $0x7c] sm:$0xf]
    %v61 = vld [vmem:[%s1 + $0x80] sm:$0xf]
    %v62 = vld [vmem:[%s1 + $0x84] sm:$0xf]
    %v63 = vld [vmem:[%s1 + $0x88] sm:$0xf]
    %v64 = vld [vmem:[%s1 + $0x8c] sm:$0xf]
    %v65 = vld [vmem:[%s1 + $0x90] sm:$0xf]
    %v66 = vld [vmem:[%s1 + $0x94] sm:$0xf]
    %v67 = vld [vmem:[%s1 + $0x98] sm:$0xf]
    %v68 = vld [vmem:[%s1 + $0x9c] sm:$0xf]
    %v69 = vld [vmem:[%s1 + $0xa0] sm:$0xf]
    %v70 = vld [vmem:[%s1 + $0xa4] sm:$0xf]
    %v71 = vld [vmem:[%s1 + $0xa8] sm:$0xf]
    %v72 = vld [vmem:[%s1 + $0xac] sm:$0xf]
    %v73 = vld [vmem:[%s1 + $0xb0] sm:$0xf]
    %v74 = vld [vmem:[%s1 + $0xb4] sm:$0xf]
    %v75 = vld [vmem:[%s1 + $0xb8] sm:$0xf]
    %v76 = vld [vmem:[%s1 + $0xbc] sm:$0xf]
    %v77 = vld [vmem:[%s1 + $0xc0] sm:$0xf]
    %v78 = vld [vmem:[%s1 + $0xc4] sm:$0xf]
    %v79 = vld [vmem:[%s2] sm:$0x1]
    %v81 = vlaneseq
    %v82 = vshrl.u32 %v81, 7
    %v83 = vsub.s32 0, %v82
    %v84 = vrot.slane %v79, %v83
    %v88 = vunpack.c.l.s4 1966171168
    %v89 = vunpack.c.0.s8 %v88
    %v90 = vlaneseq
    %v91 = vshrl.u32 %v90, 7
    %v92 = vsub.s32 %v89, %v91
    %v93 = vrot.slane %v28, %v92
    %v94 = vcombine.high %v93, %v93
    %v96 = vunpack.c.l.s4 1966171168
    %v97 = vunpack.c.0.s8 %v96
    %v98 = vlaneseq
    %v99 = vshrl.u32 %v98, 7
    %v100 = vsub.s32 %v97, %v99
    %v101 = vrot.slane %v93, %v100
    %v103 = vunpack.c.l.s4 1966171168
    %v104 = vunpack.c.0.s8 %v103
    %v105 = vlaneseq
    %v106 = vshrl.u32 %v105, 7
    %v107 = vsub.s32 %v104, %v106
    %v108 = vrot.slane %v94, %v107
    %v109 = vcombine.high %v101, %v101
    %v110 = vcombine.high %v108, %v108
    %v164 = vunpack.c.l.b16 %v29
    %v165 = vunpack.c.l.b16 %v30
    %v166 = vunpack.c.l.b16 %v31
    %v167 = vunpack.c.l.b16 %v32
    %v168 = vunpack.c.l.b16 %v33
    %v169 = vunpack.c.l.b16 %v34
    %v170 = vunpack.c.l.b16 %v35
    %v171 = vunpack.c.l.b16 %v36
    %v172 = vunpack.c.l.b16 %v37
    %v173 = vunpack.c.l.b16 %v38
    %v174 = vunpack.c.l.b16 %v39
    %v175 = vunpack.c.l.b16 %v40
    %v176 = vunpack.c.l.b16 %v41
    %v177 = vunpack.c.l.b16 %v42
    %v178 = vunpack.c.l.b16 %v43
    %v179 = vunpack.c.l.b16 %v44
    %v180 = vunpack.c.l.b16 %v45
    %v181 = vunpack.c.l.b16 %v46
    %v182 = vunpack.c.l.b16 %v47
    %v183 = vunpack.c.l.b16 %v48
    %v184 = vunpack.c.l.b16 %v49
    %v185 = vunpack.c.l.b16 %v50
    %v186 = vunpack.c.l.b16 %v51
    %v187 = vunpack.c.l.b16 %v52
    %v188 = vunpack.c.l.b16 %v53
    %v189 = vunpack.c.l.b16 %v54
    %v190 = vunpack.c.l.b16 %v55
    %v191 = vunpack.c.l.b16 %v56
    %v192 = vunpack.c.l.b16 %v57
    %v193 = vunpack.c.l.b16 %v58
    %v194 = vunpack.c.l.b16 %v59
    %v195 = vunpack.c.l.b16 %v60
    %v196 = vunpack.c.l.b16 %v61
    %v197 = vunpack.c.l.b16 %v62
    %v198 = vunpack.c.l.b16 %v63
    %v199 = vunpack.c.l.b16 %v64
    %v200 = vunpack.c.l.b16 %v65
    %v201 = vunpack.c.l.b16 %v66
    %v202 = vunpack.c.l.b16 %v67
    %v203 = vunpack.c.l.b16 %v68
    %v204 = vunpack.c.l.b16 %v69
    %v205 = vunpack.c.l.b16 %v70
    %v206 = vunpack.c.l.b16 %v71
    %v207 = vunpack.c.l.b16 %v72
    %v208 = vunpack.c.l.b16 %v73
    %v209 = vunpack.c.l.b16 %v74
    %v210 = vunpack.c.l.b16 %v75
    %v211 = vunpack.c.l.b16 %v76
    %v212 = vunpack.c.l.b16 %v77
    %v213 = vunpack.c.l.b16 %v78
    %v214 = vpack.c.b16 %v165, %v164
    %v215 = vpack.c.b16 %v167, %v166
    %v216 = vpack.c.b16 %v169, %v168
    %v217 = vpack.c.b16 %v171, %v170
    %v218 = vpack.c.b16 %v173, %v172
    %v219 = vpack.c.b16 %v175, %v174
    %v220 = vpack.c.b16 %v177, %v176
    %v221 = vpack.c.b16 %v179, %v178
    %v222 = vpack.c.b16 %v181, %v180
    %v223 = vpack.c.b16 %v183, %v182
    %v224 = vpack.c.b16 %v185, %v184
    %v225 = vpack.c.b16 %v187, %v186
    %v226 = vpack.c.b16 %v189, %v188
    %v227 = vpack.c.b16 %v191, %v190
    %v228 = vpack.c.b16 %v193, %v192
    %v229 = vpack.c.b16 %v195, %v194
    %v230 = vpack.c.b16 %v197, %v196
    %v231 = vpack.c.b16 %v199, %v198
    %v232 = vpack.c.b16 %v201, %v200
    %v233 = vpack.c.b16 %v203, %v202
    %v234 = vpack.c.b16 %v205, %v204
    %v235 = vpack.c.b16 %v207, %v206
    %v236 = vpack.c.b16 %v209, %v208
    %v237 = vpack.c.b16 %v211, %v210
    %v238 = vpack.c.b16 %v213, %v212
    %vm264 = vcmask 130048
    %v266 = vsel %vm264, %v110, 0
    %268 = vmatprep.subr.bf16.mxu0 0
    %269 = vmatpush1.bf16.msra.mxu0 %v214
    %270 = vmatprep.subr.bf16.mxu0 0
    %271 = vmatpush1.bf16.msra.mxu0 %v215
    %272 = vmatprep.subr.bf16.mxu0 0
    %273 = vmatpush1.bf16.msra.mxu0 %v216
    %274 = vmatprep.subr.bf16.mxu0 0
    %275 = vmatpush1.bf16.msra.mxu0 %v217
    %276 = vmatprep.subr.bf16.mxu0 0
    %277 = vmatpush1.bf16.msra.mxu0 %v218
    %278 = vmatprep.subr.bf16.mxu0 0
    %279 = vmatpush1.bf16.msra.mxu0 %v219
    %280 = vmatprep.subr.bf16.mxu0 0
    %281 = vmatpush1.bf16.msra.mxu0 %v220
    %282 = vmatprep.subr.bf16.mxu0 0
    %283 = vmatpush1.bf16.msra.mxu0 %v221
    %284 = vmatprep.subr.bf16.mxu0 0
    %285 = vmatpush1.bf16.msra.mxu0 %v222
    %286 = vmatprep.subr.bf16.mxu0 0
    %287 = vmatpush1.bf16.msra.mxu0 %v223
    %288 = vmatprep.subr.bf16.mxu0 0
    %289 = vmatpush1.bf16.msra.mxu0 %v224
    %290 = vmatprep.subr.bf16.mxu0 0
    %291 = vmatpush1.bf16.msra.mxu0 %v225
    %292 = vmatprep.subr.bf16.mxu0 0
    %293 = vmatpush1.bf16.msra.mxu0 %v226
    %294 = vmatprep.subr.bf16.mxu0 0
    %295 = vmatpush1.bf16.msra.mxu0 %v227
    %296 = vmatprep.subr.bf16.mxu0 0
    %297 = vmatpush1.bf16.msra.mxu0 %v228
    %298 = vmatprep.subr.bf16.mxu0 0
    %299 = vmatpush1.bf16.msra.mxu0 %v229
    %300 = vmatprep.mubr.bf16.mxu0 %v108
    %301 = vmatmul.mubr.bf16.gmra.mrb[0].mxu0 %v101
    %v302 = vpop.f32.mrb[0].mxu0
    %v303 = vadd.f32 %v84, %v302
    %v304 = vpop.f32.mrb[0].mxu0
    %v305 = vpop.f32.mrb[0].mxu0
    %v306 = vpop.f32.mrb[0].mxu0
    %307 = vdwg.mxu0
    %308 = vmatprep.subr.bf16.mxu0 0
    %309 = vmatpush1.bf16.msra.mxu0 %v230
    %310 = vmatprep.subr.bf16.mxu0 0
    %311 = vmatpush1.bf16.msra.mxu0 %v231
    %312 = vmatprep.subr.bf16.mxu0 0
    %313 = vmatpush1.bf16.msra.mxu0 %v232
    %314 = vmatprep.subr.bf16.mxu0 0
    %315 = vmatpush1.bf16.msra.mxu0 %v233
    %316 = vmatprep.subr.bf16.mxu0 0
    %317 = vmatpush1.bf16.msra.mxu0 %v234
    %318 = vmatprep.subr.bf16.mxu0 0
    %319 = vmatpush1.bf16.msra.mxu0 %v235
    %320 = vmatprep.subr.bf16.mxu0 0
    %321 = vmatpush1.bf16.msra.mxu0 %v236
    %322 = vmatprep.subr.bf16.mxu0 0
    %323 = vmatpush1.bf16.msra.mxu0 %v237
    %324 = vmatprep.subr.bf16.mxu0 0
    %325 = vmatpush1.bf16.msra.mxu0 %v238
    %326 = vmatprep.subr.bf16.mxu0 0
    %327 = vmatpush1.bf16.msra.mxu0 0
    %328 = vmatprep.subr.bf16.mxu0 0
    %329 = vmatpush1.bf16.msra.mxu0 0
    %330 = vmatprep.subr.bf16.mxu0 0
    %331 = vmatpush1.bf16.msra.mxu0 0
    %332 = vmatprep.subr.bf16.mxu0 0
    %333 = vmatpush1.bf16.msra.mxu0 0
    %334 = vmatprep.subr.bf16.mxu0 0
    %335 = vmatpush1.bf16.msra.mxu0 0
    %336 = vmatprep.subr.bf16.mxu0 0
    %337 = vmatpush1.bf16.msra.mxu0 0
    %338 = vmatprep.subr.bf16.mxu0 0
    %339 = vmatpush1.bf16.msra.mxu0 0
    %340 = vmatprep.mubr.bf16.mxu0 %v266
    %341 = vmatmul.mubr.bf16.gmra.mrb[0].mxu0 %v109
    %v342 = vpop.f32.mrb[0].mxu0
    %v343 = vadd.f32 %v303, %v342
    %v344 = vpop.f32.mrb[0].mxu0
    %v345 = vpop.f32.mrb[0].mxu0
    %v346 = vpop.f32.mrb[0].mxu0
    %347 = vdwg.mxu0
    %v348 = vmax.f32 %v343, 0.0
    %v349 = vpack.c.bf16 %v348, %v348
    %v350 = vld [vmem:[%s3] sm:$0xf]
    %v351 = vld [vmem:[%s3 + $0x4] sm:$0xf]
    %v352 = vld [vmem:[%s3 + $0x8] sm:$0xf]
    %v353 = vld [vmem:[%s3 + $0xc] sm:$0xf]
    %v354 = vld [vmem:[%s3 + $0x10] sm:$0xf]
    %v355 = vld [vmem:[%s3 + $0x14] sm:$0xf]
    %v356 = vld [vmem:[%s3 + $0x18] sm:$0xf]
    %v357 = vld [vmem:[%s3 + $0x1c] sm:$0xf]
    %v358 = vld [vmem:[%s3 + $0x20] sm:$0xf]
    %v359 = vld [vmem:[%s3 + $0x24] sm:$0xf]
    %v360 = vld [vmem:[%s3 + $0x28] sm:$0xf]
    %v361 = vld [vmem:[%s3 + $0x2c] sm:$0xf]
    %v362 = vld [vmem:[%s3 + $0x30] sm:$0xf]
    %v363 = vld [vmem:[%s3 + $0x34] sm:$0xf]
    %v364 = vld [vmem:[%s3 + $0x38] sm:$0xf]
    %v365 = vld [vmem:[%s4] sm:$0x1]
    %v367 = vlaneseq
    %v368 = vshrl.u32 %v367, 7
    %v369 = vsub.s32 0, %v368
    %v370 = vrot.slane %v365, %v369
    %v387 = vunpack.c.l.b16 %v350
    %v388 = vunpack.c.l.b16 %v351
    %v389 = vunpack.c.l.b16 %v352
    %v390 = vunpack.c.l.b16 %v353
    %v391 = vunpack.c.l.b16 %v354
    %v392 = vunpack.c.l.b16 %v355
    %v393 = vunpack.c.l.b16 %v356
    %v394 = vunpack.c.l.b16 %v357
    %v395 = vunpack.c.l.b16 %v358
    %v396 = vunpack.c.l.b16 %v359
    %v397 = vunpack.c.l.b16 %v360
    %v398 = vunpack.c.l.b16 %v361
    %v399 = vunpack.c.l.b16 %v362
    %v400 = vunpack.c.l.b16 %v363
    %v401 = vunpack.c.l.b16 %v364
    %v402 = vpack.c.b16 %v388, %v387
    %v403 = vpack.c.b16 %v390, %v389
    %v404 = vpack.c.b16 %v392, %v391
    %v405 = vpack.c.b16 %v394, %v393
    %v406 = vpack.c.b16 %v396, %v395
    %v407 = vpack.c.b16 %v398, %v397
    %v408 = vpack.c.b16 %v400, %v399
    %v409 = vpack.c.b16 %v401, %v401
    %vm417 = vcmask 982016
    %v419 = vsel %vm417, %v349, 0
    %vm421 = vcmask 1043456
    %v423 = vsel %vm421, %v409, 0
    %425 = vmatprep.subr.bf16.mxu0 0
    %426 = vmatpush1.bf16.msra.mxu0 %v402
    %427 = vmatprep.subr.bf16.mxu0 0
    %428 = vmatpush1.bf16.msra.mxu0 %v403
    %429 = vmatprep.subr.bf16.mxu0 0
    %430 = vmatpush1.bf16.msra.mxu0 %v404
    %431 = vmatprep.subr.bf16.mxu0 0
    %432 = vmatpush1.bf16.msra.mxu0 %v405
    %433 = vmatprep.subr.bf16.mxu0 0
    %434 = vmatpush1.bf16.msra.mxu0 %v406
    %435 = vmatprep.subr.bf16.mxu0 0
    %436 = vmatpush1.bf16.msra.mxu0 %v407
    %437 = vmatprep.subr.bf16.mxu0 0
    %438 = vmatpush1.bf16.msra.mxu0 %v408
    %439 = vmatprep.subr.bf16.mxu0 0
    %440 = vmatpush1.bf16.msra.mxu0 %v423
    %441 = vmatprep.subr.bf16.mxu0 0
    %442 = vmatpush1.bf16.msra.mxu0 0
    %443 = vmatprep.subr.bf16.mxu0 0
    %444 = vmatpush1.bf16.msra.mxu0 0
    %445 = vmatprep.subr.bf16.mxu0 0
    %446 = vmatpush1.bf16.msra.mxu0 0
    %447 = vmatprep.subr.bf16.mxu0 0
    %448 = vmatpush1.bf16.msra.mxu0 0
    %449 = vmatprep.subr.bf16.mxu0 0
    %450 = vmatpush1.bf16.msra.mxu0 0
    %451 = vmatprep.subr.bf16.mxu0 0
    %452 = vmatpush1.bf16.msra.mxu0 0
    %453 = vmatprep.subr.bf16.mxu0 0
    %454 = vmatpush1.bf16.msra.mxu0 0
    %455 = vmatprep.subr.bf16.mxu0 0
    %456 = vmatpush1.bf16.msra.mxu0 0
    %457 = vmatprep.mubr.bf16.mxu0 0
    %458 = vmatmul.mubr.bf16.gmra.mrb[0].mxu0 %v419
    %v459 = vpop.f32.mrb[0].mxu0
    %v460 = vadd.f32 %v370, %v459
    %v461 = vpop.f32.mrb[0].mxu0
    %v462 = vpop.f32.mrb[0].mxu0
    %v463 = vpop.f32.mrb[0].mxu0
    %464 = vdwg.mxu0
    %v465 = vmax.f32 %v460, 0.0
    %v466 = vpack.c.bf16 %v465, %v465
    %v467 = vld [vmem:[%s5] sm:$0xf]
    %v468 = vld [vmem:[%s5 + $0x4] sm:$0xf]
    %v469 = vld [vmem:[%s5 + $0x8] sm:$0xf]
    %v470 = vld [vmem:[%s5 + $0xc] sm:$0xf]
    %v471 = vld [vmem:[%s5 + $0x10] sm:$0xf]
    %v472 = vld [vmem:[%s5 + $0x14] sm:$0xf]
    %v473 = vld [vmem:[%s5 + $0x18] sm:$0xf]
    %v474 = vld [vmem:[%s5 + $0x1c] sm:$0xf]
    %v475 = vld [vmem:[%s5 + $0x20] sm:$0xf]
    %v476 = vld [vmem:[%s5 + $0x24] sm:$0xf]
    %v477 = vld [vmem:[%s5 + $0x28] sm:$0x3]
    %v478 = vld [vmem:[%s6] sm:$0x1]
    %v480 = vlaneseq
    %v481 = vshrl.u32 %v480, 7
    %v482 = vsub.s32 0, %v481
    %v483 = vrot.slane %v478, %v482
    %v496 = vunpack.c.l.b16 %v467
    %v497 = vunpack.c.l.b16 %v468
    %v498 = vunpack.c.l.b16 %v469
    %v499 = vunpack.c.l.b16 %v470
    %v500 = vunpack.c.l.b16 %v471
    %v501 = vunpack.c.l.b16 %v472
    %v502 = vunpack.c.l.b16 %v473
    %v503 = vunpack.c.l.b16 %v474
    %v504 = vunpack.c.l.b16 %v475
    %v505 = vunpack.c.l.b16 %v476
    %v506 = vunpack.c.l.b16 %v477
    %v507 = vpack.c.b16 %v497, %v496
    %v508 = vpack.c.b16 %v499, %v498
    %v509 = vpack.c.b16 %v501, %v500
    %v510 = vpack.c.b16 %v503, %v502
    %v511 = vpack.c.b16 %v505, %v504
    %v512 = vpack.c.b16 %v506, %v506
    %vm518 = vcmask 687104
    %v520 = vsel %vm518, %v466, 0
    %vm522 = vcmask 1041408
    %v524 = vsel %vm522, %v512, 0
    %526 = vmatprep.subr.bf16.mxu0 0
    %527 = vmatpush1.bf16.msra.mxu0 %v507
    %528 = vmatprep.subr.bf16.mxu0 0
    %529 = vmatpush1.bf16.msra.mxu0 %v508
    %530 = vmatprep.subr.bf16.mxu0 0
    %531 = vmatpush1.bf16.msra.mxu0 %v509
    %532 = vmatprep.subr.bf16.mxu0 0
    %533 = vmatpush1.bf16.msra.mxu0 %v510
    %534 = vmatprep.subr.bf16.mxu0 0
    %535 = vmatpush1.bf16.msra.mxu0 %v511
    %536 = vmatprep.subr.bf16.mxu0 0
    %537 = vmatpush1.bf16.msra.mxu0 %v524
    %538 = vmatprep.subr.bf16.mxu0 0
    %539 = vmatpush1.bf16.msra.mxu0 0
    %540 = vmatprep.subr.bf16.mxu0 0
    %541 = vmatpush1.bf16.msra.mxu0 0
    %542 = vmatprep.subr.bf16.mxu0 0
    %543 = vmatpush1.bf16.msra.mxu0 0
    %544 = vmatprep.subr.bf16.mxu0 0
    %545 = vmatpush1.bf16.msra.mxu0 0
    %546 = vmatprep.subr.bf16.mxu0 0
    %547 = vmatpush1.bf16.msra.mxu0 0
    %548 = vmatprep.subr.bf16.mxu0 0
    %549 = vmatpush1.bf16.msra.mxu0 0
    %550 = vmatprep.subr.bf16.mxu0 0
    %551 = vmatpush1.bf16.msra.mxu0 0
    %552 = vmatprep.subr.bf16.mxu0 0
    %553 = vmatpush1.bf16.msra.mxu0 0
    %554 = vmatprep.subr.bf16.mxu0 0
    %555 = vmatpush1.bf16.msra.mxu0 0
    %556 = vmatprep.subr.bf16.mxu0 0
    %557 = vmatpush1.bf16.msra.mxu0 0
    %558 = vmatprep.mubr.bf16.mxu0 0
    %559 = vmatmul.mubr.bf16.gmra.mrb[0].mxu0 %v520
    %v560 = vpop.f32.mrb[0].mxu0
    %v561 = vadd.f32 %v483, %v560
    %v562 = vpop.f32.mrb[0].mxu0
    %v563 = vpop.f32.mrb[0].mxu0
    %v564 = vpop.f32.mrb[0].mxu0
    %565 = vdwg.mxu0
    %vm566 = vcmask 74752
    %567 = vst.msk [vmem:[#allocation2] sm:$0x3] %vm566, %v561
    // Predicated region
    $region30: #{lenet_forward.5} parent=1 // pred_check
      _
    $region31: #{lenet_forward.5} parent=1 // pred_check_branch
      %569 = sbr.rel (0) target = $region33
    $region32: #{lenet_forward.5} parent=1 // pred_region
      %s571 = ssub.s32 32, 32
      %572 = vsyncadd [#allocation3], %s571
      %s574 = sshll.u32 [#allocation2], 4
      %s575 = int_to_ptr.vmem [resolvable:$true] %s574
      %577 = dma.vmem_to_hbm [thread:$0]  %s575, 32, %s7, [#allocation3]
    $region33: #{lenet_forward.5} parent=1 // pred_fallthru
      _
    // Predicated region
    $region34: #{lenet_forward.5} parent=1 // pred_check
      _
    $region35: #{lenet_forward.5} parent=1 // pred_check_branch
      %579 = sbr.rel (0) target = $region37
    $region36: #{lenet_forward.5} parent=1 // pred_region
      %580 = dma.done [#allocation3], 32
    $region37: #{lenet_forward.5} parent=1 // pred_fallthru
      _
    %581 = vsyncpa [#allocation3], 1

</llo_original>
